<compile_context>
chip_gen: v5e
topology: v5e:2x2
jax: 0.10.0
libtpu: 0.0.40
codegen_flags: <defaults>
</compile_context>

<pallas_src>
import functools

import jax
import jax.numpy as jnp
from jax.experimental import pallas as pl
from jax.experimental.pallas import tpu as pltpu

HIDDEN = 64            # logical hidden size (PyTorch hidden_layer_size)
H_PAD = 128            # lane-padded hidden size (one full vreg lane width)
NUM_LAYERS = 2
OUTPUT_SEQ_LEN = 180
INPUT_SIZE = 1
OUTPUT_SIZE = 1
SEQ_LEN = 8


# --------------------------------------------------------------------------- #
# Pallas kernel
# --------------------------------------------------------------------------- #
def _lstm_cell(z, c):
    """One LSTM cell update from pre-activations z.

    The i/f/o columns of the weights & bias were pre-scaled by 0.5, so
    sigmoid(a) == 0.5*tanh(z)+0.5 with z == a/2 (one EUP push per gate, no
    extra pre-multiply on the serial path)."""
    H = H_PAD
    i = 0.5 * jnp.tanh(z[:, 0 * H:1 * H]) + 0.5
    f = 0.5 * jnp.tanh(z[:, 1 * H:2 * H]) + 0.5
    g = jnp.tanh(z[:, 2 * H:3 * H])
    o = 0.5 * jnp.tanh(z[:, 3 * H:4 * H]) + 0.5
    c_new = f * c + i * g
    h_new = o * jnp.tanh(c_new)
    return h_new, c_new
    # Padded lanes: z == 0 -> i=f=o=0.5, g=0 -> c stays 0, h stays 0.


def _fused_lstm_kernel(x_ref, wih0_ref, whh0_ref, b0_ref, w1_ref, b1_ref,
                       wlin_ref, blin_ref, out_ref, gx0_scr, hseq_scr, *,
                       seq_len):
    """Fused: LSTM layer 0 + LSTM layer 1 (software-pipelined) + Linear.

    x_ref:    (T, 1)               raw scalar input sequence
    wih0_ref: (1, 4*H_PAD)         W_ih0^T single row (input_size == 1)
    whh0_ref: (H_PAD, 4*H_PAD)     W_hh0^T (zero-padded, i/f/o cols * 0.5)
    b0_ref:   (1, 4*H_PAD)         b_ih0 + b_hh0 (i/f/o * 0.5)
    w1_ref:   (2*H_PAD, 4*H_PAD)   [W_ih1^T ; W_hh1^T] stacked (fused layer-1)
    b1_ref:   (1, 4*H_PAD)         b_ih1 + b_hh1 (i/f/o * 0.5)
    wlin_ref: (H_PAD, H_PAD)       linear W^T (zero-padded)
    blin_ref: (1, H_PAD)           linear bias (zero-padded)
    out_ref:  (T, H_PAD)           predictions live in column 0 (lane-dense)
    gx0_scr:  (T, 4*H_PAD)         scratch: layer-0 input projections
    hseq_scr: (T, H_PAD)           scratch: layer-1 hidden sequence
    """
    # ---- layer-0 input projection for ALL timesteps: VPU broadcast multiply
    # (input_size == 1, a matmul here would be 127/128 zeros).
    gx0_scr[...] = x_ref[...] * wih0_ref[...] + b0_ref[...]

    # Recurrent weights read once, hoisted out of the unrolled loop.
    whh0 = whh0_ref[...]                         # (H_PAD, 4*H_PAD)
    w1 = w1_ref[...]                             # (2*H_PAD, 4*H_PAD)
    b1 = b1_ref[...]                             # (1, 4*H_PAD)

    zeros = jnp.zeros((1, H_PAD), jnp.float32)
    h0_prev, c0 = zeros, zeros
    h1, c1 = zeros, zeros

    def layer1_step(t, h0_in, h1_in, c1_in):
        # Fused input-projection + recurrence: one 256-deep MXU pass.
        lhs = jnp.concatenate([h0_in, h1_in], axis=1)            # (1, 2*H_PAD)
        z1 = jnp.dot(lhs, w1, preferred_element_type=jnp.float32) + b1
        h1_new, c1_new = _lstm_cell(z1, c1_in)
        hseq_scr[t:t + 1, :] = h1_new
        return h1_new, c1_new

    # Software-pipelined recurrence: stage t runs layer-0 step t and layer-1
    # step t-1.  Layer-1 step t-1 only needs h0_{t-1} / h1_{t-2}, so the two
    # per-stage cells are data-independent and the serial critical path is
    # ~T+1 chained cells instead of 2T.
    # TODO(synk): for production seq_len >= ~180, switch this static unroll to
    # lax.fori_loop(..., unroll=4..8) carrying (h0, c0, h1, c1).
    for t in range(seq_len):                     # static unroll, T = 8
        z0 = (jnp.dot(h0_prev, whh0, preferred_element_type=jnp.float32)
              + gx0_scr[t:t + 1, :])
        h0_cur, c0 = _lstm_cell(z0, c0)
        if t >= 1:
            h1, c1 = layer1_step(t - 1, h0_prev, h1, c1)
        h0_prev = h0_cur
    h1, c1 = layer1_step(seq_len - 1, h0_prev, h1, c1)           # drain stage

    # ---- linear head over the full layer-1 hidden sequence (128-lane store)
    out_ref[...] = (jnp.dot(hseq_scr[...], wlin_ref[...],
                            preferred_element_type=jnp.float32) + blin_ref[...])


# --------------------------------------------------------------------------- #
# One-time parameter preparation (pad gate columns 64 -> 128, fold 0.5 scale)
# --------------------------------------------------------------------------- #
def _pad_gate_cols(a, scale_ifo=True):
    """(.., 4*HIDDEN) -> (.., 4*H_PAD): zero-pad each gate block to H_PAD lanes
    and pre-scale the i/f/o gate blocks by 0.5 (sigmoid-via-tanh fold)."""
    lead = a.shape[:-1]
    a4 = a.reshape(*lead, 4, HIDDEN)
    if scale_ifo:
        s = jnp.array([0.5, 0.5, 1.0, 0.5], a.dtype)
        a4 = a4 * s.reshape((1,) * len(lead) + (4, 1))
    a4 = jnp.pad(a4, [(0, 0)] * len(lead) + [(0, 0), (0, H_PAD - HIDDEN)])
    return a4.reshape(*lead, 4 * H_PAD)


def _pad_rows(a, rows):
    return jnp.pad(a, ((0, rows - a.shape[0]), (0, 0)))


def prepare_kernel_params(params):
    """Pad / pre-scale the PyTorch-layout params ONCE (not per forward call)."""
    p0, p1 = params["lstm"]
    lin = params["linear"]
    # Fused layer-1 weight: rows 0..H_PAD-1 contract with h0 (layer-1 input),
    # rows H_PAD..2*H_PAD-1 contract with h1 (layer-1 recurrence).
    w1 = jnp.concatenate(
        [_pad_rows(_pad_gate_cols(p1["w_ih_t"]), H_PAD),
         _pad_rows(_pad_gate_cols(p1["w_hh_t"]), H_PAD)], axis=0)
    return {
        "wih0": _pad_gate_cols(p0["w_ih_t"]),                    # (1, 4*H_PAD)
        "whh0": _pad_rows(_pad_gate_cols(p0["w_hh_t"]), H_PAD),  # (H_PAD, 4*H_PAD)
        "b0":   _pad_gate_cols(p0["bias"]),
        "w1":   w1,                                              # (2*H_PAD, 4*H_PAD)
        "b1":   _pad_gate_cols(p1["bias"]),
        "wlin": jnp.pad(lin["w_t"],
                        ((0, H_PAD - HIDDEN), (0, H_PAD - OUTPUT_SIZE))),
        "blin": jnp.pad(lin["b"], ((0, 0), (0, H_PAD - OUTPUT_SIZE))),
    }


# --------------------------------------------------------------------------- #
# Wrapper
# --------------------------------------------------------------------------- #
def _lstm_forward_impl(x, kp):
    seq_len = x.shape[0]
    vmem = pl.BlockSpec(memory_space=pltpu.MemorySpace.VMEM)
    out = pl.pallas_call(
        functools.partial(_fused_lstm_kernel, seq_len=seq_len),
        out_shape=jax.ShapeDtypeStruct((seq_len, H_PAD), jnp.float32),
        in_specs=[vmem] * 8,
        out_specs=vmem,
        scratch_shapes=[pltpu.VMEM((seq_len, 4 * H_PAD), jnp.float32),  # gx0
                        pltpu.VMEM((seq_len, H_PAD), jnp.float32)],     # h1 seq
    )(x.astype(jnp.float32), kp["wih0"], kp["whh0"], kp["b0"],
      kp["w1"], kp["b1"], kp["wlin"], kp["blin"])

    preds = out[:, :OUTPUT_SIZE]                               # (T, 1)
    # predictions[-output_seq_len:]  (Python slicing clamps when T < 180)
    start = max(0, seq_len - OUTPUT_SEQ_LEN)
    return preds[start:]


lstm_forward = jax.jit(_lstm_forward_impl)
# TODO(synk): the PyTorch module also carries self.hidden_cell across forward()
# calls; this kernel starts from the zero initial state each call (returning the
# final (h, c) as extra outputs is a trivial extension if needed).


# --------------------------------------------------------------------------- #
# Deterministic parameter init + pure-JAX reference
# --------------------------------------------------------------------------- #
def make_params(key):
    params = {"lstm": []}
    scale = 1.0 / jnp.sqrt(HIDDEN)
    for layer in range(NUM_LAYERS):
        d_in = INPUT_SIZE if layer == 0 else HIDDEN
        key, k1, k2, k3, k4 = jax.random.split(key, 5)
        w_ih = jax.random.uniform(k1, (4 * HIDDEN, d_in), jnp.float32, -scale, scale)
        w_hh = jax.random.uniform(k2, (4 * HIDDEN, HIDDEN), jnp.float32, -scale, scale)
        b_ih = jax.random.uniform(k3, (4 * HIDDEN,), jnp.float32, -scale, scale)
        b_hh = jax.random.uniform(k4, (4 * HIDDEN,), jnp.float32, -scale, scale)
        params["lstm"].append({
            "w_ih_t": w_ih.T,                       # (D_in, 4H)
            "w_hh_t": w_hh.T,                       # (H, 4H)
            "bias": (b_ih + b_hh)[None, :],         # (1, 4H)
        })
    key, k5, k6 = jax.random.split(key, 3)
    w_lin = jax.random.uniform(k5, (OUTPUT_SIZE, HIDDEN), jnp.float32, -scale, scale)
    b_lin = jax.random.uniform(k6, (OUTPUT_SIZE,), jnp.float32, -scale, scale)
    params["linear"] = {"w_t": w_lin.T, "b": b_lin[None, :]}
    return params


def reference_forward(x, params):
    h_in = x
    for layer in range(NUM_LAYERS):
        p = params["lstm"][layer]
        h = jnp.zeros((1, HIDDEN), jnp.float32)
        c = jnp.zeros((1, HIDDEN), jnp.float32)
        outs = []
        for t in range(h_in.shape[0]):
            gates = h_in[t:t + 1] @ p["w_ih_t"] + h @ p["w_hh_t"] + p["bias"]
            i = jax.nn.sigmoid(gates[:, 0 * HIDDEN:1 * HIDDEN])
            f = jax.nn.sigmoid(gates[:, 1 * HIDDEN:2 * HIDDEN])
            g = jnp.tanh(gates[:, 2 * HIDDEN:3 * HIDDEN])
            o = jax.nn.sigmoid(gates[:, 3 * HIDDEN:4 * HIDDEN])
            c = f * c + i * g
            h = o * jnp.tanh(c)
            outs.append(h)
        h_in = jnp.concatenate(outs, axis=0)
    preds = h_in @ params["linear"]["w_t"] + params["linear"]["b"]
    start = max(0, preds.shape[0] - OUTPUT_SEQ_LEN)
    return preds[start:]


# --------------------------------------------------------------------------- #
if __name__ == "__main__":
    key = jax.random.PRNGKey(0)
    key, kx = jax.random.split(key)
    # input_seq: (seq_len,) scalar series -> viewed as (T, 1) time-major
    x = jax.random.normal(kx, (SEQ_LEN, INPUT_SIZE), jnp.float32)

    params = make_params(key)
    kernel_params = prepare_kernel_params(params)   # one-time padding/prescale

    out = lstm_forward(x, kernel_params)
    out = jax.block_until_ready(out)

    ref = reference_forward(x, params)
    assert out.shape == ref.shape, (out.shape, ref.shape)
    assert jnp.allclose(out, ref, atol=1e-5, rtol=1e-5), \
        float(jnp.max(jnp.abs(out - ref)))

    print("KERNEL_OK")
</pallas_src>

<mosaic_0001>
module attributes {stable_mosaic.version = 11 : i64} {
  func.func @_fused_lstm_kernel(%arg0: memref<8x1xf32, #tpu.memory_space<vmem>>, %arg1: memref<1x512xf32, #tpu.memory_space<vmem>>, %arg2: memref<128x512xf32, #tpu.memory_space<vmem>>, %arg3: memref<1x512xf32, #tpu.memory_space<vmem>>, %arg4: memref<256x512xf32, #tpu.memory_space<vmem>>, %arg5: memref<1x512xf32, #tpu.memory_space<vmem>>, %arg6: memref<128x128xf32, #tpu.memory_space<vmem>>, %arg7: memref<1x128xf32, #tpu.memory_space<vmem>>, %arg8: memref<8x128xf32, #tpu.memory_space<vmem>>, %arg9: memref<8x512xf32, #tpu.memory_space<vmem>>, %arg10: memref<8x128xf32, #tpu.memory_space<vmem>>) attributes {dimension_semantics = [], scalar_prefetch = 0 : i64, scratch_operands = 2 : i64, tpu.core_type = #tpu.core_type<tc>} {
    %c0 = arith.constant 0 : index
    %c0_0 = arith.constant 0 : index
    %0 = vector.load %arg0[%c0, %c0_0] : memref<8x1xf32, #tpu.memory_space<vmem>>, vector<8x1xf32>
    %c0_1 = arith.constant 0 : index
    %c0_2 = arith.constant 0 : index
    %1 = vector.load %arg1[%c0_1, %c0_2] : memref<1x512xf32, #tpu.memory_space<vmem>>, vector<1x512xf32>
    %2 = vector.broadcast %0 : vector<8x1xf32> to vector<8x512xf32>
    %3 = vector.broadcast %1 : vector<1x512xf32> to vector<8x512xf32>
    %4 = arith.mulf %2, %3 : vector<8x512xf32>
    %c0_3 = arith.constant 0 : index
    %c0_4 = arith.constant 0 : index
    %5 = vector.load %arg3[%c0_3, %c0_4] : memref<1x512xf32, #tpu.memory_space<vmem>>, vector<1x512xf32>
    %6 = vector.broadcast %5 : vector<1x512xf32> to vector<8x512xf32>
    %7 = arith.addf %4, %6 : vector<8x512xf32>
    %c0_5 = arith.constant 0 : index
    %c0_6 = arith.constant 0 : index
    %8 = vector.load %arg9[%c0_5, %c0_6] : memref<8x512xf32, #tpu.memory_space<vmem>>, vector<8x512xf32>
    tpu.vector_store %arg9[%c0_5, %c0_6], %7 {strides = array<i32>} : memref<8x512xf32, #tpu.memory_space<vmem>>, vector<8x512xf32>,
    %c0_7 = arith.constant 0 : index
    %c0_8 = arith.constant 0 : index
    %9 = vector.load %arg2[%c0_7, %c0_8] : memref<128x512xf32, #tpu.memory_space<vmem>>, vector<128x512xf32>
    %c0_9 = arith.constant 0 : index
    %c0_10 = arith.constant 0 : index
    %10 = vector.load %arg4[%c0_9, %c0_10] : memref<256x512xf32, #tpu.memory_space<vmem>>, vector<256x512xf32>
    %c0_11 = arith.constant 0 : index
    %c0_12 = arith.constant 0 : index
    %11 = vector.load %arg5[%c0_11, %c0_12] : memref<1x512xf32, #tpu.memory_space<vmem>>, vector<1x512xf32>
    %cst = arith.constant 0.000000e+00 : f32
    %12 = vector.broadcast %cst : f32 to vector<1x128xf32>
    %cst_13 = arith.constant dense<0.000000e+00> : vector<1x512xf32>
    %13 = tpu.matmul %12, %9, %cst_13 {dimension_numbers = #tpu.dot_dimension_numbers<[1], [0], [0], [1], [0, 0, 1, 1], [], []>} : vector<1x128xf32>, vector<128x512xf32>, vector<1x512xf32> -> vector<1x512xf32>
    %c0_14 = arith.constant 0 : index
    %c0_15 = arith.constant 0 : index
    %14 = vector.load %arg9[%c0_14, %c0_15] : memref<8x512xf32, #tpu.memory_space<vmem>>, vector<1x512xf32>
    %15 = arith.addf %13, %14 : vector<1x512xf32>
    %16 = vector.extract_strided_slice %15 {offsets = [0, 0], sizes = [1, 128], strides = [1, 1]} : vector<1x512xf32> to vector<1x128xf32>
    %17 = math.tanh %16 : vector<1x128xf32>
    %cst_16 = arith.constant 5.000000e-01 : f32
    %18 = vector.broadcast %cst_16 : f32 to vector<1x128xf32>
    %19 = arith.mulf %18, %17 : vector<1x128xf32>
    %cst_17 = arith.constant 5.000000e-01 : f32
    %20 = vector.broadcast %cst_17 : f32 to vector<1x128xf32>
    %21 = arith.addf %19, %20 : vector<1x128xf32>
    %22 = vector.extract_strided_slice %15 {offsets = [0, 128], sizes = [1, 128], strides = [1, 1]} : vector<1x512xf32> to vector<1x128xf32>
    %23 = math.tanh %22 : vector<1x128xf32>
    %cst_18 = arith.constant 5.000000e-01 : f32
    %24 = vector.broadcast %cst_18 : f32 to vector<1x128xf32>
    %25 = arith.mulf %24, %23 : vector<1x128xf32>
    %cst_19 = arith.constant 5.000000e-01 : f32
    %26 = vector.broadcast %cst_19 : f32 to vector<1x128xf32>
    %27 = arith.addf %25, %26 : vector<1x128xf32>
    %28 = vector.extract_strided_slice %15 {offsets = [0, 256], sizes = [1, 128], strides = [1, 1]} : vector<1x512xf32> to vector<1x128xf32>
    %29 = math.tanh %28 : vector<1x128xf32>
    %30 = vector.extract_strided_slice %15 {offsets = [0, 384], sizes = [1, 128], strides = [1, 1]} : vector<1x512xf32> to vector<1x128xf32>
    %31 = math.tanh %30 : vector<1x128xf32>
    %cst_20 = arith.constant 5.000000e-01 : f32
    %32 = vector.broadcast %cst_20 : f32 to vector<1x128xf32>
    %33 = arith.mulf %32, %31 : vector<1x128xf32>
    %cst_21 = arith.constant 5.000000e-01 : f32
    %34 = vector.broadcast %cst_21 : f32 to vector<1x128xf32>
    %35 = arith.addf %33, %34 : vector<1x128xf32>
    %36 = arith.mulf %27, %12 : vector<1x128xf32>
    %37 = arith.mulf %21, %29 : vector<1x128xf32>
    %38 = arith.addf %36, %37 : vector<1x128xf32>
    %39 = math.tanh %38 : vector<1x128xf32>
    %40 = arith.mulf %35, %39 : vector<1x128xf32>
    %cst_22 = arith.constant dense<0.000000e+00> : vector<1x512xf32>
    %41 = tpu.matmul %40, %9, %cst_22 {dimension_numbers = #tpu.dot_dimension_numbers<[1], [0], [0], [1], [0, 0, 1, 1], [], []>} : vector<1x128xf32>, vector<128x512xf32>, vector<1x512xf32> -> vector<1x512xf32>
    %c1 = arith.constant 1 : index
    %c0_23 = arith.constant 0 : index
    %42 = vector.load %arg9[%c1, %c0_23] : memref<8x512xf32, #tpu.memory_space<vmem>>, vector<1x512xf32>
    %43 = arith.addf %41, %42 : vector<1x512xf32>
    %44 = vector.extract_strided_slice %43 {offsets = [0, 0], sizes = [1, 128], strides = [1, 1]} : vector<1x512xf32> to vector<1x128xf32>
    %45 = math.tanh %44 : vector<1x128xf32>
    %cst_24 = arith.constant 5.000000e-01 : f32
    %46 = vector.broadcast %cst_24 : f32 to vector<1x128xf32>
    %47 = arith.mulf %46, %45 : vector<1x128xf32>
    %cst_25 = arith.constant 5.000000e-01 : f32
    %48 = vector.broadcast %cst_25 : f32 to vector<1x128xf32>
    %49 = arith.addf %47, %48 : vector<1x128xf32>
    %50 = vector.extract_strided_slice %43 {offsets = [0, 128], sizes = [1, 128], strides = [1, 1]} : vector<1x512xf32> to vector<1x128xf32>
    %51 = math.tanh %50 : vector<1x128xf32>
    %cst_26 = arith.constant 5.000000e-01 : f32
    %52 = vector.broadcast %cst_26 : f32 to vector<1x128xf32>
    %53 = arith.mulf %52, %51 : vector<1x128xf32>
    %cst_27 = arith.constant 5.000000e-01 : f32
    %54 = vector.broadcast %cst_27 : f32 to vector<1x128xf32>
    %55 = arith.addf %53, %54 : vector<1x128xf32>
    %56 = vector.extract_strided_slice %43 {offsets = [0, 256], sizes = [1, 128], strides = [1, 1]} : vector<1x512xf32> to vector<1x128xf32>
    %57 = math.tanh %56 : vector<1x128xf32>
    %58 = vector.extract_strided_slice %43 {offsets = [0, 384], sizes = [1, 128], strides = [1, 1]} : vector<1x512xf32> to vector<1x128xf32>
    %59 = math.tanh %58 : vector<1x128xf32>
    %cst_28 = arith.constant 5.000000e-01 : f32
    %60 = vector.broadcast %cst_28 : f32 to vector<1x128xf32>
    %61 = arith.mulf %60, %59 : vector<1x128xf32>
    %cst_29 = arith.constant 5.000000e-01 : f32
    %62 = vector.broadcast %cst_29 : f32 to vector<1x128xf32>
    %63 = arith.addf %61, %62 : vector<1x128xf32>
    %64 = arith.mulf %55, %38 : vector<1x128xf32>
    %65 = arith.mulf %49, %57 : vector<1x128xf32>
    %66 = arith.addf %64, %65 : vector<1x128xf32>
    %67 = math.tanh %66 : vector<1x128xf32>
    %68 = arith.mulf %63, %67 : vector<1x128xf32>
    %69 = tpu.concatenate %40, %12 in 1 : vector<1x128xf32>, vector<1x128xf32> -> vector<1x256xf32>
    %cst_30 = arith.constant dense<0.000000e+00> : vector<1x512xf32>
    %70 = tpu.matmul %69, %10, %cst_30 {dimension_numbers = #tpu.dot_dimension_numbers<[1], [0], [0], [1], [0, 0, 1, 1], [], []>} : vector<1x256xf32>, vector<256x512xf32>, vector<1x512xf32> -> vector<1x512xf32>
    %71 = arith.addf %70, %11 : vector<1x512xf32>
    %72 = vector.extract_strided_slice %71 {offsets = [0, 0], sizes = [1, 128], strides = [1, 1]} : vector<1x512xf32> to vector<1x128xf32>
    %73 = math.tanh %72 : vector<1x128xf32>
    %cst_31 = arith.constant 5.000000e-01 : f32
    %74 = vector.broadcast %cst_31 : f32 to vector<1x128xf32>
    %75 = arith.mulf %74, %73 : vector<1x128xf32>
    %cst_32 = arith.constant 5.000000e-01 : f32
    %76 = vector.broadcast %cst_32 : f32 to vector<1x128xf32>
    %77 = arith.addf %75, %76 : vector<1x128xf32>
    %78 = vector.extract_strided_slice %71 {offsets = [0, 128], sizes = [1, 128], strides = [1, 1]} : vector<1x512xf32> to vector<1x128xf32>
    %79 = math.tanh %78 : vector<1x128xf32>
    %cst_33 = arith.constant 5.000000e-01 : f32
    %80 = vector.broadcast %cst_33 : f32 to vector<1x128xf32>
    %81 = arith.mulf %80, %79 : vector<1x128xf32>
    %cst_34 = arith.constant 5.000000e-01 : f32
    %82 = vector.broadcast %cst_34 : f32 to vector<1x128xf32>
    %83 = arith.addf %81, %82 : vector<1x128xf32>
    %84 = vector.extract_strided_slice %71 {offsets = [0, 256], sizes = [1, 128], strides = [1, 1]} : vector<1x512xf32> to vector<1x128xf32>
    %85 = math.tanh %84 : vector<1x128xf32>
    %86 = vector.extract_strided_slice %71 {offsets = [0, 384], sizes = [1, 128], strides = [1, 1]} : vector<1x512xf32> to vector<1x128xf32>
    %87 = math.tanh %86 : vector<1x128xf32>
    %cst_35 = arith.constant 5.000000e-01 : f32
    %88 = vector.broadcast %cst_35 : f32 to vector<1x128xf32>
    %89 = arith.mulf %88, %87 : vector<1x128xf32>
    %cst_36 = arith.constant 5.000000e-01 : f32
    %90 = vector.broadcast %cst_36 : f32 to vector<1x128xf32>
    %91 = arith.addf %89, %90 : vector<1x128xf32>
    %92 = arith.mulf %83, %12 : vector<1x128xf32>
    %93 = arith.mulf %77, %85 : vector<1x128xf32>
    %94 = arith.addf %92, %93 : vector<1x128xf32>
    %95 = math.tanh %94 : vector<1x128xf32>
    %96 = arith.mulf %91, %95 : vector<1x128xf32>
    %c0_37 = arith.constant 0 : index
    %c0_38 = arith.constant 0 : index
    %97 = vector.load %arg10[%c0_37, %c0_38] : memref<8x128xf32, #tpu.memory_space<vmem>>, vector<1x128xf32>
    tpu.vector_store %arg10[%c0_37, %c0_38], %96 {strides = array<i32>} : memref<8x128xf32, #tpu.memory_space<vmem>>, vector<1x128xf32>,
    %cst_39 = arith.constant dense<0.000000e+00> : vector<1x512xf32>
    %98 = tpu.matmul %68, %9, %cst_39 {dimension_numbers = #tpu.dot_dimension_numbers<[1], [0], [0], [1], [0, 0, 1, 1], [], []>} : vector<1x128xf32>, vector<128x512xf32>, vector<1x512xf32> -> vector<1x512xf32>
    %c2 = arith.constant 2 : index
    %c0_40 = arith.constant 0 : index
    %99 = vector.load %arg9[%c2, %c0_40] : memref<8x512xf32, #tpu.memory_space<vmem>>, vector<1x512xf32>
    %100 = arith.addf %98, %99 : vector<1x512xf32>
    %101 = vector.extract_strided_slice %100 {offsets = [0, 0], sizes = [1, 128], strides = [1, 1]} : vector<1x512xf32> to vector<1x128xf32>
    %102 = math.tanh %101 : vector<1x128xf32>
    %cst_41 = arith.constant 5.000000e-01 : f32
    %103 = vector.broadcast %cst_41 : f32 to vector<1x128xf32>
    %104 = arith.mulf %103, %102 : vector<1x128xf32>
    %cst_42 = arith.constant 5.000000e-01 : f32
    %105 = vector.broadcast %cst_42 : f32 to vector<1x128xf32>
    %106 = arith.addf %104, %105 : vector<1x128xf32>
    %107 = vector.extract_strided_slice %100 {offsets = [0, 128], sizes = [1, 128], strides = [1, 1]} : vector<1x512xf32> to vector<1x128xf32>
    %108 = math.tanh %107 : vector<1x128xf32>
    %cst_43 = arith.constant 5.000000e-01 : f32
    %109 = vector.broadcast %cst_43 : f32 to vector<1x128xf32>
    %110 = arith.mulf %109, %108 : vector<1x128xf32>
    %cst_44 = arith.constant 5.000000e-01 : f32
    %111 = vector.broadcast %cst_44 : f32 to vector<1x128xf32>
    %112 = arith.addf %110, %111 : vector<1x128xf32>
    %113 = vector.extract_strided_slice %100 {offsets = [0, 256], sizes = [1, 128], strides = [1, 1]} : vector<1x512xf32> to vector<1x128xf32>
    %114 = math.tanh %113 : vector<1x128xf32>
    %115 = vector.extract_strided_slice %100 {offsets = [0, 384], sizes = [1, 128], strides = [1, 1]} : vector<1x512xf32> to vector<1x128xf32>
    %116 = math.tanh %115 : vector<1x128xf32>
    %cst_45 = arith.constant 5.000000e-01 : f32
    %117 = vector.broadcast %cst_45 : f32 to vector<1x128xf32>
    %118 = arith.mulf %117, %116 : vector<1x128xf32>
    %cst_46 = arith.constant 5.000000e-01 : f32
    %119 = vector.broadcast %cst_46 : f32 to vector<1x128xf32>
    %120 = arith.addf %118, %119 : vector<1x128xf32>
    %121 = arith.mulf %112, %66 : vector<1x128xf32>
    %122 = arith.mulf %106, %114 : vector<1x128xf32>
    %123 = arith.addf %121, %122 : vector<1x128xf32>
    %124 = math.tanh %123 : vector<1x128xf32>
    %125 = arith.mulf %120, %124 : vector<1x128xf32>
    %126 = tpu.concatenate %68, %96 in 1 : vector<1x128xf32>, vector<1x128xf32> -> vector<1x256xf32>
    %cst_47 = arith.constant dense<0.000000e+00> : vector<1x512xf32>
    %127 = tpu.matmul %126, %10, %cst_47 {dimension_numbers = #tpu.dot_dimension_numbers<[1], [0], [0], [1], [0, 0, 1, 1], [], []>} : vector<1x256xf32>, vector<256x512xf32>, vector<1x512xf32> -> vector<1x512xf32>
    %128 = arith.addf %127, %11 : vector<1x512xf32>
    %129 = vector.extract_strided_slice %128 {offsets = [0, 0], sizes = [1, 128], strides = [1, 1]} : vector<1x512xf32> to vector<1x128xf32>
    %130 = math.tanh %129 : vector<1x128xf32>
    %cst_48 = arith.constant 5.000000e-01 : f32
    %131 = vector.broadcast %cst_48 : f32 to vector<1x128xf32>
    %132 = arith.mulf %131, %130 : vector<1x128xf32>
    %cst_49 = arith.constant 5.000000e-01 : f32
    %133 = vector.broadcast %cst_49 : f32 to vector<1x128xf32>
    %134 = arith.addf %132, %133 : vector<1x128xf32>
    %135 = vector.extract_strided_slice %128 {offsets = [0, 128], sizes = [1, 128], strides = [1, 1]} : vector<1x512xf32> to vector<1x128xf32>
    %136 = math.tanh %135 : vector<1x128xf32>
    %cst_50 = arith.constant 5.000000e-01 : f32
    %137 = vector.broadcast %cst_50 : f32 to vector<1x128xf32>
    %138 = arith.mulf %137, %136 : vector<1x128xf32>
    %cst_51 = arith.constant 5.000000e-01 : f32
    %139 = vector.broadcast %cst_51 : f32 to vector<1x128xf32>
    %140 = arith.addf %138, %139 : vector<1x128xf32>
    %141 = vector.extract_strided_slice %128 {offsets = [0, 256], sizes = [1, 128], strides = [1, 1]} : vector<1x512xf32> to vector<1x128xf32>
    %142 = math.tanh %141 : vector<1x128xf32>
    %143 = vector.extract_strided_slice %128 {offsets = [0, 384], sizes = [1, 128], strides = [1, 1]} : vector<1x512xf32> to vector<1x128xf32>
    %144 = math.tanh %143 : vector<1x128xf32>
    %cst_52 = arith.constant 5.000000e-01 : f32
    %145 = vector.broadcast %cst_52 : f32 to vector<1x128xf32>
    %146 = arith.mulf %145, %144 : vector<1x128xf32>
    %cst_53 = arith.constant 5.000000e-01 : f32
    %147 = vector.broadcast %cst_53 : f32 to vector<1x128xf32>
    %148 = arith.addf %146, %147 : vector<1x128xf32>
    %149 = arith.mulf %140, %94 : vector<1x128xf32>
    %150 = arith.mulf %134, %142 : vector<1x128xf32>
    %151 = arith.addf %149, %150 : vector<1x128xf32>
    %152 = math.tanh %151 : vector<1x128xf32>
    %153 = arith.mulf %148, %152 : vector<1x128xf32>
    %c1_54 = arith.constant 1 : index
    %c0_55 = arith.constant 0 : index
    %154 = vector.load %arg10[%c1_54, %c0_55] : memref<8x128xf32, #tpu.memory_space<vmem>>, vector<1x128xf32>
    tpu.vector_store %arg10[%c1_54, %c0_55], %153 {strides = array<i32>} : memref<8x128xf32, #tpu.memory_space<vmem>>, vector<1x128xf32>,
    %cst_56 = arith.constant dense<0.000000e+00> : vector<1x512xf32>
    %155 = tpu.matmul %125, %9, %cst_56 {dimension_numbers = #tpu.dot_dimension_numbers<[1], [0], [0], [1], [0, 0, 1, 1], [], []>} : vector<1x128xf32>, vector<128x512xf32>, vector<1x512xf32> -> vector<1x512xf32>
    %c3 = arith.constant 3 : index
    %c0_57 = arith.constant 0 : index
    %156 = vector.load %arg9[%c3, %c0_57] : memref<8x512xf32, #tpu.memory_space<vmem>>, vector<1x512xf32>
    %157 = arith.addf %155, %156 : vector<1x512xf32>
    %158 = vector.extract_strided_slice %157 {offsets = [0, 0], sizes = [1, 128], strides = [1, 1]} : vector<1x512xf32> to vector<1x128xf32>
    %159 = math.tanh %158 : vector<1x128xf32>
    %cst_58 = arith.constant 5.000000e-01 : f32
    %160 = vector.broadcast %cst_58 : f32 to vector<1x128xf32>
    %161 = arith.mulf %160, %159 : vector<1x128xf32>
    %cst_59 = arith.constant 5.000000e-01 : f32
    %162 = vector.broadcast %cst_59 : f32 to vector<1x128xf32>
    %163 = arith.addf %161, %162 : vector<1x128xf32>
    %164 = vector.extract_strided_slice %157 {offsets = [0, 128], sizes = [1, 128], strides = [1, 1]} : vector<1x512xf32> to vector<1x128xf32>
    %165 = math.tanh %164 : vector<1x128xf32>
    %cst_60 = arith.constant 5.000000e-01 : f32
    %166 = vector.broadcast %cst_60 : f32 to vector<1x128xf32>
    %167 = arith.mulf %166, %165 : vector<1x128xf32>
    %cst_61 = arith.constant 5.000000e-01 : f32
    %168 = vector.broadcast %cst_61 : f32 to vector<1x128xf32>
    %169 = arith.addf %167, %168 : vector<1x128xf32>
    %170 = vector.extract_strided_slice %157 {offsets = [0, 256], sizes = [1, 128], strides = [1, 1]} : vector<1x512xf32> to vector<1x128xf32>
    %171 = math.tanh %170 : vector<1x128xf32>
    %172 = vector.extract_strided_slice %157 {offsets = [0, 384], sizes = [1, 128], strides = [1, 1]} : vector<1x512xf32> to vector<1x128xf32>
    %173 = math.tanh %172 : vector<1x128xf32>
    %cst_62 = arith.constant 5.000000e-01 : f32
    %174 = vector.broadcast %cst_62 : f32 to vector<1x128xf32>
    %175 = arith.mulf %174, %173 : vector<1x128xf32>
    %cst_63 = arith.constant 5.000000e-01 : f32
    %176 = vector.broadcast %cst_63 : f32 to vector<1x128xf32>
    %177 = arith.addf %175, %176 : vector<1x128xf32>
    %178 = arith.mulf %169, %123 : vector<1x128xf32>
    %179 = arith.mulf %163, %171 : vector<1x128xf32>
    %180 = arith.addf %178, %179 : vector<1x128xf32>
    %181 = math.tanh %180 : vector<1x128xf32>
    %182 = arith.mulf %177, %181 : vector<1x128xf32>
    %183 = tpu.concatenate %125, %153 in 1 : vector<1x128xf32>, vector<1x128xf32> -> vector<1x256xf32>
    %cst_64 = arith.constant dense<0.000000e+00> : vector<1x512xf32>
    %184 = tpu.matmul %183, %10, %cst_64 {dimension_numbers = #tpu.dot_dimension_numbers<[1], [0], [0], [1], [0, 0, 1, 1], [], []>} : vector<1x256xf32>, vector<256x512xf32>, vector<1x512xf32> -> vector<1x512xf32>
    %185 = arith.addf %184, %11 : vector<1x512xf32>
    %186 = vector.extract_strided_slice %185 {offsets = [0, 0], sizes = [1, 128], strides = [1, 1]} : vector<1x512xf32> to vector<1x128xf32>
    %187 = math.tanh %186 : vector<1x128xf32>
    %cst_65 = arith.constant 5.000000e-01 : f32
    %188 = vector.broadcast %cst_65 : f32 to vector<1x128xf32>
    %189 = arith.mulf %188, %187 : vector<1x128xf32>
    %cst_66 = arith.constant 5.000000e-01 : f32
    %190 = vector.broadcast %cst_66 : f32 to vector<1x128xf32>
    %191 = arith.addf %189, %190 : vector<1x128xf32>
    %192 = vector.extract_strided_slice %185 {offsets = [0, 128], sizes = [1, 128], strides = [1, 1]} : vector<1x512xf32> to vector<1x128xf32>
    %193 = math.tanh %192 : vector<1x128xf32>
    %cst_67 = arith.constant 5.000000e-01 : f32
    %194 = vector.broadcast %cst_67 : f32 to vector<1x128xf32>
    %195 = arith.mulf %194, %193 : vector<1x128xf32>
    %cst_68 = arith.constant 5.000000e-01 : f32
    %196 = vector.broadcast %cst_68 : f32 to vector<1x128xf32>
    %197 = arith.addf %195, %196 : vector<1x128xf32>
    %198 = vector.extract_strided_slice %185 {offsets = [0, 256], sizes = [1, 128], strides = [1, 1]} : vector<1x512xf32> to vector<1x128xf32>
    %199 = math.tanh %198 : vector<1x128xf32>
    %200 = vector.extract_strided_slice %185 {offsets = [0, 384], sizes = [1, 128], strides = [1, 1]} : vector<1x512xf32> to vector<1x128xf32>
    %201 = math.tanh %200 : vector<1x128xf32>
    %cst_69 = arith.constant 5.000000e-01 : f32
    %202 = vector.broadcast %cst_69 : f32 to vector<1x128xf32>
    %203 = arith.mulf %202, %201 : vector<1x128xf32>
    %cst_70 = arith.constant 5.000000e-01 : f32
    %204 = vector.broadcast %cst_70 : f32 to vector<1x128xf32>
    %205 = arith.addf %203, %204 : vector<1x128xf32>
    %206 = arith.mulf %197, %151 : vector<1x128xf32>
    %207 = arith.mulf %191, %199 : vector<1x128xf32>
    %208 = arith.addf %206, %207 : vector<1x128xf32>
    %209 = math.tanh %208 : vector<1x128xf32>
    %210 = arith.mulf %205, %209 : vector<1x128xf32>
    %c2_71 = arith.constant 2 : index
    %c0_72 = arith.constant 0 : index
    %211 = vector.load %arg10[%c2_71, %c0_72] : memref<8x128xf32, #tpu.memory_space<vmem>>, vector<1x128xf32>
    tpu.vector_store %arg10[%c2_71, %c0_72], %210 {strides = array<i32>} : memref<8x128xf32, #tpu.memory_space<vmem>>, vector<1x128xf32>,
    %cst_73 = arith.constant dense<0.000000e+00> : vector<1x512xf32>
    %212 = tpu.matmul %182, %9, %cst_73 {dimension_numbers = #tpu.dot_dimension_numbers<[1], [0], [0], [1], [0, 0, 1, 1], [], []>} : vector<1x128xf32>, vector<128x512xf32>, vector<1x512xf32> -> vector<1x512xf32>
    %c4 = arith.constant 4 : index
    %c0_74 = arith.constant 0 : index
    %213 = vector.load %arg9[%c4, %c0_74] : memref<8x512xf32, #tpu.memory_space<vmem>>, vector<1x512xf32>
    %214 = arith.addf %212, %213 : vector<1x512xf32>
    %215 = vector.extract_strided_slice %214 {offsets = [0, 0], sizes = [1, 128], strides = [1, 1]} : vector<1x512xf32> to vector<1x128xf32>
    %216 = math.tanh %215 : vector<1x128xf32>
    %cst_75 = arith.constant 5.000000e-01 : f32
    %217 = vector.broadcast %cst_75 : f32 to vector<1x128xf32>
    %218 = arith.mulf %217, %216 : vector<1x128xf32>
    %cst_76 = arith.constant 5.000000e-01 : f32
    %219 = vector.broadcast %cst_76 : f32 to vector<1x128xf32>
    %220 = arith.addf %218, %219 : vector<1x128xf32>
    %221 = vector.extract_strided_slice %214 {offsets = [0, 128], sizes = [1, 128], strides = [1, 1]} : vector<1x512xf32> to vector<1x128xf32>
    %222 = math.tanh %221 : vector<1x128xf32>
    %cst_77 = arith.constant 5.000000e-01 : f32
    %223 = vector.broadcast %cst_77 : f32 to vector<1x128xf32>
    %224 = arith.mulf %223, %222 : vector<1x128xf32>
    %cst_78 = arith.constant 5.000000e-01 : f32
    %225 = vector.broadcast %cst_78 : f32 to vector<1x128xf32>
    %226 = arith.addf %224, %225 : vector<1x128xf32>
    %227 = vector.extract_strided_slice %214 {offsets = [0, 256], sizes = [1, 128], strides = [1, 1]} : vector<1x512xf32> to vector<1x128xf32>
    %228 = math.tanh %227 : vector<1x128xf32>
    %229 = vector.extract_strided_slice %214 {offsets = [0, 384], sizes = [1, 128], strides = [1, 1]} : vector<1x512xf32> to vector<1x128xf32>
    %230 = math.tanh %229 : vector<1x128xf32>
    %cst_79 = arith.constant 5.000000e-01 : f32
    %231 = vector.broadcast %cst_79 : f32 to vector<1x128xf32>
    %232 = arith.mulf %231, %230 : vector<1x128xf32>
    %cst_80 = arith.constant 5.000000e-01 : f32
    %233 = vector.broadcast %cst_80 : f32 to vector<1x128xf32>
    %234 = arith.addf %232, %233 : vector<1x128xf32>
    %235 = arith.mulf %226, %180 : vector<1x128xf32>
    %236 = arith.mulf %220, %228 : vector<1x128xf32>
    %237 = arith.addf %235, %236 : vector<1x128xf32>
    %238 = math.tanh %237 : vector<1x128xf32>
    %239 = arith.mulf %234, %238 : vector<1x128xf32>
    %240 = tpu.concatenate %182, %210 in 1 : vector<1x128xf32>, vector<1x128xf32> -> vector<1x256xf32>
    %cst_81 = arith.constant dense<0.000000e+00> : vector<1x512xf32>
    %241 = tpu.matmul %240, %10, %cst_81 {dimension_numbers = #tpu.dot_dimension_numbers<[1], [0], [0], [1], [0, 0, 1, 1], [], []>} : vector<1x256xf32>, vector<256x512xf32>, vector<1x512xf32> -> vector<1x512xf32>
    %242 = arith.addf %241, %11 : vector<1x512xf32>
    %243 = vector.extract_strided_slice %242 {offsets = [0, 0], sizes = [1, 128], strides = [1, 1]} : vector<1x512xf32> to vector<1x128xf32>
    %244 = math.tanh %243 : vector<1x128xf32>
    %cst_82 = arith.constant 5.000000e-01 : f32
    %245 = vector.broadcast %cst_82 : f32 to vector<1x128xf32>
    %246 = arith.mulf %245, %244 : vector<1x128xf32>
    %cst_83 = arith.constant 5.000000e-01 : f32
    %247 = vector.broadcast %cst_83 : f32 to vector<1x128xf32>
    %248 = arith.addf %246, %247 : vector<1x128xf32>
    %249 = vector.extract_strided_slice %242 {offsets = [0, 128], sizes = [1, 128], strides = [1, 1]} : vector<1x512xf32> to vector<1x128xf32>
    %250 = math.tanh %249 : vector<1x128xf32>
    %cst_84 = arith.constant 5.000000e-01 : f32
    %251 = vector.broadcast %cst_84 : f32 to vector<1x128xf32>
    %252 = arith.mulf %251, %250 : vector<1x128xf32>
    %cst_85 = arith.constant 5.000000e-01 : f32
    %253 = vector.broadcast %cst_85 : f32 to vector<1x128xf32>
    %254 = arith.addf %252, %253 : vector<1x128xf32>
    %255 = vector.extract_strided_slice %242 {offsets = [0, 256], sizes = [1, 128], strides = [1, 1]} : vector<1x512xf32> to vector<1x128xf32>
    %256 = math.tanh %255 : vector<1x128xf32>
    %257 = vector.extract_strided_slice %242 {offsets = [0, 384], sizes = [1, 128], strides = [1, 1]} : vector<1x512xf32> to vector<1x128xf32>
    %258 = math.tanh %257 : vector<1x128xf32>
    %cst_86 = arith.constant 5.000000e-01 : f32
    %259 = vector.broadcast %cst_86 : f32 to vector<1x128xf32>
    %260 = arith.mulf %259, %258 : vector<1x128xf32>
    %cst_87 = arith.constant 5.000000e-01 : f32
    %261 = vector.broadcast %cst_87 : f32 to vector<1x128xf32>
    %262 = arith.addf %260, %261 : vector<1x128xf32>
    %263 = arith.mulf %254, %208 : vector<1x128xf32>
    %264 = arith.mulf %248, %256 : vector<1x128xf32>
    %265 = arith.addf %263, %264 : vector<1x128xf32>
    %266 = math.tanh %265 : vector<1x128xf32>
    %267 = arith.mulf %262, %266 : vector<1x128xf32>
    %c3_88 = arith.constant 3 : index
    %c0_89 = arith.constant 0 : index
    %268 = vector.load %arg10[%c3_88, %c0_89] : memref<8x128xf32, #tpu.memory_space<vmem>>, vector<1x128xf32>
    tpu.vector_store %arg10[%c3_88, %c0_89], %267 {strides = array<i32>} : memref<8x128xf32, #tpu.memory_space<vmem>>, vector<1x128xf32>,
    %cst_90 = arith.constant dense<0.000000e+00> : vector<1x512xf32>
    %269 = tpu.matmul %239, %9, %cst_90 {dimension_numbers = #tpu.dot_dimension_numbers<[1], [0], [0], [1], [0, 0, 1, 1], [], []>} : vector<1x128xf32>, vector<128x512xf32>, vector<1x512xf32> -> vector<1x512xf32>
    %c5 = arith.constant 5 : index
    %c0_91 = arith.constant 0 : index
    %270 = vector.load %arg9[%c5, %c0_91] : memref<8x512xf32, #tpu.memory_space<vmem>>, vector<1x512xf32>
    %271 = arith.addf %269, %270 : vector<1x512xf32>
    %272 = vector.extract_strided_slice %271 {offsets = [0, 0], sizes = [1, 128], strides = [1, 1]} : vector<1x512xf32> to vector<1x128xf32>
    %273 = math.tanh %272 : vector<1x128xf32>
    %cst_92 = arith.constant 5.000000e-01 : f32
    %274 = vector.broadcast %cst_92 : f32 to vector<1x128xf32>
    %275 = arith.mulf %274, %273 : vector<1x128xf32>
    %cst_93 = arith.constant 5.000000e-01 : f32
    %276 = vector.broadcast %cst_93 : f32 to vector<1x128xf32>
    %277 = arith.addf %275, %276 : vector<1x128xf32>
    %278 = vector.extract_strided_slice %271 {offsets = [0, 128], sizes = [1, 128], strides = [1, 1]} : vector<1x512xf32> to vector<1x128xf32>
    %279 = math.tanh %278 : vector<1x128xf32>
    %cst_94 = arith.constant 5.000000e-01 : f32
    %280 = vector.broadcast %cst_94 : f32 to vector<1x128xf32>
    %281 = arith.mulf %280, %279 : vector<1x128xf32>
    %cst_95 = arith.constant 5.000000e-01 : f32
    %282 = vector.broadcast %cst_95 : f32 to vector<1x128xf32>
    %283 = arith.addf %281, %282 : vector<1x128xf32>
    %284 = vector.extract_strided_slice %271 {offsets = [0, 256], sizes = [1, 128], strides = [1, 1]} : vector<1x512xf32> to vector<1x128xf32>
    %285 = math.tanh %284 : vector<1x128xf32>
    %286 = vector.extract_strided_slice %271 {offsets = [0, 384], sizes = [1, 128], strides = [1, 1]} : vector<1x512xf32> to vector<1x128xf32>
    %287 = math.tanh %286 : vector<1x128xf32>
    %cst_96 = arith.constant 5.000000e-01 : f32
    %288 = vector.broadcast %cst_96 : f32 to vector<1x128xf32>
    %289 = arith.mulf %288, %287 : vector<1x128xf32>
    %cst_97 = arith.constant 5.000000e-01 : f32
    %290 = vector.broadcast %cst_97 : f32 to vector<1x128xf32>
    %291 = arith.addf %289, %290 : vector<1x128xf32>
    %292 = arith.mulf %283, %237 : vector<1x128xf32>
    %293 = arith.mulf %277, %285 : vector<1x128xf32>
    %294 = arith.addf %292, %293 : vector<1x128xf32>
    %295 = math.tanh %294 : vector<1x128xf32>
    %296 = arith.mulf %291, %295 : vector<1x128xf32>
    %297 = tpu.concatenate %239, %267 in 1 : vector<1x128xf32>, vector<1x128xf32> -> vector<1x256xf32>
    %cst_98 = arith.constant dense<0.000000e+00> : vector<1x512xf32>
    %298 = tpu.matmul %297, %10, %cst_98 {dimension_numbers = #tpu.dot_dimension_numbers<[1], [0], [0], [1], [0, 0, 1, 1], [], []>} : vector<1x256xf32>, vector<256x512xf32>, vector<1x512xf32> -> vector<1x512xf32>
    %299 = arith.addf %298, %11 : vector<1x512xf32>
    %300 = vector.extract_strided_slice %299 {offsets = [0, 0], sizes = [1, 128], strides = [1, 1]} : vector<1x512xf32> to vector<1x128xf32>
    %301 = math.tanh %300 : vector<1x128xf32>
    %cst_99 = arith.constant 5.000000e-01 : f32
    %302 = vector.broadcast %cst_99 : f32 to vector<1x128xf32>
    %303 = arith.mulf %302, %301 : vector<1x128xf32>
    %cst_100 = arith.constant 5.000000e-01 : f32
    %304 = vector.broadcast %cst_100 : f32 to vector<1x128xf32>
    %305 = arith.addf %303, %304 : vector<1x128xf32>
    %306 = vector.extract_strided_slice %299 {offsets = [0, 128], sizes = [1, 128], strides = [1, 1]} : vector<1x512xf32> to vector<1x128xf32>
    %307 = math.tanh %306 : vector<1x128xf32>
    %cst_101 = arith.constant 5.000000e-01 : f32
    %308 = vector.broadcast %cst_101 : f32 to vector<1x128xf32>
    %309 = arith.mulf %308, %307 : vector<1x128xf32>
    %cst_102 = arith.constant 5.000000e-01 : f32
    %310 = vector.broadcast %cst_102 : f32 to vector<1x128xf32>
    %311 = arith.addf %309, %310 : vector<1x128xf32>
    %312 = vector.extract_strided_slice %299 {offsets = [0, 256], sizes = [1, 128], strides = [1, 1]} : vector<1x512xf32> to vector<1x128xf32>
    %313 = math.tanh %312 : vector<1x128xf32>
    %314 = vector.extract_strided_slice %299 {offsets = [0, 384], sizes = [1, 128], strides = [1, 1]} : vector<1x512xf32> to vector<1x128xf32>
    %315 = math.tanh %314 : vector<1x128xf32>
    %cst_103 = arith.constant 5.000000e-01 : f32
    %316 = vector.broadcast %cst_103 : f32 to vector<1x128xf32>
    %317 = arith.mulf %316, %315 : vector<1x128xf32>
    %cst_104 = arith.constant 5.000000e-01 : f32
    %318 = vector.broadcast %cst_104 : f32 to vector<1x128xf32>
    %319 = arith.addf %317, %318 : vector<1x128xf32>
    %320 = arith.mulf %311, %265 : vector<1x128xf32>
    %321 = arith.mulf %305, %313 : vector<1x128xf32>
    %322 = arith.addf %320, %321 : vector<1x128xf32>
    %323 = math.tanh %322 : vector<1x128xf32>
    %324 = arith.mulf %319, %323 : vector<1x128xf32>
    %c4_105 = arith.constant 4 : index
    %c0_106 = arith.constant 0 : index
    %325 = vector.load %arg10[%c4_105, %c0_106] : memref<8x128xf32, #tpu.memory_space<vmem>>, vector<1x128xf32>
    tpu.vector_store %arg10[%c4_105, %c0_106], %324 {strides = array<i32>} : memref<8x128xf32, #tpu.memory_space<vmem>>, vector<1x128xf32>,
    %cst_107 = arith.constant dense<0.000000e+00> : vector<1x512xf32>
    %326 = tpu.matmul %296, %9, %cst_107 {dimension_numbers = #tpu.dot_dimension_numbers<[1], [0], [0], [1], [0, 0, 1, 1], [], []>} : vector<1x128xf32>, vector<128x512xf32>, vector<1x512xf32> -> vector<1x512xf32>
    %c6 = arith.constant 6 : index
    %c0_108 = arith.constant 0 : index
    %327 = vector.load %arg9[%c6, %c0_108] : memref<8x512xf32, #tpu.memory_space<vmem>>, vector<1x512xf32>
    %328 = arith.addf %326, %327 : vector<1x512xf32>
    %329 = vector.extract_strided_slice %328 {offsets = [0, 0], sizes = [1, 128], strides = [1, 1]} : vector<1x512xf32> to vector<1x128xf32>
    %330 = math.tanh %329 : vector<1x128xf32>
    %cst_109 = arith.constant 5.000000e-01 : f32
    %331 = vector.broadcast %cst_109 : f32 to vector<1x128xf32>
    %332 = arith.mulf %331, %330 : vector<1x128xf32>
    %cst_110 = arith.constant 5.000000e-01 : f32
    %333 = vector.broadcast %cst_110 : f32 to vector<1x128xf32>
    %334 = arith.addf %332, %333 : vector<1x128xf32>
    %335 = vector.extract_strided_slice %328 {offsets = [0, 128], sizes = [1, 128], strides = [1, 1]} : vector<1x512xf32> to vector<1x128xf32>
    %336 = math.tanh %335 : vector<1x128xf32>
    %cst_111 = arith.constant 5.000000e-01 : f32
    %337 = vector.broadcast %cst_111 : f32 to vector<1x128xf32>
    %338 = arith.mulf %337, %336 : vector<1x128xf32>
    %cst_112 = arith.constant 5.000000e-01 : f32
    %339 = vector.broadcast %cst_112 : f32 to vector<1x128xf32>
    %340 = arith.addf %338, %339 : vector<1x128xf32>
    %341 = vector.extract_strided_slice %328 {offsets = [0, 256], sizes = [1, 128], strides = [1, 1]} : vector<1x512xf32> to vector<1x128xf32>
    %342 = math.tanh %341 : vector<1x128xf32>
    %343 = vector.extract_strided_slice %328 {offsets = [0, 384], sizes = [1, 128], strides = [1, 1]} : vector<1x512xf32> to vector<1x128xf32>
    %344 = math.tanh %343 : vector<1x128xf32>
    %cst_113 = arith.constant 5.000000e-01 : f32
    %345 = vector.broadcast %cst_113 : f32 to vector<1x128xf32>
    %346 = arith.mulf %345, %344 : vector<1x128xf32>
    %cst_114 = arith.constant 5.000000e-01 : f32
    %347 = vector.broadcast %cst_114 : f32 to vector<1x128xf32>
    %348 = arith.addf %346, %347 : vector<1x128xf32>
    %349 = arith.mulf %340, %294 : vector<1x128xf32>
    %350 = arith.mulf %334, %342 : vector<1x128xf32>
    %351 = arith.addf %349, %350 : vector<1x128xf32>
    %352 = math.tanh %351 : vector<1x128xf32>
    %353 = arith.mulf %348, %352 : vector<1x128xf32>
    %354 = tpu.concatenate %296, %324 in 1 : vector<1x128xf32>, vector<1x128xf32> -> vector<1x256xf32>
    %cst_115 = arith.constant dense<0.000000e+00> : vector<1x512xf32>
    %355 = tpu.matmul %354, %10, %cst_115 {dimension_numbers = #tpu.dot_dimension_numbers<[1], [0], [0], [1], [0, 0, 1, 1], [], []>} : vector<1x256xf32>, vector<256x512xf32>, vector<1x512xf32> -> vector<1x512xf32>
    %356 = arith.addf %355, %11 : vector<1x512xf32>
    %357 = vector.extract_strided_slice %356 {offsets = [0, 0], sizes = [1, 128], strides = [1, 1]} : vector<1x512xf32> to vector<1x128xf32>
    %358 = math.tanh %357 : vector<1x128xf32>
    %cst_116 = arith.constant 5.000000e-01 : f32
    %359 = vector.broadcast %cst_116 : f32 to vector<1x128xf32>
    %360 = arith.mulf %359, %358 : vector<1x128xf32>
    %cst_117 = arith.constant 5.000000e-01 : f32
    %361 = vector.broadcast %cst_117 : f32 to vector<1x128xf32>
    %362 = arith.addf %360, %361 : vector<1x128xf32>
    %363 = vector.extract_strided_slice %356 {offsets = [0, 128], sizes = [1, 128], strides = [1, 1]} : vector<1x512xf32> to vector<1x128xf32>
    %364 = math.tanh %363 : vector<1x128xf32>
    %cst_118 = arith.constant 5.000000e-01 : f32
    %365 = vector.broadcast %cst_118 : f32 to vector<1x128xf32>
    %366 = arith.mulf %365, %364 : vector<1x128xf32>
    %cst_119 = arith.constant 5.000000e-01 : f32
    %367 = vector.broadcast %cst_119 : f32 to vector<1x128xf32>
    %368 = arith.addf %366, %367 : vector<1x128xf32>
    %369 = vector.extract_strided_slice %356 {offsets = [0, 256], sizes = [1, 128], strides = [1, 1]} : vector<1x512xf32> to vector<1x128xf32>
    %370 = math.tanh %369 : vector<1x128xf32>
    %371 = vector.extract_strided_slice %356 {offsets = [0, 384], sizes = [1, 128], strides = [1, 1]} : vector<1x512xf32> to vector<1x128xf32>
    %372 = math.tanh %371 : vector<1x128xf32>
    %cst_120 = arith.constant 5.000000e-01 : f32
    %373 = vector.broadcast %cst_120 : f32 to vector<1x128xf32>
    %374 = arith.mulf %373, %372 : vector<1x128xf32>
    %cst_121 = arith.constant 5.000000e-01 : f32
    %375 = vector.broadcast %cst_121 : f32 to vector<1x128xf32>
    %376 = arith.addf %374, %375 : vector<1x128xf32>
    %377 = arith.mulf %368, %322 : vector<1x128xf32>
    %378 = arith.mulf %362, %370 : vector<1x128xf32>
    %379 = arith.addf %377, %378 : vector<1x128xf32>
    %380 = math.tanh %379 : vector<1x128xf32>
    %381 = arith.mulf %376, %380 : vector<1x128xf32>
    %c5_122 = arith.constant 5 : index
    %c0_123 = arith.constant 0 : index
    %382 = vector.load %arg10[%c5_122, %c0_123] : memref<8x128xf32, #tpu.memory_space<vmem>>, vector<1x128xf32>
    tpu.vector_store %arg10[%c5_122, %c0_123], %381 {strides = array<i32>} : memref<8x128xf32, #tpu.memory_space<vmem>>, vector<1x128xf32>,
    %cst_124 = arith.constant dense<0.000000e+00> : vector<1x512xf32>
    %383 = tpu.matmul %353, %9, %cst_124 {dimension_numbers = #tpu.dot_dimension_numbers<[1], [0], [0], [1], [0, 0, 1, 1], [], []>} : vector<1x128xf32>, vector<128x512xf32>, vector<1x512xf32> -> vector<1x512xf32>
    %c7 = arith.constant 7 : index
    %c0_125 = arith.constant 0 : index
    %384 = vector.load %arg9[%c7, %c0_125] : memref<8x512xf32, #tpu.memory_space<vmem>>, vector<1x512xf32>
    %385 = arith.addf %383, %384 : vector<1x512xf32>
    %386 = vector.extract_strided_slice %385 {offsets = [0, 0], sizes = [1, 128], strides = [1, 1]} : vector<1x512xf32> to vector<1x128xf32>
    %387 = math.tanh %386 : vector<1x128xf32>
    %cst_126 = arith.constant 5.000000e-01 : f32
    %388 = vector.broadcast %cst_126 : f32 to vector<1x128xf32>
    %389 = arith.mulf %388, %387 : vector<1x128xf32>
    %cst_127 = arith.constant 5.000000e-01 : f32
    %390 = vector.broadcast %cst_127 : f32 to vector<1x128xf32>
    %391 = arith.addf %389, %390 : vector<1x128xf32>
    %392 = vector.extract_strided_slice %385 {offsets = [0, 128], sizes = [1, 128], strides = [1, 1]} : vector<1x512xf32> to vector<1x128xf32>
    %393 = math.tanh %392 : vector<1x128xf32>
    %cst_128 = arith.constant 5.000000e-01 : f32
    %394 = vector.broadcast %cst_128 : f32 to vector<1x128xf32>
    %395 = arith.mulf %394, %393 : vector<1x128xf32>
    %cst_129 = arith.constant 5.000000e-01 : f32
    %396 = vector.broadcast %cst_129 : f32 to vector<1x128xf32>
    %397 = arith.addf %395, %396 : vector<1x128xf32>
    %398 = vector.extract_strided_slice %385 {offsets = [0, 256], sizes = [1, 128], strides = [1, 1]} : vector<1x512xf32> to vector<1x128xf32>
    %399 = math.tanh %398 : vector<1x128xf32>
    %400 = vector.extract_strided_slice %385 {offsets = [0, 384], sizes = [1, 128], strides = [1, 1]} : vector<1x512xf32> to vector<1x128xf32>
    %401 = math.tanh %400 : vector<1x128xf32>
    %cst_130 = arith.constant 5.000000e-01 : f32
    %402 = vector.broadcast %cst_130 : f32 to vector<1x128xf32>
    %403 = arith.mulf %402, %401 : vector<1x128xf32>
    %cst_131 = arith.constant 5.000000e-01 : f32
    %404 = vector.broadcast %cst_131 : f32 to vector<1x128xf32>
    %405 = arith.addf %403, %404 : vector<1x128xf32>
    %406 = arith.mulf %397, %351 : vector<1x128xf32>
    %407 = arith.mulf %391, %399 : vector<1x128xf32>
    %408 = arith.addf %406, %407 : vector<1x128xf32>
    %409 = math.tanh %408 : vector<1x128xf32>
    %410 = arith.mulf %405, %409 : vector<1x128xf32>
    %411 = tpu.concatenate %353, %381 in 1 : vector<1x128xf32>, vector<1x128xf32> -> vector<1x256xf32>
    %cst_132 = arith.constant dense<0.000000e+00> : vector<1x512xf32>
    %412 = tpu.matmul %411, %10, %cst_132 {dimension_numbers = #tpu.dot_dimension_numbers<[1], [0], [0], [1], [0, 0, 1, 1], [], []>} : vector<1x256xf32>, vector<256x512xf32>, vector<1x512xf32> -> vector<1x512xf32>
    %413 = arith.addf %412, %11 : vector<1x512xf32>
    %414 = vector.extract_strided_slice %413 {offsets = [0, 0], sizes = [1, 128], strides = [1, 1]} : vector<1x512xf32> to vector<1x128xf32>
    %415 = math.tanh %414 : vector<1x128xf32>
    %cst_133 = arith.constant 5.000000e-01 : f32
    %416 = vector.broadcast %cst_133 : f32 to vector<1x128xf32>
    %417 = arith.mulf %416, %415 : vector<1x128xf32>
    %cst_134 = arith.constant 5.000000e-01 : f32
    %418 = vector.broadcast %cst_134 : f32 to vector<1x128xf32>
    %419 = arith.addf %417, %418 : vector<1x128xf32>
    %420 = vector.extract_strided_slice %413 {offsets = [0, 128], sizes = [1, 128], strides = [1, 1]} : vector<1x512xf32> to vector<1x128xf32>
    %421 = math.tanh %420 : vector<1x128xf32>
    %cst_135 = arith.constant 5.000000e-01 : f32
    %422 = vector.broadcast %cst_135 : f32 to vector<1x128xf32>
    %423 = arith.mulf %422, %421 : vector<1x128xf32>
    %cst_136 = arith.constant 5.000000e-01 : f32
    %424 = vector.broadcast %cst_136 : f32 to vector<1x128xf32>
    %425 = arith.addf %423, %424 : vector<1x128xf32>
    %426 = vector.extract_strided_slice %413 {offsets = [0, 256], sizes = [1, 128], strides = [1, 1]} : vector<1x512xf32> to vector<1x128xf32>
    %427 = math.tanh %426 : vector<1x128xf32>
    %428 = vector.extract_strided_slice %413 {offsets = [0, 384], sizes = [1, 128], strides = [1, 1]} : vector<1x512xf32> to vector<1x128xf32>
    %429 = math.tanh %428 : vector<1x128xf32>
    %cst_137 = arith.constant 5.000000e-01 : f32
    %430 = vector.broadcast %cst_137 : f32 to vector<1x128xf32>
    %431 = arith.mulf %430, %429 : vector<1x128xf32>
    %cst_138 = arith.constant 5.000000e-01 : f32
    %432 = vector.broadcast %cst_138 : f32 to vector<1x128xf32>
    %433 = arith.addf %431, %432 : vector<1x128xf32>
    %434 = arith.mulf %425, %379 : vector<1x128xf32>
    %435 = arith.mulf %419, %427 : vector<1x128xf32>
    %436 = arith.addf %434, %435 : vector<1x128xf32>
    %437 = math.tanh %436 : vector<1x128xf32>
    %438 = arith.mulf %433, %437 : vector<1x128xf32>
    %c6_139 = arith.constant 6 : index
    %c0_140 = arith.constant 0 : index
    %439 = vector.load %arg10[%c6_139, %c0_140] : memref<8x128xf32, #tpu.memory_space<vmem>>, vector<1x128xf32>
    tpu.vector_store %arg10[%c6_139, %c0_140], %438 {strides = array<i32>} : memref<8x128xf32, #tpu.memory_space<vmem>>, vector<1x128xf32>,
    %440 = tpu.concatenate %410, %438 in 1 : vector<1x128xf32>, vector<1x128xf32> -> vector<1x256xf32>
    %cst_141 = arith.constant dense<0.000000e+00> : vector<1x512xf32>
    %441 = tpu.matmul %440, %10, %cst_141 {dimension_numbers = #tpu.dot_dimension_numbers<[1], [0], [0], [1], [0, 0, 1, 1], [], []>} : vector<1x256xf32>, vector<256x512xf32>, vector<1x512xf32> -> vector<1x512xf32>
    %442 = arith.addf %441, %11 : vector<1x512xf32>
    %443 = vector.extract_strided_slice %442 {offsets = [0, 0], sizes = [1, 128], strides = [1, 1]} : vector<1x512xf32> to vector<1x128xf32>
    %444 = math.tanh %443 : vector<1x128xf32>
    %cst_142 = arith.constant 5.000000e-01 : f32
    %445 = vector.broadcast %cst_142 : f32 to vector<1x128xf32>
    %446 = arith.mulf %445, %444 : vector<1x128xf32>
    %cst_143 = arith.constant 5.000000e-01 : f32
    %447 = vector.broadcast %cst_143 : f32 to vector<1x128xf32>
    %448 = arith.addf %446, %447 : vector<1x128xf32>
    %449 = vector.extract_strided_slice %442 {offsets = [0, 128], sizes = [1, 128], strides = [1, 1]} : vector<1x512xf32> to vector<1x128xf32>
    %450 = math.tanh %449 : vector<1x128xf32>
    %cst_144 = arith.constant 5.000000e-01 : f32
    %451 = vector.broadcast %cst_144 : f32 to vector<1x128xf32>
    %452 = arith.mulf %451, %450 : vector<1x128xf32>
    %cst_145 = arith.constant 5.000000e-01 : f32
    %453 = vector.broadcast %cst_145 : f32 to vector<1x128xf32>
    %454 = arith.addf %452, %453 : vector<1x128xf32>
    %455 = vector.extract_strided_slice %442 {offsets = [0, 256], sizes = [1, 128], strides = [1, 1]} : vector<1x512xf32> to vector<1x128xf32>
    %456 = math.tanh %455 : vector<1x128xf32>
    %457 = vector.extract_strided_slice %442 {offsets = [0, 384], sizes = [1, 128], strides = [1, 1]} : vector<1x512xf32> to vector<1x128xf32>
    %458 = math.tanh %457 : vector<1x128xf32>
    %cst_146 = arith.constant 5.000000e-01 : f32
    %459 = vector.broadcast %cst_146 : f32 to vector<1x128xf32>
    %460 = arith.mulf %459, %458 : vector<1x128xf32>
    %cst_147 = arith.constant 5.000000e-01 : f32
    %461 = vector.broadcast %cst_147 : f32 to vector<1x128xf32>
    %462 = arith.addf %460, %461 : vector<1x128xf32>
    %463 = arith.mulf %454, %436 : vector<1x128xf32>
    %464 = arith.mulf %448, %456 : vector<1x128xf32>
    %465 = arith.addf %463, %464 : vector<1x128xf32>
    %466 = math.tanh %465 : vector<1x128xf32>
    %467 = arith.mulf %462, %466 : vector<1x128xf32>
    %c7_148 = arith.constant 7 : index
    %c0_149 = arith.constant 0 : index
    %468 = vector.load %arg10[%c7_148, %c0_149] : memref<8x128xf32, #tpu.memory_space<vmem>>, vector<1x128xf32>
    tpu.vector_store %arg10[%c7_148, %c0_149], %467 {strides = array<i32>} : memref<8x128xf32, #tpu.memory_space<vmem>>, vector<1x128xf32>,
    %c0_150 = arith.constant 0 : index
    %c0_151 = arith.constant 0 : index
    %469 = vector.load %arg10[%c0_150, %c0_151] : memref<8x128xf32, #tpu.memory_space<vmem>>, vector<8x128xf32>
    %c0_152 = arith.constant 0 : index
    %c0_153 = arith.constant 0 : index
    %470 = vector.load %arg6[%c0_152, %c0_153] : memref<128x128xf32, #tpu.memory_space<vmem>>, vector<128x128xf32>
    %cst_154 = arith.constant dense<0.000000e+00> : vector<8x128xf32>
    %471 = tpu.matmul %469, %470, %cst_154 {dimension_numbers = #tpu.dot_dimension_numbers<[1], [0], [0], [1], [0, 0, 1, 1], [], []>} : vector<8x128xf32>, vector<128x128xf32>, vector<8x128xf32> -> vector<8x128xf32>
    %c0_155 = arith.constant 0 : index
    %c0_156 = arith.constant 0 : index
    %472 = vector.load %arg7[%c0_155, %c0_156] : memref<1x128xf32, #tpu.memory_space<vmem>>, vector<1x128xf32>
    %473 = vector.broadcast %472 : vector<1x128xf32> to vector<8x128xf32>
    %474 = arith.addf %471, %473 : vector<8x128xf32>
    %c0_157 = arith.constant 0 : index
    %c0_158 = arith.constant 0 : index
    %475 = vector.load %arg8[%c0_157, %c0_158] : memref<8x128xf32, #tpu.memory_space<vmem>>, vector<8x128xf32>
    tpu.vector_store %arg8[%c0_157, %c0_158], %474 {strides = array<i32>} : memref<8x128xf32, #tpu.memory_space<vmem>>, vector<8x128xf32>,
    return
  }
}

</mosaic_0001>

<llo_original>
// kernel: _lstm_forward_impl.1
$region0: #{_lstm_forward_impl.1}
  #allocation0 [shape = 'u32[]', space=smem, size = 0x4, offset = 0x4, fixed_abs, tag = 'smem constant byte address 0x4 - core index']
  #allocation1 [shape = 'u32[72,128]{1,0:T(1,128)}', space=vmem, size = 0x9000, scoped, tag = 'internal scratch']
  #allocation2 [shape = 'f32[8,512]{1,0:T(8,128)}', space=vmem, size = 0x4000, scoped, tag = 'scratch operand']
  #allocation3 [shape = 'f32[8,128]{1,0:T(8,128)}', space=vmem, size = 0x1000, scoped, tag = 'scratch operand']
  %s0 = inlined_call_operand.vmem [shape: f32[8,1], index: 0, kind: input, shape index: {}]
  %s1 = inlined_call_operand.vmem [shape: f32[1,512], index: 1, kind: input, shape index: {}]
  %s2 = inlined_call_operand.hbm [shape: f32[128,512], index: 2, kind: input, shape index: {}]
  %s3 = inlined_call_operand.vmem [shape: f32[1,512], index: 3, kind: input, shape index: {}]
  %s4 = inlined_call_operand.hbm [shape: f32[256,512], index: 4, kind: input, shape index: {}]
  %s5 = inlined_call_operand.hbm [shape: f32[1,512], index: 5, kind: input, shape index: {}]
  %s6 = inlined_call_operand.hbm [shape: f32[128,128], index: 6, kind: input, shape index: {}]
  %s7 = inlined_call_operand.vmem [shape: f32[1,128], index: 7, kind: input, shape index: {}]
  %s8 = inlined_call_operand.vmem [shape: f32[8,128], index: 8, kind: output, shape index: {}]
  %s9 = sld [smem:[#allocation0]]
  $region58: #{_lstm_forward_impl.1} parent=0
    _
  %s11 = ssub.s32 1, %s9
  %s12 = scalar_select 0, %s11, %s9
  $region1: #{_lstm_forward_impl.1} parent=0
    #allocation4 [shape = 'u8[262144]{0}', space=vmem, size = 0x40000, scoped, tag = 'input window, operand 2, single buffered']
    #allocation5 [shape = 's32[1]{0}', space=sflag, size = 0x4, scoped, tag = 'scoped memory for _lstm_forward_impl.1']
    #allocation6 [shape = 'u8[524288]{0}', space=vmem, size = 0x80000, scoped, tag = 'input window, operand 4, single buffered']
    #allocation7 [shape = 's32[1]{0}', space=sflag, size = 0x4, scoped, tag = 'scoped memory for _lstm_forward_impl.1']
    #allocation8 [shape = 'u8[2048]{0}', space=vmem, size = 0x800, scoped, tag = 'input window, operand 5, single buffered']
    #allocation9 [shape = 'u8[65536]{0}', space=vmem, size = 0x10000, scoped, tag = 'input window, operand 6, single buffered']
    #allocation10 [shape = 's32[1]{0}', space=sflag, size = 0x4, scoped, tag = 'scoped memory for _lstm_forward_impl.1']
    %13 = vsyncpa [#allocation5], 0
    %14 = vsyncpa [#allocation7], 0
    %15 = vsyncpa [#allocation10], 0
    // Predicated region
    $region2: #{_lstm_forward_impl.1} parent=1 // pred_check
      _
    $region3: #{_lstm_forward_impl.1} parent=1 // pred_check_branch
      %17 = sbr.rel (0) target = $region5
    $region4: #{_lstm_forward_impl.1} parent=1 // pred_region
      _
    $region5: #{_lstm_forward_impl.1} parent=1 // pred_fallthru
      _
    // Predicated region
    $region6: #{_lstm_forward_impl.1} parent=1 // pred_check
      _
    $region7: #{_lstm_forward_impl.1} parent=1 // pred_check_branch
      %19 = sbr.rel (0) target = $region9
    $region8: #{_lstm_forward_impl.1} parent=1 // pred_region
      _
    $region9: #{_lstm_forward_impl.1} parent=1 // pred_fallthru
      _
    // Predicated region
    $region10: #{_lstm_forward_impl.1} parent=1 // pred_check
      _
    $region11: #{_lstm_forward_impl.1} parent=1 // pred_check_branch
      %21 = sbr.rel (0) target = $region13
    $region12: #{_lstm_forward_impl.1} parent=1 // pred_region
      %23 = vsyncadd [#allocation5], 0
      %s24 = sshll.u32 %s2, 4
      %s25 = int_to_ptr.hbm [resolvable:$true] %s24
      %s26 = sshll.u32 [#allocation4], 4
      %s27 = int_to_ptr.vmem [resolvable:$true] %s26
      %32 = dma.hbm_to_vmem [thread:$0]  %s25, 8192, %s27, [#allocation5], 512, 512, 32
    $region13: #{_lstm_forward_impl.1} parent=1 // pred_fallthru
      _
    // Predicated region
    $region14: #{_lstm_forward_impl.1} parent=1 // pred_check
      _
    $region15: #{_lstm_forward_impl.1} parent=1 // pred_check_branch
      %34 = sbr.rel (0) target = $region17
    $region16: #{_lstm_forward_impl.1} parent=1 // pred_region
      _
    $region17: #{_lstm_forward_impl.1} parent=1 // pred_fallthru
      _
    // Predicated region
    $region18: #{_lstm_forward_impl.1} parent=1 // pred_check
      _
    $region19: #{_lstm_forward_impl.1} parent=1 // pred_check_branch
      %36 = sbr.rel (0) target = $region21
    $region20: #{_lstm_forward_impl.1} parent=1 // pred_region
      %38 = vsyncadd [#allocation7], 0
      %s39 = sshll.u32 %s4, 4
      %s40 = int_to_ptr.hbm [resolvable:$true] %s39
      %s41 = sshll.u32 [#allocation6], 4
      %s42 = int_to_ptr.vmem [resolvable:$true] %s41
      %47 = dma.hbm_to_vmem [thread:$0]  %s40, 16384, %s42, [#allocation7], 512, 512, 32
    $region21: #{_lstm_forward_impl.1} parent=1 // pred_fallthru
      _
    // Predicated region
    $region22: #{_lstm_forward_impl.1} parent=1 // pred_check
      _
    $region23: #{_lstm_forward_impl.1} parent=1 // pred_check_branch
      %49 = sbr.rel (0) target = $region25
    $region24: #{_lstm_forward_impl.1} parent=1 // pred_region
      %51 = vsyncadd [#allocation7], 0
      %s53 = sshll.u32 %s5, 4
      %s54 = int_to_ptr.hbm [resolvable:$true] %s53
      %s55 = sshll.u32 [#allocation8], 4
      %s56 = int_to_ptr.vmem [resolvable:$true] %s55
      %58 = dma.hbm_to_vmem [thread:$0]  %s54, 64, %s56, [#allocation7]
    $region25: #{_lstm_forward_impl.1} parent=1 // pred_fallthru
      _
    // Predicated region
    $region26: #{_lstm_forward_impl.1} parent=1 // pred_check
      _
    $region27: #{_lstm_forward_impl.1} parent=1 // pred_check_branch
      %60 = sbr.rel (0) target = $region29
    $region28: #{_lstm_forward_impl.1} parent=1 // pred_region
      %62 = vsyncadd [#allocation10], 0
      %s63 = sshll.u32 %s6, 4
      %s64 = int_to_ptr.hbm [resolvable:$true] %s63
      %s65 = sshll.u32 [#allocation9], 4
      %s66 = int_to_ptr.vmem [resolvable:$true] %s65
      %71 = dma.hbm_to_vmem [thread:$0]  %s64, 2048, %s66, [#allocation10], 128, 128, 8
    $region29: #{_lstm_forward_impl.1} parent=1 // pred_fallthru
      _
    // Predicated region
    $region30: #{_lstm_forward_impl.1} parent=1 // pred_check
      _
    $region31: #{_lstm_forward_impl.1} parent=1 // pred_check_branch
      %73 = sbr.rel (0) target = $region33
    $region32: #{_lstm_forward_impl.1} parent=1 // pred_region
      _
    $region33: #{_lstm_forward_impl.1} parent=1 // pred_fallthru
      _
    // Predicated region
    $region34: #{_lstm_forward_impl.1} parent=1 // pred_check
      _
    $region35: #{_lstm_forward_impl.1} parent=1 // pred_check_branch
      %75 = sbr.rel (0) target = $region37
    $region36: #{_lstm_forward_impl.1} parent=1 // pred_region
      %77 = dma.done [#allocation5], 8192
    $region37: #{_lstm_forward_impl.1} parent=1 // pred_fallthru
      _
    // Predicated region
    $region38: #{_lstm_forward_impl.1} parent=1 // pred_check
      _
    $region39: #{_lstm_forward_impl.1} parent=1 // pred_check_branch
      %79 = sbr.rel (0) target = $region41
    $region40: #{_lstm_forward_impl.1} parent=1 // pred_region
      %81 = dma.done [#allocation7], 16384
    $region41: #{_lstm_forward_impl.1} parent=1 // pred_fallthru
      _
    // Predicated region
    $region42: #{_lstm_forward_impl.1} parent=1 // pred_check
      _
    $region43: #{_lstm_forward_impl.1} parent=1 // pred_check_branch
      %83 = sbr.rel (0) target = $region45
    $region44: #{_lstm_forward_impl.1} parent=1 // pred_region
      %85 = dma.done [#allocation7], 64
    $region45: #{_lstm_forward_impl.1} parent=1 // pred_fallthru
      _
    // Predicated region
    $region46: #{_lstm_forward_impl.1} parent=1 // pred_check
      _
    $region47: #{_lstm_forward_impl.1} parent=1 // pred_check_branch
      %87 = sbr.rel (0) target = $region49
    $region48: #{_lstm_forward_impl.1} parent=1 // pred_region
      %89 = dma.done [#allocation10], 2048
    $region49: #{_lstm_forward_impl.1} parent=1 // pred_fallthru
      _
    %v90 = vld [vmem:[%s0] sm:$0xff]
    %v91 = vld [vmem:[%s1] sm:$0xf]
    %93 = vset.pattern.permute.xlu0 0
    %94 = vperm.xlu0 %93, %v90
    %v95 = vpop.permute.xlu0 %94
    %v98 = vperm.slane %v91, 0
    %v99 = vperm.slane %v91, 1
    %v100 = vperm.slane %v91, 2
    %v101 = vperm.slane %v91, 3
    %v106 = vmul.f32 %v95, %v98
    %v107 = vmul.f32 %v95, %v99
    %v108 = vmul.f32 %v95, %v100
    %v109 = vmul.f32 %v95, %v101
    %v110 = vld [vmem:[%s3] sm:$0xf]
    %v112 = vperm.slane %v110, 0
    %v113 = vperm.slane %v110, 1
    %v114 = vperm.slane %v110, 2
    %v115 = vperm.slane %v110, 3
    %v120 = vadd.f32 %v106, %v112
    %v121 = vadd.f32 %v107, %v113
    %v122 = vadd.f32 %v108, %v114
    %v123 = vadd.f32 %v109, %v115
    %124 = vst [vmem:[#allocation2] sm:$0xff] %v120
    %125 = vst [vmem:[#allocation2 + $0x8] sm:$0xff] %v121
    %126 = vst [vmem:[#allocation2 + $0x10] sm:$0xff] %v122
    %127 = vst [vmem:[#allocation2 + $0x18] sm:$0xff] %v123
    %v128 = vld [vmem:[#allocation4] sm:$0xff]
    %v129 = vld [vmem:[#allocation4 + $0x8] sm:$0xff]
    %v130 = vld [vmem:[#allocation4 + $0x10] sm:$0xff]
    %v131 = vld [vmem:[#allocation4 + $0x18] sm:$0xff]
    %v132 = vld [vmem:[#allocation4 + $0x20] sm:$0xff]
    %v133 = vld [vmem:[#allocation4 + $0x28] sm:$0xff]
    %v134 = vld [vmem:[#allocation4 + $0x30] sm:$0xff]
    %v135 = vld [vmem:[#allocation4 + $0x38] sm:$0xff]
    %v136 = vld [vmem:[#allocation4 + $0x40] sm:$0xff]
    %v137 = vld [vmem:[#allocation4 + $0x48] sm:$0xff]
    %v138 = vld [vmem:[#allocation4 + $0x50] sm:$0xff]
    %v139 = vld [vmem:[#allocation4 + $0x58] sm:$0xff]
    %v140 = vld [vmem:[#allocation4 + $0x60] sm:$0xff]
    %v141 = vld [vmem:[#allocation4 + $0x68] sm:$0xff]
    %v142 = vld [vmem:[#allocation4 + $0x70] sm:$0xff]
    %v143 = vld [vmem:[#allocation4 + $0x78] sm:$0xff]
    %v144 = vld [vmem:[#allocation4 + $0x80] sm:$0xff]
    %v145 = vld [vmem:[#allocation4 + $0x88] sm:$0xff]
    %v146 = vld [vmem:[#allocation4 + $0x90] sm:$0xff]
    %v147 = vld [vmem:[#allocation4 + $0x98] sm:$0xff]
    %v148 = vld [vmem:[#allocation4 + $0xa0] sm:$0xff]
    %v149 = vld [vmem:[#allocation4 + $0xa8] sm:$0xff]
    %v150 = vld [vmem:[#allocation4 + $0xb0] sm:$0xff]
    %v151 = vld [vmem:[#allocation4 + $0xb8] sm:$0xff]
    %v152 = vld [vmem:[#allocation4 + $0xc0] sm:$0xff]
    %v153 = vld [vmem:[#allocation4 + $0xc8] sm:$0xff]
    %v154 = vld [vmem:[#allocation4 + $0xd0] sm:$0xff]
    %v155 = vld [vmem:[#allocation4 + $0xd8] sm:$0xff]
    %v156 = vld [vmem:[#allocation4 + $0xe0] sm:$0xff]
    %v157 = vld [vmem:[#allocation4 + $0xe8] sm:$0xff]
    %v158 = vld [vmem:[#allocation4 + $0xf0] sm:$0xff]
    %v159 = vld [vmem:[#allocation4 + $0xf8] sm:$0xff]
    %v160 = vld [vmem:[#allocation4 + $0x100] sm:$0xff]
    %v161 = vld [vmem:[#allocation4 + $0x108] sm:$0xff]
    %v162 = vld [vmem:[#allocation4 + $0x110] sm:$0xff]
    %v163 = vld [vmem:[#allocation4 + $0x118] sm:$0xff]
    %v164 = vld [vmem:[#allocation4 + $0x120] sm:$0xff]
    %v165 = vld [vmem:[#allocation4 + $0x128] sm:$0xff]
    %v166 = vld [vmem:[#allocation4 + $0x130] sm:$0xff]
    %v167 = vld [vmem:[#allocation4 + $0x138] sm:$0xff]
    %v168 = vld [vmem:[#allocation4 + $0x140] sm:$0xff]
    %v169 = vld [vmem:[#allocation4 + $0x148] sm:$0xff]
    %v170 = vld [vmem:[#allocation4 + $0x150] sm:$0xff]
    %v171 = vld [vmem:[#allocation4 + $0x158] sm:$0xff]
    %v172 = vld [vmem:[#allocation4 + $0x160] sm:$0xff]
    %v173 = vld [vmem:[#allocation4 + $0x168] sm:$0xff]
    %v174 = vld [vmem:[#allocation4 + $0x170] sm:$0xff]
    %v175 = vld [vmem:[#allocation4 + $0x178] sm:$0xff]
    %v176 = vld [vmem:[#allocation4 + $0x180] sm:$0xff]
    %v177 = vld [vmem:[#allocation4 + $0x188] sm:$0xff]
    %v178 = vld [vmem:[#allocation4 + $0x190] sm:$0xff]
    %v179 = vld [vmem:[#allocation4 + $0x198] sm:$0xff]
    %v180 = vld [vmem:[#allocation4 + $0x1a0] sm:$0xff]
    %v181 = vld [vmem:[#allocation4 + $0x1a8] sm:$0xff]
    %v182 = vld [vmem:[#allocation4 + $0x1b0] sm:$0xff]
    %v183 = vld [vmem:[#allocation4 + $0x1b8] sm:$0xff]
    %v184 = vld [vmem:[#allocation4 + $0x1c0] sm:$0xff]
    %v185 = vld [vmem:[#allocation4 + $0x1c8] sm:$0xff]
    %v186 = vld [vmem:[#allocation4 + $0x1d0] sm:$0xff]
    %v187 = vld [vmem:[#allocation4 + $0x1d8] sm:$0xff]
    %v188 = vld [vmem:[#allocation4 + $0x1e0] sm:$0xff]
    %v189 = vld [vmem:[#allocation4 + $0x1e8] sm:$0xff]
    %v190 = vld [vmem:[#allocation4 + $0x1f0] sm:$0xff]
    %v191 = vld [vmem:[#allocation4 + $0x1f8] sm:$0xff]
    %v192 = vld [vmem:[#allocation6] sm:$0xff]
    %v193 = vld [vmem:[#allocation6 + $0x8] sm:$0xff]
    %v194 = vld [vmem:[#allocation6 + $0x10] sm:$0xff]
    %v195 = vld [vmem:[#allocation6 + $0x18] sm:$0xff]
    %v196 = vld [vmem:[#allocation6 + $0x20] sm:$0xff]
    %v197 = vld [vmem:[#allocation6 + $0x28] sm:$0xff]
    %v198 = vld [vmem:[#allocation6 + $0x30] sm:$0xff]
    %v199 = vld [vmem:[#allocation6 + $0x38] sm:$0xff]
    %v200 = vld [vmem:[#allocation6 + $0x40] sm:$0xff]
    %v201 = vld [vmem:[#allocation6 + $0x48] sm:$0xff]
    %v202 = vld [vmem:[#allocation6 + $0x50] sm:$0xff]
    %v203 = vld [vmem:[#allocation6 + $0x58] sm:$0xff]
    %v204 = vld [vmem:[#allocation6 + $0x60] sm:$0xff]
    %v205 = vld [vmem:[#allocation6 + $0x68] sm:$0xff]
    %v206 = vld [vmem:[#allocation6 + $0x70] sm:$0xff]
    %v207 = vld [vmem:[#allocation6 + $0x78] sm:$0xff]
    %v208 = vld [vmem:[#allocation6 + $0x80] sm:$0xff]
    %v209 = vld [vmem:[#allocation6 + $0x88] sm:$0xff]
    %v210 = vld [vmem:[#allocation6 + $0x90] sm:$0xff]
    %v211 = vld [vmem:[#allocation6 + $0x98] sm:$0xff]
    %v212 = vld [vmem:[#allocation6 + $0xa0] sm:$0xff]
    %v213 = vld [vmem:[#allocation6 + $0xa8] sm:$0xff]
    %v214 = vld [vmem:[#allocation6 + $0xb0] sm:$0xff]
    %v215 = vld [vmem:[#allocation6 + $0xb8] sm:$0xff]
    %v216 = vld [vmem:[#allocation6 + $0xc0] sm:$0xff]
    %v217 = vld [vmem:[#allocation6 + $0xc8] sm:$0xff]
    %v218 = vld [vmem:[#allocation6 + $0xd0] sm:$0xff]
    %v219 = vld [vmem:[#allocation6 + $0xd8] sm:$0xff]
    %v220 = vld [vmem:[#allocation6 + $0xe0] sm:$0xff]
    %v221 = vld [vmem:[#allocation6 + $0xe8] sm:$0xff]
    %v222 = vld [vmem:[#allocation6 + $0xf0] sm:$0xff]
    %v223 = vld [vmem:[#allocation6 + $0xf8] sm:$0xff]
    %v224 = vld [vmem:[#allocation6 + $0x100] sm:$0xff]
    %v225 = vld [vmem:[#allocation6 + $0x108] sm:$0xff]
    %v226 = vld [vmem:[#allocation6 + $0x110] sm:$0xff]
    %v227 = vld [vmem:[#allocation6 + $0x118] sm:$0xff]
    %v228 = vld [vmem:[#allocation6 + $0x120] sm:$0xff]
    %v229 = vld [vmem:[#allocation6 + $0x128] sm:$0xff]
    %v230 = vld [vmem:[#allocation6 + $0x130] sm:$0xff]
    %v231 = vld [vmem:[#allocation6 + $0x138] sm:$0xff]
    %v232 = vld [vmem:[#allocation6 + $0x140] sm:$0xff]
    %v233 = vld [vmem:[#allocation6 + $0x148] sm:$0xff]
    %v234 = vld [vmem:[#allocation6 + $0x150] sm:$0xff]
    %v235 = vld [vmem:[#allocation6 + $0x158] sm:$0xff]
    %v236 = vld [vmem:[#allocation6 + $0x160] sm:$0xff]
    %v237 = vld [vmem:[#allocation6 + $0x168] sm:$0xff]
    %v238 = vld [vmem:[#allocation6 + $0x170] sm:$0xff]
    %v239 = vld [vmem:[#allocation6 + $0x178] sm:$0xff]
    %v240 = vld [vmem:[#allocation6 + $0x180] sm:$0xff]
    %v241 = vld [vmem:[#allocation6 + $0x188] sm:$0xff]
    %v242 = vld [vmem:[#allocation6 + $0x190] sm:$0xff]
    %v243 = vld [vmem:[#allocation6 + $0x198] sm:$0xff]
    %v244 = vld [vmem:[#allocation6 + $0x1a0] sm:$0xff]
    %v245 = vld [vmem:[#allocation6 + $0x1a8] sm:$0xff]
    %v246 = vld [vmem:[#allocation6 + $0x1b0] sm:$0xff]
    %v247 = vld [vmem:[#allocation6 + $0x1b8] sm:$0xff]
    %v248 = vld [vmem:[#allocation6 + $0x1c0] sm:$0xff]
    %v249 = vld [vmem:[#allocation6 + $0x1c8] sm:$0xff]
    %v250 = vld [vmem:[#allocation6 + $0x1d0] sm:$0xff]
    %v251 = vld [vmem:[#allocation6 + $0x1d8] sm:$0xff]
    %v252 = vld [vmem:[#allocation6 + $0x1e0] sm:$0xff]
    %v253 = vld [vmem:[#allocation6 + $0x1e8] sm:$0xff]
    %v254 = vld [vmem:[#allocation6 + $0x1f0] sm:$0xff]
    %v255 = vld [vmem:[#allocation6 + $0x1f8] sm:$0xff]
    %v256 = vld [vmem:[#allocation6 + $0x200] sm:$0xff]
    %v257 = vld [vmem:[#allocation6 + $0x208] sm:$0xff]
    %v258 = vld [vmem:[#allocation6 + $0x210] sm:$0xff]
    %v259 = vld [vmem:[#allocation6 + $0x218] sm:$0xff]
    %v260 = vld [vmem:[#allocation6 + $0x220] sm:$0xff]
    %v261 = vld [vmem:[#allocation6 + $0x228] sm:$0xff]
    %v262 = vld [vmem:[#allocation6 + $0x230] sm:$0xff]
    %v263 = vld [vmem:[#allocation6 + $0x238] sm:$0xff]
    %v264 = vld [vmem:[#allocation6 + $0x240] sm:$0xff]
    %v265 = vld [vmem:[#allocation6 + $0x248] sm:$0xff]
    %v266 = vld [vmem:[#allocation6 + $0x250] sm:$0xff]
    %v267 = vld [vmem:[#allocation6 + $0x258] sm:$0xff]
    %v268 = vld [vmem:[#allocation6 + $0x260] sm:$0xff]
    %v269 = vld [vmem:[#allocation6 + $0x268] sm:$0xff]
    %v270 = vld [vmem:[#allocation6 + $0x270] sm:$0xff]
    %v271 = vld [vmem:[#allocation6 + $0x278] sm:$0xff]
    %v272 = vld [vmem:[#allocation6 + $0x280] sm:$0xff]
    %v273 = vld [vmem:[#allocation6 + $0x288] sm:$0xff]
    %v274 = vld [vmem:[#allocation6 + $0x290] sm:$0xff]
    %v275 = vld [vmem:[#allocation6 + $0x298] sm:$0xff]
    %v276 = vld [vmem:[#allocation6 + $0x2a0] sm:$0xff]
    %v277 = vld [vmem:[#allocation6 + $0x2a8] sm:$0xff]
    %v278 = vld [vmem:[#allocation6 + $0x2b0] sm:$0xff]
    %v279 = vld [vmem:[#allocation6 + $0x2b8] sm:$0xff]
    %v280 = vld [vmem:[#allocation6 + $0x2c0] sm:$0xff]
    %v281 = vld [vmem:[#allocation6 + $0x2c8] sm:$0xff]
    %v282 = vld [vmem:[#allocation6 + $0x2d0] sm:$0xff]
    %v283 = vld [vmem:[#allocation6 + $0x2d8] sm:$0xff]
    %v284 = vld [vmem:[#allocation6 + $0x2e0] sm:$0xff]
    %v285 = vld [vmem:[#allocation6 + $0x2e8] sm:$0xff]
    %v286 = vld [vmem:[#allocation6 + $0x2f0] sm:$0xff]
    %v287 = vld [vmem:[#allocation6 + $0x2f8] sm:$0xff]
    %v288 = vld [vmem:[#allocation6 + $0x300] sm:$0xff]
    %v289 = vld [vmem:[#allocation6 + $0x308] sm:$0xff]
    %v290 = vld [vmem:[#allocation6 + $0x310] sm:$0xff]
    %v291 = vld [vmem:[#allocation6 + $0x318] sm:$0xff]
    %v292 = vld [vmem:[#allocation6 + $0x320] sm:$0xff]
    %v293 = vld [vmem:[#allocation6 + $0x328] sm:$0xff]
    %v294 = vld [vmem:[#allocation6 + $0x330] sm:$0xff]
    %v295 = vld [vmem:[#allocation6 + $0x338] sm:$0xff]
    %v296 = vld [vmem:[#allocation6 + $0x340] sm:$0xff]
    %v297 = vld [vmem:[#allocation6 + $0x348] sm:$0xff]
    %v298 = vld [vmem:[#allocation6 + $0x350] sm:$0xff]
    %v299 = vld [vmem:[#allocation6 + $0x358] sm:$0xff]
    %v300 = vld [vmem:[#allocation6 + $0x360] sm:$0xff]
    %v301 = vld [vmem:[#allocation6 + $0x368] sm:$0xff]
    %v302 = vld [vmem:[#allocation6 + $0x370] sm:$0xff]
    %v303 = vld [vmem:[#allocation6 + $0x378] sm:$0xff]
    %v304 = vld [vmem:[#allocation6 + $0x380] sm:$0xff]
    %v305 = vld [vmem:[#allocation6 + $0x388] sm:$0xff]
    %v306 = vld [vmem:[#allocation6 + $0x390] sm:$0xff]
    %v307 = vld [vmem:[#allocation6 + $0x398] sm:$0xff]
    %v308 = vld [vmem:[#allocation6 + $0x3a0] sm:$0xff]
    %v309 = vld [vmem:[#allocation6 + $0x3a8] sm:$0xff]
    %v310 = vld [vmem:[#allocation6 + $0x3b0] sm:$0xff]
    %v311 = vld [vmem:[#allocation6 + $0x3b8] sm:$0xff]
    %v312 = vld [vmem:[#allocation6 + $0x3c0] sm:$0xff]
    %v313 = vld [vmem:[#allocation6 + $0x3c8] sm:$0xff]
    %v314 = vld [vmem:[#allocation6 + $0x3d0] sm:$0xff]
    %v315 = vld [vmem:[#allocation6 + $0x3d8] sm:$0xff]
    %v316 = vld [vmem:[#allocation6 + $0x3e0] sm:$0xff]
    %v317 = vld [vmem:[#allocation6 + $0x3e8] sm:$0xff]
    %v318 = vld [vmem:[#allocation6 + $0x3f0] sm:$0xff]
    %v319 = vld [vmem:[#allocation6 + $0x3f8] sm:$0xff]
    %v320 = vld [vmem:[#allocation8] sm:$0xf]
    %v321 = vld [vmem:[#allocation2] ss:$8 sm:$0xf]
    %v323 = vperm.slane %v321, 0
    %v324 = vperm.slane %v321, 1
    %v325 = vperm.slane %v321, 2
    %v326 = vperm.slane %v321, 3
    %331 = vmatpush.msra.mxu0 %v188
    %332 = vmatpush.msra.mxu0 %v184
    %333 = vmatpush.msra.mxu0 %v180
    %334 = vmatpush.msra.mxu0 %v176
    %335 = vmatpush.msra.mxu0 %v172
    %336 = vmatpush.msra.mxu0 %v168
    %337 = vmatpush.msra.mxu0 %v164
    %338 = vmatpush.msra.mxu0 %v160
    %339 = vmatpush.msra.mxu0 %v156
    %340 = vmatpush.msra.mxu0 %v152
    %341 = vmatpush.msra.mxu0 %v148
    %342 = vmatpush.msra.mxu0 %v144
    %343 = vmatpush.msra.mxu0 %v140
    %344 = vmatpush.msra.mxu0 %v136
    %345 = vmatpush.msra.mxu0 %v132
    %346 = vmatpush.msra.mxu0 %v128
    %347 = vmatmul.f32.gmra.mxu0 0.0
    %v348 = vpop.f32.mrf.mxu0
    %v349 = vadd.f32 %v323, %v348
    %350 = vdwg.mxu0
    %351 = vmatpush.msra.mxu0 %v189
    %352 = vmatpush.msra.mxu0 %v185
    %353 = vmatpush.msra.mxu0 %v181
    %354 = vmatpush.msra.mxu0 %v177
    %355 = vmatpush.msra.mxu0 %v173
    %356 = vmatpush.msra.mxu0 %v169
    %357 = vmatpush.msra.mxu0 %v165
    %358 = vmatpush.msra.mxu0 %v161
    %359 = vmatpush.msra.mxu0 %v157
    %360 = vmatpush.msra.mxu0 %v153
    %361 = vmatpush.msra.mxu0 %v149
    %362 = vmatpush.msra.mxu0 %v145
    %363 = vmatpush.msra.mxu0 %v141
    %364 = vmatpush.msra.mxu0 %v137
    %365 = vmatpush.msra.mxu0 %v133
    %366 = vmatpush.msra.mxu0 %v129
    %367 = vmatmul.f32.gmra.mxu0 0.0
    %v368 = vpop.f32.mrf.mxu0
    %v369 = vadd.f32 %v324, %v368
    %370 = vdwg.mxu0
    %371 = vmatpush.msra.mxu0 %v190
    %372 = vmatpush.msra.mxu0 %v186
    %373 = vmatpush.msra.mxu0 %v182
    %374 = vmatpush.msra.mxu0 %v178
    %375 = vmatpush.msra.mxu0 %v174
    %376 = vmatpush.msra.mxu0 %v170
    %377 = vmatpush.msra.mxu0 %v166
    %378 = vmatpush.msra.mxu0 %v162
    %379 = vmatpush.msra.mxu0 %v158
    %380 = vmatpush.msra.mxu0 %v154
    %381 = vmatpush.msra.mxu0 %v150
    %382 = vmatpush.msra.mxu0 %v146
    %383 = vmatpush.msra.mxu0 %v142
    %384 = vmatpush.msra.mxu0 %v138
    %385 = vmatpush.msra.mxu0 %v134
    %386 = vmatpush.msra.mxu0 %v130
    %387 = vmatmul.f32.gmra.mxu0 0.0
    %v388 = vpop.f32.mrf.mxu0
    %v389 = vadd.f32 %v325, %v388
    %390 = vdwg.mxu0
    %391 = vmatpush.msra.mxu0 %v191
    %392 = vmatpush.msra.mxu0 %v187
    %393 = vmatpush.msra.mxu0 %v183
    %394 = vmatpush.msra.mxu0 %v179
    %395 = vmatpush.msra.mxu0 %v175
    %396 = vmatpush.msra.mxu0 %v171
    %397 = vmatpush.msra.mxu0 %v167
    %398 = vmatpush.msra.mxu0 %v163
    %399 = vmatpush.msra.mxu0 %v159
    %400 = vmatpush.msra.mxu0 %v155
    %401 = vmatpush.msra.mxu0 %v151
    %402 = vmatpush.msra.mxu0 %v147
    %403 = vmatpush.msra.mxu0 %v143
    %404 = vmatpush.msra.mxu0 %v139
    %405 = vmatpush.msra.mxu0 %v135
    %406 = vmatpush.msra.mxu0 %v131
    %407 = vmatmul.f32.gmra.mxu0 0.0
    %v408 = vpop.f32.mrf.mxu0
    %v409 = vadd.f32 %v326, %v408
    %410 = vdwg.mxu0
    %v411 = vtanh.pop %v349
    %v412 = vmul.f32 %v411, 0.5
    %v413 = vadd.f32 %v412, 0.5
    %v414 = vtanh.pop %v369
    %v415 = vmul.f32 %v414, 0.5
    %v416 = vadd.f32 %v415, 0.5
    %v417 = vtanh.pop %v389
    %v418 = vtanh.pop %v409
    %v419 = vmul.f32 %v418, 0.5
    %v420 = vadd.f32 %v419, 0.5
    %v421 = vmul.f32 %v416, 0.0
    %v422 = vmul.f32 %v413, %v417
    %v423 = vadd.f32 %v421, %v422
    %v424 = vtanh.pop %v423
    %v425 = vmul.f32 %v420, %v424
    %s426 = scalar_lea.vmem [#allocation2], 1
    %v427 = vld [vmem:[%s426] ss:$8 sm:$0xf]
    %v429 = vperm.slane %v427, 0
    %v430 = vperm.slane %v427, 1
    %v431 = vperm.slane %v427, 2
    %v432 = vperm.slane %v427, 3
    %437 = vmatpush.msra.mxu0 %v188
    %438 = vmatpush.msra.mxu0 %v184
    %439 = vmatpush.msra.mxu0 %v180
    %440 = vmatpush.msra.mxu0 %v176
    %441 = vmatpush.msra.mxu0 %v172
    %442 = vmatpush.msra.mxu0 %v168
    %443 = vmatpush.msra.mxu0 %v164
    %444 = vmatpush.msra.mxu0 %v160
    %445 = vmatpush.msra.mxu0 %v156
    %446 = vmatpush.msra.mxu0 %v152
    %447 = vmatpush.msra.mxu0 %v148
    %448 = vmatpush.msra.mxu0 %v144
    %449 = vmatpush.msra.mxu0 %v140
    %450 = vmatpush.msra.mxu0 %v136
    %451 = vmatpush.msra.mxu0 %v132
    %452 = vmatpush.msra.mxu0 %v128
    %453 = vmatmul.f32.gmra.mxu0 %v425
    %v454 = vpop.f32.mrf.mxu0
    %v455 = vadd.f32 %v429, %v454
    %456 = vdwg.mxu0
    %457 = vmatpush.msra.mxu0 %v189
    %458 = vmatpush.msra.mxu0 %v185
    %459 = vmatpush.msra.mxu0 %v181
    %460 = vmatpush.msra.mxu0 %v177
    %461 = vmatpush.msra.mxu0 %v173
    %462 = vmatpush.msra.mxu0 %v169
    %463 = vmatpush.msra.mxu0 %v165
    %464 = vmatpush.msra.mxu0 %v161
    %465 = vmatpush.msra.mxu0 %v157
    %466 = vmatpush.msra.mxu0 %v153
    %467 = vmatpush.msra.mxu0 %v149
    %468 = vmatpush.msra.mxu0 %v145
    %469 = vmatpush.msra.mxu0 %v141
    %470 = vmatpush.msra.mxu0 %v137
    %471 = vmatpush.msra.mxu0 %v133
    %472 = vmatpush.msra.mxu0 %v129
    %473 = vmatmul.f32.gmra.mxu0 %v425
    %v474 = vpop.f32.mrf.mxu0
    %v475 = vadd.f32 %v430, %v474
    %476 = vdwg.mxu0
    %477 = vmatpush.msra.mxu0 %v190
    %478 = vmatpush.msra.mxu0 %v186
    %479 = vmatpush.msra.mxu0 %v182
    %480 = vmatpush.msra.mxu0 %v178
    %481 = vmatpush.msra.mxu0 %v174
    %482 = vmatpush.msra.mxu0 %v170
    %483 = vmatpush.msra.mxu0 %v166
    %484 = vmatpush.msra.mxu0 %v162
    %485 = vmatpush.msra.mxu0 %v158
    %486 = vmatpush.msra.mxu0 %v154
    %487 = vmatpush.msra.mxu0 %v150
    %488 = vmatpush.msra.mxu0 %v146
    %489 = vmatpush.msra.mxu0 %v142
    %490 = vmatpush.msra.mxu0 %v138
    %491 = vmatpush.msra.mxu0 %v134
    %492 = vmatpush.msra.mxu0 %v130
    %493 = vmatmul.f32.gmra.mxu0 %v425
    %v494 = vpop.f32.mrf.mxu0
    %v495 = vadd.f32 %v431, %v494
    %496 = vdwg.mxu0
    %497 = vmatpush.msra.mxu0 %v191
    %498 = vmatpush.msra.mxu0 %v187
    %499 = vmatpush.msra.mxu0 %v183
    %500 = vmatpush.msra.mxu0 %v179
    %501 = vmatpush.msra.mxu0 %v175
    %502 = vmatpush.msra.mxu0 %v171
    %503 = vmatpush.msra.mxu0 %v167
    %504 = vmatpush.msra.mxu0 %v163
    %505 = vmatpush.msra.mxu0 %v159
    %506 = vmatpush.msra.mxu0 %v155
    %507 = vmatpush.msra.mxu0 %v151
    %508 = vmatpush.msra.mxu0 %v147
    %509 = vmatpush.msra.mxu0 %v143
    %510 = vmatpush.msra.mxu0 %v139
    %511 = vmatpush.msra.mxu0 %v135
    %512 = vmatpush.msra.mxu0 %v131
    %513 = vmatmul.f32.gmra.mxu0 %v425
    %v514 = vpop.f32.mrf.mxu0
    %v515 = vadd.f32 %v432, %v514
    %516 = vdwg.mxu0
    %v517 = vtanh.pop %v455
    %v518 = vmul.f32 %v517, 0.5
    %v519 = vadd.f32 %v518, 0.5
    %v520 = vtanh.pop %v475
    %v521 = vmul.f32 %v520, 0.5
    %v522 = vadd.f32 %v521, 0.5
    %v523 = vtanh.pop %v495
    %v524 = vtanh.pop %v515
    %v525 = vmul.f32 %v524, 0.5
    %v526 = vadd.f32 %v525, 0.5
    %v527 = vmul.f32 %v522, %v423
    %v528 = vmul.f32 %v519, %v523
    %v529 = vadd.f32 %v527, %v528
    %v530 = vtanh.pop %v529
    %v531 = vmul.f32 %v526, %v530
    %v533 = vperm.slane %v320, 0
    %v534 = vperm.slane %v320, 1
    %v535 = vperm.slane %v320, 2
    %v536 = vperm.slane %v320, 3
    %541 = vmatpush.msra.mxu0 %v252
    %542 = vmatpush.msra.mxu0 %v248
    %543 = vmatpush.msra.mxu0 %v244
    %544 = vmatpush.msra.mxu0 %v240
    %545 = vmatpush.msra.mxu0 %v236
    %546 = vmatpush.msra.mxu0 %v232
    %547 = vmatpush.msra.mxu0 %v228
    %548 = vmatpush.msra.mxu0 %v224
    %549 = vmatpush.msra.mxu0 %v220
    %550 = vmatpush.msra.mxu0 %v216
    %551 = vmatpush.msra.mxu0 %v212
    %552 = vmatpush.msra.mxu0 %v208
    %553 = vmatpush.msra.mxu0 %v204
    %554 = vmatpush.msra.mxu0 %v200
    %555 = vmatpush.msra.mxu0 %v196
    %556 = vmatpush.msra.mxu0 %v192
    %557 = vmatmul.f32.gmra.mxu0 %v425
    %v558 = vpop.f32.mrf.mxu0
    %v559 = vadd.f32 %v533, %v558
    %560 = vdwg.mxu0
    %561 = vmatpush.msra.mxu0 %v316
    %562 = vmatpush.msra.mxu0 %v312
    %563 = vmatpush.msra.mxu0 %v308
    %564 = vmatpush.msra.mxu0 %v304
    %565 = vmatpush.msra.mxu0 %v300
    %566 = vmatpush.msra.mxu0 %v296
    %567 = vmatpush.msra.mxu0 %v292
    %568 = vmatpush.msra.mxu0 %v288
    %569 = vmatpush.msra.mxu0 %v284
    %570 = vmatpush.msra.mxu0 %v280
    %571 = vmatpush.msra.mxu0 %v276
    %572 = vmatpush.msra.mxu0 %v272
    %573 = vmatpush.msra.mxu0 %v268
    %574 = vmatpush.msra.mxu0 %v264
    %575 = vmatpush.msra.mxu0 %v260
    %576 = vmatpush.msra.mxu0 %v256
    %577 = vmatmul.f32.gmra.mxu0 0.0
    %v578 = vpop.f32.mrf.mxu0
    %v579 = vadd.f32 %v559, %v578
    %580 = vdwg.mxu0
    %581 = vmatpush.msra.mxu0 %v253
    %582 = vmatpush.msra.mxu0 %v249
    %583 = vmatpush.msra.mxu0 %v245
    %584 = vmatpush.msra.mxu0 %v241
    %585 = vmatpush.msra.mxu0 %v237
    %586 = vmatpush.msra.mxu0 %v233
    %587 = vmatpush.msra.mxu0 %v229
    %588 = vmatpush.msra.mxu0 %v225
    %589 = vmatpush.msra.mxu0 %v221
    %590 = vmatpush.msra.mxu0 %v217
    %591 = vmatpush.msra.mxu0 %v213
    %592 = vmatpush.msra.mxu0 %v209
    %593 = vmatpush.msra.mxu0 %v205
    %594 = vmatpush.msra.mxu0 %v201
    %595 = vmatpush.msra.mxu0 %v197
    %596 = vmatpush.msra.mxu0 %v193
    %597 = vmatmul.f32.gmra.mxu0 %v425
    %v598 = vpop.f32.mrf.mxu0
    %v599 = vadd.f32 %v534, %v598
    %600 = vdwg.mxu0
    %601 = vmatpush.msra.mxu0 %v317
    %602 = vmatpush.msra.mxu0 %v313
    %603 = vmatpush.msra.mxu0 %v309
    %604 = vmatpush.msra.mxu0 %v305
    %605 = vmatpush.msra.mxu0 %v301
    %606 = vmatpush.msra.mxu0 %v297
    %607 = vmatpush.msra.mxu0 %v293
    %608 = vmatpush.msra.mxu0 %v289
    %609 = vmatpush.msra.mxu0 %v285
    %610 = vmatpush.msra.mxu0 %v281
    %611 = vmatpush.msra.mxu0 %v277
    %612 = vmatpush.msra.mxu0 %v273
    %613 = vmatpush.msra.mxu0 %v269
    %614 = vmatpush.msra.mxu0 %v265
    %615 = vmatpush.msra.mxu0 %v261
    %616 = vmatpush.msra.mxu0 %v257
    %617 = vmatmul.f32.gmra.mxu0 0.0
    %v618 = vpop.f32.mrf.mxu0
    %v619 = vadd.f32 %v599, %v618
    %620 = vdwg.mxu0
    %621 = vmatpush.msra.mxu0 %v254
    %622 = vmatpush.msra.mxu0 %v250
    %623 = vmatpush.msra.mxu0 %v246
    %624 = vmatpush.msra.mxu0 %v242
    %625 = vmatpush.msra.mxu0 %v238
    %626 = vmatpush.msra.mxu0 %v234
    %627 = vmatpush.msra.mxu0 %v230
    %628 = vmatpush.msra.mxu0 %v226
    %629 = vmatpush.msra.mxu0 %v222
    %630 = vmatpush.msra.mxu0 %v218
    %631 = vmatpush.msra.mxu0 %v214
    %632 = vmatpush.msra.mxu0 %v210
    %633 = vmatpush.msra.mxu0 %v206
    %634 = vmatpush.msra.mxu0 %v202
    %635 = vmatpush.msra.mxu0 %v198
    %636 = vmatpush.msra.mxu0 %v194
    %637 = vmatmul.f32.gmra.mxu0 %v425
    %v638 = vpop.f32.mrf.mxu0
    %v639 = vadd.f32 %v535, %v638
    %640 = vdwg.mxu0
    %641 = vmatpush.msra.mxu0 %v318
    %642 = vmatpush.msra.mxu0 %v314
    %643 = vmatpush.msra.mxu0 %v310
    %644 = vmatpush.msra.mxu0 %v306
    %645 = vmatpush.msra.mxu0 %v302
    %646 = vmatpush.msra.mxu0 %v298
    %647 = vmatpush.msra.mxu0 %v294
    %648 = vmatpush.msra.mxu0 %v290
    %649 = vmatpush.msra.mxu0 %v286
    %650 = vmatpush.msra.mxu0 %v282
    %651 = vmatpush.msra.mxu0 %v278
    %652 = vmatpush.msra.mxu0 %v274
    %653 = vmatpush.msra.mxu0 %v270
    %654 = vmatpush.msra.mxu0 %v266
    %655 = vmatpush.msra.mxu0 %v262
    %656 = vmatpush.msra.mxu0 %v258
    %657 = vmatmul.f32.gmra.mxu0 0.0
    %v658 = vpop.f32.mrf.mxu0
    %v659 = vadd.f32 %v639, %v658
    %660 = vdwg.mxu0
    %661 = vmatpush.msra.mxu0 %v255
    %662 = vmatpush.msra.mxu0 %v251
    %663 = vmatpush.msra.mxu0 %v247
    %664 = vmatpush.msra.mxu0 %v243
    %665 = vmatpush.msra.mxu0 %v239
    %666 = vmatpush.msra.mxu0 %v235
    %667 = vmatpush.msra.mxu0 %v231
    %668 = vmatpush.msra.mxu0 %v227
    %669 = vmatpush.msra.mxu0 %v223
    %670 = vmatpush.msra.mxu0 %v219
    %671 = vmatpush.msra.mxu0 %v215
    %672 = vmatpush.msra.mxu0 %v211
    %673 = vmatpush.msra.mxu0 %v207
    %674 = vmatpush.msra.mxu0 %v203
    %675 = vmatpush.msra.mxu0 %v199
    %676 = vmatpush.msra.mxu0 %v195
    %677 = vmatmul.f32.gmra.mxu0 %v425
    %v678 = vpop.f32.mrf.mxu0
    %v679 = vadd.f32 %v536, %v678
    %680 = vdwg.mxu0
    %681 = vmatpush.msra.mxu0 %v319
    %682 = vmatpush.msra.mxu0 %v315
    %683 = vmatpush.msra.mxu0 %v311
    %684 = vmatpush.msra.mxu0 %v307
    %685 = vmatpush.msra.mxu0 %v303
    %686 = vmatpush.msra.mxu0 %v299
    %687 = vmatpush.msra.mxu0 %v295
    %688 = vmatpush.msra.mxu0 %v291
    %689 = vmatpush.msra.mxu0 %v287
    %690 = vmatpush.msra.mxu0 %v283
    %691 = vmatpush.msra.mxu0 %v279
    %692 = vmatpush.msra.mxu0 %v275
    %693 = vmatpush.msra.mxu0 %v271
    %694 = vmatpush.msra.mxu0 %v267
    %695 = vmatpush.msra.mxu0 %v263
    %696 = vmatpush.msra.mxu0 %v259
    %697 = vmatmul.f32.gmra.mxu0 0.0
    %v698 = vpop.f32.mrf.mxu0
    %v699 = vadd.f32 %v679, %v698
    %700 = vdwg.mxu0
    %v701 = vtanh.pop %v579
    %v702 = vmul.f32 %v701, 0.5
    %v703 = vadd.f32 %v702, 0.5
    %v704 = vtanh.pop %v619
    %v705 = vmul.f32 %v704, 0.5
    %v706 = vadd.f32 %v705, 0.5
    %v707 = vtanh.pop %v659
    %v708 = vtanh.pop %v699
    %v709 = vmul.f32 %v708, 0.5
    %v710 = vadd.f32 %v709, 0.5
    %v711 = vmul.f32 %v706, 0.0
    %v712 = vmul.f32 %v703, %v707
    %v713 = vadd.f32 %v711, %v712
    %v714 = vtanh.pop %v713
    %v715 = vmul.f32 %v710, %v714
    %716 = vst [vmem:[#allocation3] sm:$0x1] %v715
    %s717 = scalar_lea.vmem [#allocation2], 2
    %v718 = vld [vmem:[%s717] ss:$8 sm:$0xf]
    %v720 = vperm.slane %v718, 0
    %v721 = vperm.slane %v718, 1
    %v722 = vperm.slane %v718, 2
    %v723 = vperm.slane %v718, 3
    %728 = vmatpush.msra.mxu0 %v188
    %729 = vmatpush.msra.mxu0 %v184
    %730 = vmatpush.msra.mxu0 %v180
    %731 = vmatpush.msra.mxu0 %v176
    %732 = vmatpush.msra.mxu0 %v172
    %733 = vmatpush.msra.mxu0 %v168
    %734 = vmatpush.msra.mxu0 %v164
    %735 = vmatpush.msra.mxu0 %v160
    %736 = vmatpush.msra.mxu0 %v156
    %737 = vmatpush.msra.mxu0 %v152
    %738 = vmatpush.msra.mxu0 %v148
    %739 = vmatpush.msra.mxu0 %v144
    %740 = vmatpush.msra.mxu0 %v140
    %741 = vmatpush.msra.mxu0 %v136
    %742 = vmatpush.msra.mxu0 %v132
    %743 = vmatpush.msra.mxu0 %v128
    %744 = vmatmul.f32.gmra.mxu0 %v531
    %v745 = vpop.f32.mrf.mxu0
    %v746 = vadd.f32 %v720, %v745
    %747 = vdwg.mxu0
    %748 = vmatpush.msra.mxu0 %v189
    %749 = vmatpush.msra.mxu0 %v185
    %750 = vmatpush.msra.mxu0 %v181
    %751 = vmatpush.msra.mxu0 %v177
    %752 = vmatpush.msra.mxu0 %v173
    %753 = vmatpush.msra.mxu0 %v169
    %754 = vmatpush.msra.mxu0 %v165
    %755 = vmatpush.msra.mxu0 %v161
    %756 = vmatpush.msra.mxu0 %v157
    %757 = vmatpush.msra.mxu0 %v153
    %758 = vmatpush.msra.mxu0 %v149
    %759 = vmatpush.msra.mxu0 %v145
    %760 = vmatpush.msra.mxu0 %v141
    %761 = vmatpush.msra.mxu0 %v137
    %762 = vmatpush.msra.mxu0 %v133
    %763 = vmatpush.msra.mxu0 %v129
    %764 = vmatmul.f32.gmra.mxu0 %v531
    %v765 = vpop.f32.mrf.mxu0
    %v766 = vadd.f32 %v721, %v765
    %767 = vdwg.mxu0
    %768 = vmatpush.msra.mxu0 %v190
    %769 = vmatpush.msra.mxu0 %v186
    %770 = vmatpush.msra.mxu0 %v182
    %771 = vmatpush.msra.mxu0 %v178
    %772 = vmatpush.msra.mxu0 %v174
    %773 = vmatpush.msra.mxu0 %v170
    %774 = vmatpush.msra.mxu0 %v166
    %775 = vmatpush.msra.mxu0 %v162
    %776 = vmatpush.msra.mxu0 %v158
    %777 = vmatpush.msra.mxu0 %v154
    %778 = vmatpush.msra.mxu0 %v150
    %779 = vmatpush.msra.mxu0 %v146
    %780 = vmatpush.msra.mxu0 %v142
    %781 = vmatpush.msra.mxu0 %v138
    %782 = vmatpush.msra.mxu0 %v134
    %783 = vmatpush.msra.mxu0 %v130
    %784 = vmatmul.f32.gmra.mxu0 %v531
    %v785 = vpop.f32.mrf.mxu0
    %v786 = vadd.f32 %v722, %v785
    %787 = vdwg.mxu0
    %788 = vmatpush.msra.mxu0 %v191
    %789 = vmatpush.msra.mxu0 %v187
    %790 = vmatpush.msra.mxu0 %v183
    %791 = vmatpush.msra.mxu0 %v179
    %792 = vmatpush.msra.mxu0 %v175
    %793 = vmatpush.msra.mxu0 %v171
    %794 = vmatpush.msra.mxu0 %v167
    %795 = vmatpush.msra.mxu0 %v163
    %796 = vmatpush.msra.mxu0 %v159
    %797 = vmatpush.msra.mxu0 %v155
    %798 = vmatpush.msra.mxu0 %v151
    %799 = vmatpush.msra.mxu0 %v147
    %800 = vmatpush.msra.mxu0 %v143
    %801 = vmatpush.msra.mxu0 %v139
    %802 = vmatpush.msra.mxu0 %v135
    %803 = vmatpush.msra.mxu0 %v131
    %804 = vmatmul.f32.gmra.mxu0 %v531
    %v805 = vpop.f32.mrf.mxu0
    %v806 = vadd.f32 %v723, %v805
    %807 = vdwg.mxu0
    %v808 = vtanh.pop %v746
    %v809 = vmul.f32 %v808, 0.5
    %v810 = vadd.f32 %v809, 0.5
    %v811 = vtanh.pop %v766
    %v812 = vmul.f32 %v811, 0.5
    %v813 = vadd.f32 %v812, 0.5
    %v814 = vtanh.pop %v786
    %v815 = vtanh.pop %v806
    %v816 = vmul.f32 %v815, 0.5
    %v817 = vadd.f32 %v816, 0.5
    %v818 = vmul.f32 %v813, %v529
    %v819 = vmul.f32 %v810, %v814
    %v820 = vadd.f32 %v818, %v819
    %v821 = vtanh.pop %v820
    %v822 = vmul.f32 %v817, %v821
    %823 = vmatpush.msra.mxu0 %v252
    %824 = vmatpush.msra.mxu0 %v248
    %825 = vmatpush.msra.mxu0 %v244
    %826 = vmatpush.msra.mxu0 %v240
    %827 = vmatpush.msra.mxu0 %v236
    %828 = vmatpush.msra.mxu0 %v232
    %829 = vmatpush.msra.mxu0 %v228
    %830 = vmatpush.msra.mxu0 %v224
    %831 = vmatpush.msra.mxu0 %v220
    %832 = vmatpush.msra.mxu0 %v216
    %833 = vmatpush.msra.mxu0 %v212
    %834 = vmatpush.msra.mxu0 %v208
    %835 = vmatpush.msra.mxu0 %v204
    %836 = vmatpush.msra.mxu0 %v200
    %837 = vmatpush.msra.mxu0 %v196
    %838 = vmatpush.msra.mxu0 %v192
    %839 = vmatmul.f32.gmra.mxu0 %v531
    %v840 = vpop.f32.mrf.mxu0
    %v841 = vadd.f32 %v533, %v840
    %842 = vdwg.mxu0
    %843 = vmatpush.msra.mxu0 %v316
    %844 = vmatpush.msra.mxu0 %v312
    %845 = vmatpush.msra.mxu0 %v308
    %846 = vmatpush.msra.mxu0 %v304
    %847 = vmatpush.msra.mxu0 %v300
    %848 = vmatpush.msra.mxu0 %v296
    %849 = vmatpush.msra.mxu0 %v292
    %850 = vmatpush.msra.mxu0 %v288
    %851 = vmatpush.msra.mxu0 %v284
    %852 = vmatpush.msra.mxu0 %v280
    %853 = vmatpush.msra.mxu0 %v276
    %854 = vmatpush.msra.mxu0 %v272
    %855 = vmatpush.msra.mxu0 %v268
    %856 = vmatpush.msra.mxu0 %v264
    %857 = vmatpush.msra.mxu0 %v260
    %858 = vmatpush.msra.mxu0 %v256
    %859 = vmatmul.f32.gmra.mxu0 %v715
    %v860 = vpop.f32.mrf.mxu0
    %v861 = vadd.f32 %v841, %v860
    %862 = vdwg.mxu0
    %863 = vmatpush.msra.mxu0 %v253
    %864 = vmatpush.msra.mxu0 %v249
    %865 = vmatpush.msra.mxu0 %v245
    %866 = vmatpush.msra.mxu0 %v241
    %867 = vmatpush.msra.mxu0 %v237
    %868 = vmatpush.msra.mxu0 %v233
    %869 = vmatpush.msra.mxu0 %v229
    %870 = vmatpush.msra.mxu0 %v225
    %871 = vmatpush.msra.mxu0 %v221
    %872 = vmatpush.msra.mxu0 %v217
    %873 = vmatpush.msra.mxu0 %v213
    %874 = vmatpush.msra.mxu0 %v209
    %875 = vmatpush.msra.mxu0 %v205
    %876 = vmatpush.msra.mxu0 %v201
    %877 = vmatpush.msra.mxu0 %v197
    %878 = vmatpush.msra.mxu0 %v193
    %879 = vmatmul.f32.gmra.mxu0 %v531
    %v880 = vpop.f32.mrf.mxu0
    %v881 = vadd.f32 %v534, %v880
    %882 = vdwg.mxu0
    %883 = vmatpush.msra.mxu0 %v317
    %884 = vmatpush.msra.mxu0 %v313
    %885 = vmatpush.msra.mxu0 %v309
    %886 = vmatpush.msra.mxu0 %v305
    %887 = vmatpush.msra.mxu0 %v301
    %888 = vmatpush.msra.mxu0 %v297
    %889 = vmatpush.msra.mxu0 %v293
    %890 = vmatpush.msra.mxu0 %v289
    %891 = vmatpush.msra.mxu0 %v285
    %892 = vmatpush.msra.mxu0 %v281
    %893 = vmatpush.msra.mxu0 %v277
    %894 = vmatpush.msra.mxu0 %v273
    %895 = vmatpush.msra.mxu0 %v269
    %896 = vmatpush.msra.mxu0 %v265
    %897 = vmatpush.msra.mxu0 %v261
    %898 = vmatpush.msra.mxu0 %v257
    %899 = vmatmul.f32.gmra.mxu0 %v715
    %v900 = vpop.f32.mrf.mxu0
    %v901 = vadd.f32 %v881, %v900
    %902 = vdwg.mxu0
    %903 = vmatpush.msra.mxu0 %v254
    %904 = vmatpush.msra.mxu0 %v250
    %905 = vmatpush.msra.mxu0 %v246
    %906 = vmatpush.msra.mxu0 %v242
    %907 = vmatpush.msra.mxu0 %v238
    %908 = vmatpush.msra.mxu0 %v234
    %909 = vmatpush.msra.mxu0 %v230
    %910 = vmatpush.msra.mxu0 %v226
    %911 = vmatpush.msra.mxu0 %v222
    %912 = vmatpush.msra.mxu0 %v218
    %913 = vmatpush.msra.mxu0 %v214
    %914 = vmatpush.msra.mxu0 %v210
    %915 = vmatpush.msra.mxu0 %v206
    %916 = vmatpush.msra.mxu0 %v202
    %917 = vmatpush.msra.mxu0 %v198
    %918 = vmatpush.msra.mxu0 %v194
    %919 = vmatmul.f32.gmra.mxu0 %v531
    %v920 = vpop.f32.mrf.mxu0
    %v921 = vadd.f32 %v535, %v920
    %922 = vdwg.mxu0
    %923 = vmatpush.msra.mxu0 %v318
    %924 = vmatpush.msra.mxu0 %v314
    %925 = vmatpush.msra.mxu0 %v310
    %926 = vmatpush.msra.mxu0 %v306
    %927 = vmatpush.msra.mxu0 %v302
    %928 = vmatpush.msra.mxu0 %v298
    %929 = vmatpush.msra.mxu0 %v294
    %930 = vmatpush.msra.mxu0 %v290
    %931 = vmatpush.msra.mxu0 %v286
    %932 = vmatpush.msra.mxu0 %v282
    %933 = vmatpush.msra.mxu0 %v278
    %934 = vmatpush.msra.mxu0 %v274
    %935 = vmatpush.msra.mxu0 %v270
    %936 = vmatpush.msra.mxu0 %v266
    %937 = vmatpush.msra.mxu0 %v262
    %938 = vmatpush.msra.mxu0 %v258
    %939 = vmatmul.f32.gmra.mxu0 %v715
    %v940 = vpop.f32.mrf.mxu0
    %v941 = vadd.f32 %v921, %v940
    %942 = vdwg.mxu0
    %943 = vmatpush.msra.mxu0 %v255
    %944 = vmatpush.msra.mxu0 %v251
    %945 = vmatpush.msra.mxu0 %v247
    %946 = vmatpush.msra.mxu0 %v243
    %947 = vmatpush.msra.mxu0 %v239
    %948 = vmatpush.msra.mxu0 %v235
    %949 = vmatpush.msra.mxu0 %v231
    %950 = vmatpush.msra.mxu0 %v227
    %951 = vmatpush.msra.mxu0 %v223
    %952 = vmatpush.msra.mxu0 %v219
    %953 = vmatpush.msra.mxu0 %v215
    %954 = vmatpush.msra.mxu0 %v211
    %955 = vmatpush.msra.mxu0 %v207
    %956 = vmatpush.msra.mxu0 %v203
    %957 = vmatpush.msra.mxu0 %v199
    %958 = vmatpush.msra.mxu0 %v195
    %959 = vmatmul.f32.gmra.mxu0 %v531
    %v960 = vpop.f32.mrf.mxu0
    %v961 = vadd.f32 %v536, %v960
    %962 = vdwg.mxu0
    %963 = vmatpush.msra.mxu0 %v319
    %964 = vmatpush.msra.mxu0 %v315
    %965 = vmatpush.msra.mxu0 %v311
    %966 = vmatpush.msra.mxu0 %v307
    %967 = vmatpush.msra.mxu0 %v303
    %968 = vmatpush.msra.mxu0 %v299
    %969 = vmatpush.msra.mxu0 %v295
    %970 = vmatpush.msra.mxu0 %v291
    %971 = vmatpush.msra.mxu0 %v287
    %972 = vmatpush.msra.mxu0 %v283
    %973 = vmatpush.msra.mxu0 %v279
    %974 = vmatpush.msra.mxu0 %v275
    %975 = vmatpush.msra.mxu0 %v271
    %976 = vmatpush.msra.mxu0 %v267
    %977 = vmatpush.msra.mxu0 %v263
    %978 = vmatpush.msra.mxu0 %v259
    %979 = vmatmul.f32.gmra.mxu0 %v715
    %v980 = vpop.f32.mrf.mxu0
    %v981 = vadd.f32 %v961, %v980
    %982 = vdwg.mxu0
    %v983 = vtanh.pop %v861
    %v984 = vmul.f32 %v983, 0.5
    %v985 = vadd.f32 %v984, 0.5
    %v986 = vtanh.pop %v901
    %v987 = vmul.f32 %v986, 0.5
    %v988 = vadd.f32 %v987, 0.5
    %v989 = vtanh.pop %v941
    %v990 = vtanh.pop %v981
    %v991 = vmul.f32 %v990, 0.5
    %v992 = vadd.f32 %v991, 0.5
    %v993 = vmul.f32 %v988, %v713
    %v994 = vmul.f32 %v985, %v989
    %v995 = vadd.f32 %v993, %v994
    %v996 = vtanh.pop %v995
    %v997 = vmul.f32 %v992, %v996
    %998 = vst [vmem:[#allocation3 + $0x1] sm:$0x1] %v997
    %s999 = scalar_lea.vmem [#allocation2], 3
    %v1000 = vld [vmem:[%s999] ss:$8 sm:$0xf]
    %v1002 = vperm.slane %v1000, 0
    %v1003 = vperm.slane %v1000, 1
    %v1004 = vperm.slane %v1000, 2
    %v1005 = vperm.slane %v1000, 3
    %1010 = vmatpush.msra.mxu0 %v188
    %1011 = vmatpush.msra.mxu0 %v184
    %1012 = vmatpush.msra.mxu0 %v180
    %1013 = vmatpush.msra.mxu0 %v176
    %1014 = vmatpush.msra.mxu0 %v172
    %1015 = vmatpush.msra.mxu0 %v168
    %1016 = vmatpush.msra.mxu0 %v164
    %1017 = vmatpush.msra.mxu0 %v160
    %1018 = vmatpush.msra.mxu0 %v156
    %1019 = vmatpush.msra.mxu0 %v152
    %1020 = vmatpush.msra.mxu0 %v148
    %1021 = vmatpush.msra.mxu0 %v144
    %1022 = vmatpush.msra.mxu0 %v140
    %1023 = vmatpush.msra.mxu0 %v136
    %1024 = vmatpush.msra.mxu0 %v132
    %1025 = vmatpush.msra.mxu0 %v128
    %1026 = vmatmul.f32.gmra.mxu0 %v822
    %v1027 = vpop.f32.mrf.mxu0
    %v1028 = vadd.f32 %v1002, %v1027
    %1029 = vdwg.mxu0
    %1030 = vmatpush.msra.mxu0 %v189
    %1031 = vmatpush.msra.mxu0 %v185
    %1032 = vmatpush.msra.mxu0 %v181
    %1033 = vmatpush.msra.mxu0 %v177
    %1034 = vmatpush.msra.mxu0 %v173
    %1035 = vmatpush.msra.mxu0 %v169
    %1036 = vmatpush.msra.mxu0 %v165
    %1037 = vmatpush.msra.mxu0 %v161
    %1038 = vmatpush.msra.mxu0 %v157
    %1039 = vmatpush.msra.mxu0 %v153
    %1040 = vmatpush.msra.mxu0 %v149
    %1041 = vmatpush.msra.mxu0 %v145
    %1042 = vmatpush.msra.mxu0 %v141
    %1043 = vmatpush.msra.mxu0 %v137
    %1044 = vmatpush.msra.mxu0 %v133
    %1045 = vmatpush.msra.mxu0 %v129
    %1046 = vmatmul.f32.gmra.mxu0 %v822
    %v1047 = vpop.f32.mrf.mxu0
    %v1048 = vadd.f32 %v1003, %v1047
    %1049 = vdwg.mxu0
    %1050 = vmatpush.msra.mxu0 %v190
    %1051 = vmatpush.msra.mxu0 %v186
    %1052 = vmatpush.msra.mxu0 %v182
    %1053 = vmatpush.msra.mxu0 %v178
    %1054 = vmatpush.msra.mxu0 %v174
    %1055 = vmatpush.msra.mxu0 %v170
    %1056 = vmatpush.msra.mxu0 %v166
    %1057 = vmatpush.msra.mxu0 %v162
    %1058 = vmatpush.msra.mxu0 %v158
    %1059 = vmatpush.msra.mxu0 %v154
    %1060 = vmatpush.msra.mxu0 %v150
    %1061 = vmatpush.msra.mxu0 %v146
    %1062 = vmatpush.msra.mxu0 %v142
    %1063 = vmatpush.msra.mxu0 %v138
    %1064 = vmatpush.msra.mxu0 %v134
    %1065 = vmatpush.msra.mxu0 %v130
    %1066 = vmatmul.f32.gmra.mxu0 %v822
    %v1067 = vpop.f32.mrf.mxu0
    %v1068 = vadd.f32 %v1004, %v1067
    %1069 = vdwg.mxu0
    %1070 = vmatpush.msra.mxu0 %v191
    %1071 = vmatpush.msra.mxu0 %v187
    %1072 = vmatpush.msra.mxu0 %v183
    %1073 = vmatpush.msra.mxu0 %v179
    %1074 = vmatpush.msra.mxu0 %v175
    %1075 = vmatpush.msra.mxu0 %v171
    %1076 = vmatpush.msra.mxu0 %v167
    %1077 = vmatpush.msra.mxu0 %v163
    %1078 = vmatpush.msra.mxu0 %v159
    %1079 = vmatpush.msra.mxu0 %v155
    %1080 = vmatpush.msra.mxu0 %v151
    %1081 = vmatpush.msra.mxu0 %v147
    %1082 = vmatpush.msra.mxu0 %v143
    %1083 = vmatpush.msra.mxu0 %v139
    %1084 = vmatpush.msra.mxu0 %v135
    %1085 = vmatpush.msra.mxu0 %v131
    %1086 = vmatmul.f32.gmra.mxu0 %v822
    %v1087 = vpop.f32.mrf.mxu0
    %v1088 = vadd.f32 %v1005, %v1087
    %1089 = vdwg.mxu0
    %v1090 = vtanh.pop %v1028
    %v1091 = vmul.f32 %v1090, 0.5
    %v1092 = vadd.f32 %v1091, 0.5
    %v1093 = vtanh.pop %v1048
    %v1094 = vmul.f32 %v1093, 0.5
    %v1095 = vadd.f32 %v1094, 0.5
    %v1096 = vtanh.pop %v1068
    %v1097 = vtanh.pop %v1088
    %v1098 = vmul.f32 %v1097, 0.5
    %v1099 = vadd.f32 %v1098, 0.5
    %v1100 = vmul.f32 %v1095, %v820
    %v1101 = vmul.f32 %v1092, %v1096
    %v1102 = vadd.f32 %v1100, %v1101
    %v1103 = vtanh.pop %v1102
    %v1104 = vmul.f32 %v1099, %v1103
    %1105 = vmatpush.msra.mxu0 %v252
    %1106 = vmatpush.msra.mxu0 %v248
    %1107 = vmatpush.msra.mxu0 %v244
    %1108 = vmatpush.msra.mxu0 %v240
    %1109 = vmatpush.msra.mxu0 %v236
    %1110 = vmatpush.msra.mxu0 %v232
    %1111 = vmatpush.msra.mxu0 %v228
    %1112 = vmatpush.msra.mxu0 %v224
    %1113 = vmatpush.msra.mxu0 %v220
    %1114 = vmatpush.msra.mxu0 %v216
    %1115 = vmatpush.msra.mxu0 %v212
    %1116 = vmatpush.msra.mxu0 %v208
    %1117 = vmatpush.msra.mxu0 %v204
    %1118 = vmatpush.msra.mxu0 %v200
    %1119 = vmatpush.msra.mxu0 %v196
    %1120 = vmatpush.msra.mxu0 %v192
    %1121 = vmatmul.f32.gmra.mxu0 %v822
    %v1122 = vpop.f32.mrf.mxu0
    %v1123 = vadd.f32 %v533, %v1122
    %1124 = vdwg.mxu0
    %1125 = vmatpush.msra.mxu0 %v316
    %1126 = vmatpush.msra.mxu0 %v312
    %1127 = vmatpush.msra.mxu0 %v308
    %1128 = vmatpush.msra.mxu0 %v304
    %1129 = vmatpush.msra.mxu0 %v300
    %1130 = vmatpush.msra.mxu0 %v296
    %1131 = vmatpush.msra.mxu0 %v292
    %1132 = vmatpush.msra.mxu0 %v288
    %1133 = vmatpush.msra.mxu0 %v284
    %1134 = vmatpush.msra.mxu0 %v280
    %1135 = vmatpush.msra.mxu0 %v276
    %1136 = vmatpush.msra.mxu0 %v272
    %1137 = vmatpush.msra.mxu0 %v268
    %1138 = vmatpush.msra.mxu0 %v264
    %1139 = vmatpush.msra.mxu0 %v260
    %1140 = vmatpush.msra.mxu0 %v256
    %1141 = vmatmul.f32.gmra.mxu0 %v997
    %v1142 = vpop.f32.mrf.mxu0
    %v1143 = vadd.f32 %v1123, %v1142
    %1144 = vdwg.mxu0
    %1145 = vmatpush.msra.mxu0 %v253
    %1146 = vmatpush.msra.mxu0 %v249
    %1147 = vmatpush.msra.mxu0 %v245
    %1148 = vmatpush.msra.mxu0 %v241
    %1149 = vmatpush.msra.mxu0 %v237
    %1150 = vmatpush.msra.mxu0 %v233
    %1151 = vmatpush.msra.mxu0 %v229
    %1152 = vmatpush.msra.mxu0 %v225
    %1153 = vmatpush.msra.mxu0 %v221
    %1154 = vmatpush.msra.mxu0 %v217
    %1155 = vmatpush.msra.mxu0 %v213
    %1156 = vmatpush.msra.mxu0 %v209
    %1157 = vmatpush.msra.mxu0 %v205
    %1158 = vmatpush.msra.mxu0 %v201
    %1159 = vmatpush.msra.mxu0 %v197
    %1160 = vmatpush.msra.mxu0 %v193
    %1161 = vmatmul.f32.gmra.mxu0 %v822
    %v1162 = vpop.f32.mrf.mxu0
    %v1163 = vadd.f32 %v534, %v1162
    %1164 = vdwg.mxu0
    %1165 = vmatpush.msra.mxu0 %v317
    %1166 = vmatpush.msra.mxu0 %v313
    %1167 = vmatpush.msra.mxu0 %v309
    %1168 = vmatpush.msra.mxu0 %v305
    %1169 = vmatpush.msra.mxu0 %v301
    %1170 = vmatpush.msra.mxu0 %v297
    %1171 = vmatpush.msra.mxu0 %v293
    %1172 = vmatpush.msra.mxu0 %v289
    %1173 = vmatpush.msra.mxu0 %v285
    %1174 = vmatpush.msra.mxu0 %v281
    %1175 = vmatpush.msra.mxu0 %v277
    %1176 = vmatpush.msra.mxu0 %v273
    %1177 = vmatpush.msra.mxu0 %v269
    %1178 = vmatpush.msra.mxu0 %v265
    %1179 = vmatpush.msra.mxu0 %v261
    %1180 = vmatpush.msra.mxu0 %v257
    %1181 = vmatmul.f32.gmra.mxu0 %v997
    %v1182 = vpop.f32.mrf.mxu0
    %v1183 = vadd.f32 %v1163, %v1182
    %1184 = vdwg.mxu0
    %1185 = vmatpush.msra.mxu0 %v254
    %1186 = vmatpush.msra.mxu0 %v250
    %1187 = vmatpush.msra.mxu0 %v246
    %1188 = vmatpush.msra.mxu0 %v242
    %1189 = vmatpush.msra.mxu0 %v238
    %1190 = vmatpush.msra.mxu0 %v234
    %1191 = vmatpush.msra.mxu0 %v230
    %1192 = vmatpush.msra.mxu0 %v226
    %1193 = vmatpush.msra.mxu0 %v222
    %1194 = vmatpush.msra.mxu0 %v218
    %1195 = vmatpush.msra.mxu0 %v214
    %1196 = vmatpush.msra.mxu0 %v210
    %1197 = vmatpush.msra.mxu0 %v206
    %1198 = vmatpush.msra.mxu0 %v202
    %1199 = vmatpush.msra.mxu0 %v198
    %1200 = vmatpush.msra.mxu0 %v194
    %1201 = vmatmul.f32.gmra.mxu0 %v822
    %v1202 = vpop.f32.mrf.mxu0
    %v1203 = vadd.f32 %v535, %v1202
    %1204 = vdwg.mxu0
    %1205 = vmatpush.msra.mxu0 %v318
    %1206 = vmatpush.msra.mxu0 %v314
    %1207 = vmatpush.msra.mxu0 %v310
    %1208 = vmatpush.msra.mxu0 %v306
    %1209 = vmatpush.msra.mxu0 %v302
    %1210 = vmatpush.msra.mxu0 %v298
    %1211 = vmatpush.msra.mxu0 %v294
    %1212 = vmatpush.msra.mxu0 %v290
    %1213 = vmatpush.msra.mxu0 %v286
    %1214 = vmatpush.msra.mxu0 %v282
    %1215 = vmatpush.msra.mxu0 %v278
    %1216 = vmatpush.msra.mxu0 %v274
    %1217 = vmatpush.msra.mxu0 %v270
    %1218 = vmatpush.msra.mxu0 %v266
    %1219 = vmatpush.msra.mxu0 %v262
    %1220 = vmatpush.msra.mxu0 %v258
    %1221 = vmatmul.f32.gmra.mxu0 %v997
    %v1222 = vpop.f32.mrf.mxu0
    %v1223 = vadd.f32 %v1203, %v1222
    %1224 = vdwg.mxu0
    %1225 = vmatpush.msra.mxu0 %v255
    %1226 = vmatpush.msra.mxu0 %v251
    %1227 = vmatpush.msra.mxu0 %v247
    %1228 = vmatpush.msra.mxu0 %v243
    %1229 = vmatpush.msra.mxu0 %v239
    %1230 = vmatpush.msra.mxu0 %v235
    %1231 = vmatpush.msra.mxu0 %v231
    %1232 = vmatpush.msra.mxu0 %v227
    %1233 = vmatpush.msra.mxu0 %v223
    %1234 = vmatpush.msra.mxu0 %v219
    %1235 = vmatpush.msra.mxu0 %v215
    %1236 = vmatpush.msra.mxu0 %v211
    %1237 = vmatpush.msra.mxu0 %v207
    %1238 = vmatpush.msra.mxu0 %v203
    %1239 = vmatpush.msra.mxu0 %v199
    %1240 = vmatpush.msra.mxu0 %v195
    %1241 = vmatmul.f32.gmra.mxu0 %v822
    %v1242 = vpop.f32.mrf.mxu0
    %v1243 = vadd.f32 %v536, %v1242
    %1244 = vdwg.mxu0
    %1245 = vmatpush.msra.mxu0 %v319
    %1246 = vmatpush.msra.mxu0 %v315
    %1247 = vmatpush.msra.mxu0 %v311
    %1248 = vmatpush.msra.mxu0 %v307
    %1249 = vmatpush.msra.mxu0 %v303
    %1250 = vmatpush.msra.mxu0 %v299
    %1251 = vmatpush.msra.mxu0 %v295
    %1252 = vmatpush.msra.mxu0 %v291
    %1253 = vmatpush.msra.mxu0 %v287
    %1254 = vmatpush.msra.mxu0 %v283
    %1255 = vmatpush.msra.mxu0 %v279
    %1256 = vmatpush.msra.mxu0 %v275
    %1257 = vmatpush.msra.mxu0 %v271
    %1258 = vmatpush.msra.mxu0 %v267
    %1259 = vmatpush.msra.mxu0 %v263
    %1260 = vmatpush.msra.mxu0 %v259
    %1261 = vmatmul.f32.gmra.mxu0 %v997
    %v1262 = vpop.f32.mrf.mxu0
    %v1263 = vadd.f32 %v1243, %v1262
    %1264 = vdwg.mxu0
    %v1265 = vtanh.pop %v1143
    %v1266 = vmul.f32 %v1265, 0.5
    %v1267 = vadd.f32 %v1266, 0.5
    %v1268 = vtanh.pop %v1183
    %v1269 = vmul.f32 %v1268, 0.5
    %v1270 = vadd.f32 %v1269, 0.5
    %v1271 = vtanh.pop %v1223
    %v1272 = vtanh.pop %v1263
    %v1273 = vmul.f32 %v1272, 0.5
    %v1274 = vadd.f32 %v1273, 0.5
    %v1275 = vmul.f32 %v1270, %v995
    %v1276 = vmul.f32 %v1267, %v1271
    %v1277 = vadd.f32 %v1275, %v1276
    %v1278 = vtanh.pop %v1277
    %v1279 = vmul.f32 %v1274, %v1278
    %1280 = vst [vmem:[#allocation3 + $0x2] sm:$0x1] %v1279
    %s1281 = scalar_lea.vmem [#allocation2], 4
    %v1282 = vld [vmem:[%s1281] ss:$8 sm:$0xf]
    %v1284 = vperm.slane %v1282, 0
    %v1285 = vperm.slane %v1282, 1
    %v1286 = vperm.slane %v1282, 2
    %v1287 = vperm.slane %v1282, 3
    %1292 = vmatpush.msra.mxu0 %v188
    %1293 = vmatpush.msra.mxu0 %v184
    %1294 = vmatpush.msra.mxu0 %v180
    %1295 = vmatpush.msra.mxu0 %v176
    %1296 = vmatpush.msra.mxu0 %v172
    %1297 = vmatpush.msra.mxu0 %v168
    %1298 = vmatpush.msra.mxu0 %v164
    %1299 = vmatpush.msra.mxu0 %v160
    %1300 = vmatpush.msra.mxu0 %v156
    %1301 = vmatpush.msra.mxu0 %v152
    %1302 = vmatpush.msra.mxu0 %v148
    %1303 = vmatpush.msra.mxu0 %v144
    %1304 = vmatpush.msra.mxu0 %v140
    %1305 = vmatpush.msra.mxu0 %v136
    %1306 = vmatpush.msra.mxu0 %v132
    %1307 = vmatpush.msra.mxu0 %v128
    %1308 = vmatmul.f32.gmra.mxu0 %v1104
    %v1309 = vpop.f32.mrf.mxu0
    %v1310 = vadd.f32 %v1284, %v1309
    %1311 = vdwg.mxu0
    %1312 = vmatpush.msra.mxu0 %v189
    %1313 = vmatpush.msra.mxu0 %v185
    %1314 = vmatpush.msra.mxu0 %v181
    %1315 = vmatpush.msra.mxu0 %v177
    %1316 = vmatpush.msra.mxu0 %v173
    %1317 = vmatpush.msra.mxu0 %v169
    %1318 = vmatpush.msra.mxu0 %v165
    %1319 = vmatpush.msra.mxu0 %v161
    %1320 = vmatpush.msra.mxu0 %v157
    %1321 = vmatpush.msra.mxu0 %v153
    %1322 = vmatpush.msra.mxu0 %v149
    %1323 = vmatpush.msra.mxu0 %v145
    %1324 = vmatpush.msra.mxu0 %v141
    %1325 = vmatpush.msra.mxu0 %v137
    %1326 = vmatpush.msra.mxu0 %v133
    %1327 = vmatpush.msra.mxu0 %v129
    %1328 = vmatmul.f32.gmra.mxu0 %v1104
    %v1329 = vpop.f32.mrf.mxu0
    %v1330 = vadd.f32 %v1285, %v1329
    %1331 = vdwg.mxu0
    %1332 = vmatpush.msra.mxu0 %v190
    %1333 = vmatpush.msra.mxu0 %v186
    %1334 = vmatpush.msra.mxu0 %v182
    %1335 = vmatpush.msra.mxu0 %v178
    %1336 = vmatpush.msra.mxu0 %v174
    %1337 = vmatpush.msra.mxu0 %v170
    %1338 = vmatpush.msra.mxu0 %v166
    %1339 = vmatpush.msra.mxu0 %v162
    %1340 = vmatpush.msra.mxu0 %v158
    %1341 = vmatpush.msra.mxu0 %v154
    %1342 = vmatpush.msra.mxu0 %v150
    %1343 = vmatpush.msra.mxu0 %v146
    %1344 = vmatpush.msra.mxu0 %v142
    %1345 = vmatpush.msra.mxu0 %v138
    %1346 = vmatpush.msra.mxu0 %v134
    %1347 = vmatpush.msra.mxu0 %v130
    %1348 = vmatmul.f32.gmra.mxu0 %v1104
    %v1349 = vpop.f32.mrf.mxu0
    %v1350 = vadd.f32 %v1286, %v1349
    %1351 = vdwg.mxu0
    %1352 = vmatpush.msra.mxu0 %v191
    %1353 = vmatpush.msra.mxu0 %v187
    %1354 = vmatpush.msra.mxu0 %v183
    %1355 = vmatpush.msra.mxu0 %v179
    %1356 = vmatpush.msra.mxu0 %v175
    %1357 = vmatpush.msra.mxu0 %v171
    %1358 = vmatpush.msra.mxu0 %v167
    %1359 = vmatpush.msra.mxu0 %v163
    %1360 = vmatpush.msra.mxu0 %v159
    %1361 = vmatpush.msra.mxu0 %v155
    %1362 = vmatpush.msra.mxu0 %v151
    %1363 = vmatpush.msra.mxu0 %v147
    %1364 = vmatpush.msra.mxu0 %v143
    %1365 = vmatpush.msra.mxu0 %v139
    %1366 = vmatpush.msra.mxu0 %v135
    %1367 = vmatpush.msra.mxu0 %v131
    %1368 = vmatmul.f32.gmra.mxu0 %v1104
    %v1369 = vpop.f32.mrf.mxu0
    %v1370 = vadd.f32 %v1287, %v1369
    %1371 = vdwg.mxu0
    %v1372 = vtanh.pop %v1310
    %v1373 = vmul.f32 %v1372, 0.5
    %v1374 = vadd.f32 %v1373, 0.5
    %v1375 = vtanh.pop %v1330
    %v1376 = vmul.f32 %v1375, 0.5
    %v1377 = vadd.f32 %v1376, 0.5
    %v1378 = vtanh.pop %v1350
    %v1379 = vtanh.pop %v1370
    %v1380 = vmul.f32 %v1379, 0.5
    %v1381 = vadd.f32 %v1380, 0.5
    %v1382 = vmul.f32 %v1377, %v1102
    %v1383 = vmul.f32 %v1374, %v1378
    %v1384 = vadd.f32 %v1382, %v1383
    %v1385 = vtanh.pop %v1384
    %v1386 = vmul.f32 %v1381, %v1385
    %1387 = vmatpush.msra.mxu0 %v252
    %1388 = vmatpush.msra.mxu0 %v248
    %1389 = vmatpush.msra.mxu0 %v244
    %1390 = vmatpush.msra.mxu0 %v240
    %1391 = vmatpush.msra.mxu0 %v236
    %1392 = vmatpush.msra.mxu0 %v232
    %1393 = vmatpush.msra.mxu0 %v228
    %1394 = vmatpush.msra.mxu0 %v224
    %1395 = vmatpush.msra.mxu0 %v220
    %1396 = vmatpush.msra.mxu0 %v216
    %1397 = vmatpush.msra.mxu0 %v212
    %1398 = vmatpush.msra.mxu0 %v208
    %1399 = vmatpush.msra.mxu0 %v204
    %1400 = vmatpush.msra.mxu0 %v200
    %1401 = vmatpush.msra.mxu0 %v196
    %1402 = vmatpush.msra.mxu0 %v192
    %1403 = vmatmul.f32.gmra.mxu0 %v1104
    %v1404 = vpop.f32.mrf.mxu0
    %v1405 = vadd.f32 %v533, %v1404
    %1406 = vdwg.mxu0
    %1407 = vmatpush.msra.mxu0 %v316
    %1408 = vmatpush.msra.mxu0 %v312
    %1409 = vmatpush.msra.mxu0 %v308
    %1410 = vmatpush.msra.mxu0 %v304
    %1411 = vmatpush.msra.mxu0 %v300
    %1412 = vmatpush.msra.mxu0 %v296
    %1413 = vmatpush.msra.mxu0 %v292
    %1414 = vmatpush.msra.mxu0 %v288
    %1415 = vmatpush.msra.mxu0 %v284
    %1416 = vmatpush.msra.mxu0 %v280
    %1417 = vmatpush.msra.mxu0 %v276
    %1418 = vmatpush.msra.mxu0 %v272
    %1419 = vmatpush.msra.mxu0 %v268
    %1420 = vmatpush.msra.mxu0 %v264
    %1421 = vmatpush.msra.mxu0 %v260
    %1422 = vmatpush.msra.mxu0 %v256
    %1423 = vmatmul.f32.gmra.mxu0 %v1279
    %v1424 = vpop.f32.mrf.mxu0
    %v1425 = vadd.f32 %v1405, %v1424
    %1426 = vdwg.mxu0
    %1427 = vmatpush.msra.mxu0 %v253
    %1428 = vmatpush.msra.mxu0 %v249
    %1429 = vmatpush.msra.mxu0 %v245
    %1430 = vmatpush.msra.mxu0 %v241
    %1431 = vmatpush.msra.mxu0 %v237
    %1432 = vmatpush.msra.mxu0 %v233
    %1433 = vmatpush.msra.mxu0 %v229
    %1434 = vmatpush.msra.mxu0 %v225
    %1435 = vmatpush.msra.mxu0 %v221
    %1436 = vmatpush.msra.mxu0 %v217
    %1437 = vmatpush.msra.mxu0 %v213
    %1438 = vmatpush.msra.mxu0 %v209
    %1439 = vmatpush.msra.mxu0 %v205
    %1440 = vmatpush.msra.mxu0 %v201
    %1441 = vmatpush.msra.mxu0 %v197
    %1442 = vmatpush.msra.mxu0 %v193
    %1443 = vmatmul.f32.gmra.mxu0 %v1104
    %v1444 = vpop.f32.mrf.mxu0
    %v1445 = vadd.f32 %v534, %v1444
    %1446 = vdwg.mxu0
    %1447 = vmatpush.msra.mxu0 %v317
    %1448 = vmatpush.msra.mxu0 %v313
    %1449 = vmatpush.msra.mxu0 %v309
    %1450 = vmatpush.msra.mxu0 %v305
    %1451 = vmatpush.msra.mxu0 %v301
    %1452 = vmatpush.msra.mxu0 %v297
    %1453 = vmatpush.msra.mxu0 %v293
    %1454 = vmatpush.msra.mxu0 %v289
    %1455 = vmatpush.msra.mxu0 %v285
    %1456 = vmatpush.msra.mxu0 %v281
    %1457 = vmatpush.msra.mxu0 %v277
    %1458 = vmatpush.msra.mxu0 %v273
    %1459 = vmatpush.msra.mxu0 %v269
    %1460 = vmatpush.msra.mxu0 %v265
    %1461 = vmatpush.msra.mxu0 %v261
    %1462 = vmatpush.msra.mxu0 %v257
    %1463 = vmatmul.f32.gmra.mxu0 %v1279
    %v1464 = vpop.f32.mrf.mxu0
    %v1465 = vadd.f32 %v1445, %v1464
    %1466 = vdwg.mxu0
    %1467 = vmatpush.msra.mxu0 %v254
    %1468 = vmatpush.msra.mxu0 %v250
    %1469 = vmatpush.msra.mxu0 %v246
    %1470 = vmatpush.msra.mxu0 %v242
    %1471 = vmatpush.msra.mxu0 %v238
    %1472 = vmatpush.msra.mxu0 %v234
    %1473 = vmatpush.msra.mxu0 %v230
    %1474 = vmatpush.msra.mxu0 %v226
    %1475 = vmatpush.msra.mxu0 %v222
    %1476 = vmatpush.msra.mxu0 %v218
    %1477 = vmatpush.msra.mxu0 %v214
    %1478 = vmatpush.msra.mxu0 %v210
    %1479 = vmatpush.msra.mxu0 %v206
    %1480 = vmatpush.msra.mxu0 %v202
    %1481 = vmatpush.msra.mxu0 %v198
    %1482 = vmatpush.msra.mxu0 %v194
    %1483 = vmatmul.f32.gmra.mxu0 %v1104
    %v1484 = vpop.f32.mrf.mxu0
    %v1485 = vadd.f32 %v535, %v1484
    %1486 = vdwg.mxu0
    %1487 = vmatpush.msra.mxu0 %v318
    %1488 = vmatpush.msra.mxu0 %v314
    %1489 = vmatpush.msra.mxu0 %v310
    %1490 = vmatpush.msra.mxu0 %v306
    %1491 = vmatpush.msra.mxu0 %v302
    %1492 = vmatpush.msra.mxu0 %v298
    %1493 = vmatpush.msra.mxu0 %v294
    %1494 = vmatpush.msra.mxu0 %v290
    %1495 = vmatpush.msra.mxu0 %v286
    %1496 = vmatpush.msra.mxu0 %v282
    %1497 = vmatpush.msra.mxu0 %v278
    %1498 = vmatpush.msra.mxu0 %v274
    %1499 = vmatpush.msra.mxu0 %v270
    %1500 = vmatpush.msra.mxu0 %v266
    %1501 = vmatpush.msra.mxu0 %v262
    %1502 = vmatpush.msra.mxu0 %v258
    %1503 = vmatmul.f32.gmra.mxu0 %v1279
    %v1504 = vpop.f32.mrf.mxu0
    %v1505 = vadd.f32 %v1485, %v1504
    %1506 = vdwg.mxu0
    %1507 = vmatpush.msra.mxu0 %v255
    %1508 = vmatpush.msra.mxu0 %v251
    %1509 = vmatpush.msra.mxu0 %v247
    %1510 = vmatpush.msra.mxu0 %v243
    %1511 = vmatpush.msra.mxu0 %v239
    %1512 = vmatpush.msra.mxu0 %v235
    %1513 = vmatpush.msra.mxu0 %v231
    %1514 = vmatpush.msra.mxu0 %v227
    %1515 = vmatpush.msra.mxu0 %v223
    %1516 = vmatpush.msra.mxu0 %v219
    %1517 = vmatpush.msra.mxu0 %v215
    %1518 = vmatpush.msra.mxu0 %v211
    %1519 = vmatpush.msra.mxu0 %v207
    %1520 = vmatpush.msra.mxu0 %v203
    %1521 = vmatpush.msra.mxu0 %v199
    %1522 = vmatpush.msra.mxu0 %v195
    %1523 = vmatmul.f32.gmra.mxu0 %v1104
    %v1524 = vpop.f32.mrf.mxu0
    %v1525 = vadd.f32 %v536, %v1524
    %1526 = vdwg.mxu0
    %1527 = vmatpush.msra.mxu0 %v319
    %1528 = vmatpush.msra.mxu0 %v315
    %1529 = vmatpush.msra.mxu0 %v311
    %1530 = vmatpush.msra.mxu0 %v307
    %1531 = vmatpush.msra.mxu0 %v303
    %1532 = vmatpush.msra.mxu0 %v299
    %1533 = vmatpush.msra.mxu0 %v295
    %1534 = vmatpush.msra.mxu0 %v291
    %1535 = vmatpush.msra.mxu0 %v287
    %1536 = vmatpush.msra.mxu0 %v283
    %1537 = vmatpush.msra.mxu0 %v279
    %1538 = vmatpush.msra.mxu0 %v275
    %1539 = vmatpush.msra.mxu0 %v271
    %1540 = vmatpush.msra.mxu0 %v267
    %1541 = vmatpush.msra.mxu0 %v263
    %1542 = vmatpush.msra.mxu0 %v259
    %1543 = vmatmul.f32.gmra.mxu0 %v1279
    %v1544 = vpop.f32.mrf.mxu0
    %v1545 = vadd.f32 %v1525, %v1544
    %1546 = vdwg.mxu0
    %v1547 = vtanh.pop %v1425
    %v1548 = vmul.f32 %v1547, 0.5
    %v1549 = vadd.f32 %v1548, 0.5
    %v1550 = vtanh.pop %v1465
    %v1551 = vmul.f32 %v1550, 0.5
    %v1552 = vadd.f32 %v1551, 0.5
    %v1553 = vtanh.pop %v1505
    %v1554 = vtanh.pop %v1545
    %v1555 = vmul.f32 %v1554, 0.5
    %v1556 = vadd.f32 %v1555, 0.5
    %v1557 = vmul.f32 %v1552, %v1277
    %v1558 = vmul.f32 %v1549, %v1553
    %v1559 = vadd.f32 %v1557, %v1558
    %v1560 = vtanh.pop %v1559
    %v1561 = vmul.f32 %v1556, %v1560
    %1562 = vst [vmem:[#allocation3 + $0x3] sm:$0x1] %v1561
    %s1563 = scalar_lea.vmem [#allocation2], 5
    %v1564 = vld [vmem:[%s1563] ss:$8 sm:$0xf]
    %v1566 = vperm.slane %v1564, 0
    %v1567 = vperm.slane %v1564, 1
    %v1568 = vperm.slane %v1564, 2
    %v1569 = vperm.slane %v1564, 3
    %1574 = vmatpush.msra.mxu0 %v188
    %1575 = vmatpush.msra.mxu0 %v184
    %1576 = vmatpush.msra.mxu0 %v180
    %1577 = vmatpush.msra.mxu0 %v176
    %1578 = vmatpush.msra.mxu0 %v172
    %1579 = vmatpush.msra.mxu0 %v168
    %1580 = vmatpush.msra.mxu0 %v164
    %1581 = vmatpush.msra.mxu0 %v160
    %1582 = vmatpush.msra.mxu0 %v156
    %1583 = vmatpush.msra.mxu0 %v152
    %1584 = vmatpush.msra.mxu0 %v148
    %1585 = vmatpush.msra.mxu0 %v144
    %1586 = vmatpush.msra.mxu0 %v140
    %1587 = vmatpush.msra.mxu0 %v136
    %1588 = vmatpush.msra.mxu0 %v132
    %1589 = vmatpush.msra.mxu0 %v128
    %1590 = vmatmul.f32.gmra.mxu0 %v1386
    %v1591 = vpop.f32.mrf.mxu0
    %v1592 = vadd.f32 %v1566, %v1591
    %1593 = vdwg.mxu0
    %1594 = vmatpush.msra.mxu0 %v189
    %1595 = vmatpush.msra.mxu0 %v185
    %1596 = vmatpush.msra.mxu0 %v181
    %1597 = vmatpush.msra.mxu0 %v177
    %1598 = vmatpush.msra.mxu0 %v173
    %1599 = vmatpush.msra.mxu0 %v169
    %1600 = vmatpush.msra.mxu0 %v165
    %1601 = vmatpush.msra.mxu0 %v161
    %1602 = vmatpush.msra.mxu0 %v157
    %1603 = vmatpush.msra.mxu0 %v153
    %1604 = vmatpush.msra.mxu0 %v149
    %1605 = vmatpush.msra.mxu0 %v145
    %1606 = vmatpush.msra.mxu0 %v141
    %1607 = vmatpush.msra.mxu0 %v137
    %1608 = vmatpush.msra.mxu0 %v133
    %1609 = vmatpush.msra.mxu0 %v129
    %1610 = vmatmul.f32.gmra.mxu0 %v1386
    %v1611 = vpop.f32.mrf.mxu0
    %v1612 = vadd.f32 %v1567, %v1611
    %1613 = vdwg.mxu0
    %1614 = vmatpush.msra.mxu0 %v190
    %1615 = vmatpush.msra.mxu0 %v186
    %1616 = vmatpush.msra.mxu0 %v182
    %1617 = vmatpush.msra.mxu0 %v178
    %1618 = vmatpush.msra.mxu0 %v174
    %1619 = vmatpush.msra.mxu0 %v170
    %1620 = vmatpush.msra.mxu0 %v166
    %1621 = vmatpush.msra.mxu0 %v162
    %1622 = vmatpush.msra.mxu0 %v158
    %1623 = vmatpush.msra.mxu0 %v154
    %1624 = vmatpush.msra.mxu0 %v150
    %1625 = vmatpush.msra.mxu0 %v146
    %1626 = vmatpush.msra.mxu0 %v142
    %1627 = vmatpush.msra.mxu0 %v138
    %1628 = vmatpush.msra.mxu0 %v134
    %1629 = vmatpush.msra.mxu0 %v130
    %1630 = vmatmul.f32.gmra.mxu0 %v1386
    %v1631 = vpop.f32.mrf.mxu0
    %v1632 = vadd.f32 %v1568, %v1631
    %1633 = vdwg.mxu0
    %1634 = vmatpush.msra.mxu0 %v191
    %1635 = vmatpush.msra.mxu0 %v187
    %1636 = vmatpush.msra.mxu0 %v183
    %1637 = vmatpush.msra.mxu0 %v179
    %1638 = vmatpush.msra.mxu0 %v175
    %1639 = vmatpush.msra.mxu0 %v171
    %1640 = vmatpush.msra.mxu0 %v167
    %1641 = vmatpush.msra.mxu0 %v163
    %1642 = vmatpush.msra.mxu0 %v159
    %1643 = vmatpush.msra.mxu0 %v155
    %1644 = vmatpush.msra.mxu0 %v151
    %1645 = vmatpush.msra.mxu0 %v147
    %1646 = vmatpush.msra.mxu0 %v143
    %1647 = vmatpush.msra.mxu0 %v139
    %1648 = vmatpush.msra.mxu0 %v135
    %1649 = vmatpush.msra.mxu0 %v131
    %1650 = vmatmul.f32.gmra.mxu0 %v1386
    %v1651 = vpop.f32.mrf.mxu0
    %v1652 = vadd.f32 %v1569, %v1651
    %1653 = vdwg.mxu0
    %v1654 = vtanh.pop %v1592
    %v1655 = vmul.f32 %v1654, 0.5
    %v1656 = vadd.f32 %v1655, 0.5
    %v1657 = vtanh.pop %v1612
    %v1658 = vmul.f32 %v1657, 0.5
    %v1659 = vadd.f32 %v1658, 0.5
    %v1660 = vtanh.pop %v1632
    %v1661 = vtanh.pop %v1652
    %v1662 = vmul.f32 %v1661, 0.5
    %v1663 = vadd.f32 %v1662, 0.5
    %v1664 = vmul.f32 %v1659, %v1384
    %v1665 = vmul.f32 %v1656, %v1660
    %v1666 = vadd.f32 %v1664, %v1665
    %v1667 = vtanh.pop %v1666
    %v1668 = vmul.f32 %v1663, %v1667
    %1669 = vmatpush.msra.mxu0 %v252
    %1670 = vmatpush.msra.mxu0 %v248
    %1671 = vmatpush.msra.mxu0 %v244
    %1672 = vmatpush.msra.mxu0 %v240
    %1673 = vmatpush.msra.mxu0 %v236
    %1674 = vmatpush.msra.mxu0 %v232
    %1675 = vmatpush.msra.mxu0 %v228
    %1676 = vmatpush.msra.mxu0 %v224
    %1677 = vmatpush.msra.mxu0 %v220
    %1678 = vmatpush.msra.mxu0 %v216
    %1679 = vmatpush.msra.mxu0 %v212
    %1680 = vmatpush.msra.mxu0 %v208
    %1681 = vmatpush.msra.mxu0 %v204
    %1682 = vmatpush.msra.mxu0 %v200
    %1683 = vmatpush.msra.mxu0 %v196
    %1684 = vmatpush.msra.mxu0 %v192
    %1685 = vmatmul.f32.gmra.mxu0 %v1386
    %v1686 = vpop.f32.mrf.mxu0
    %v1687 = vadd.f32 %v533, %v1686
    %1688 = vdwg.mxu0
    %1689 = vmatpush.msra.mxu0 %v316
    %1690 = vmatpush.msra.mxu0 %v312
    %1691 = vmatpush.msra.mxu0 %v308
    %1692 = vmatpush.msra.mxu0 %v304
    %1693 = vmatpush.msra.mxu0 %v300
    %1694 = vmatpush.msra.mxu0 %v296
    %1695 = vmatpush.msra.mxu0 %v292
    %1696 = vmatpush.msra.mxu0 %v288
    %1697 = vmatpush.msra.mxu0 %v284
    %1698 = vmatpush.msra.mxu0 %v280
    %1699 = vmatpush.msra.mxu0 %v276
    %1700 = vmatpush.msra.mxu0 %v272
    %1701 = vmatpush.msra.mxu0 %v268
    %1702 = vmatpush.msra.mxu0 %v264
    %1703 = vmatpush.msra.mxu0 %v260
    %1704 = vmatpush.msra.mxu0 %v256
    %1705 = vmatmul.f32.gmra.mxu0 %v1561
    %v1706 = vpop.f32.mrf.mxu0
    %v1707 = vadd.f32 %v1687, %v1706
    %1708 = vdwg.mxu0
    %1709 = vmatpush.msra.mxu0 %v253
    %1710 = vmatpush.msra.mxu0 %v249
    %1711 = vmatpush.msra.mxu0 %v245
    %1712 = vmatpush.msra.mxu0 %v241
    %1713 = vmatpush.msra.mxu0 %v237
    %1714 = vmatpush.msra.mxu0 %v233
    %1715 = vmatpush.msra.mxu0 %v229
    %1716 = vmatpush.msra.mxu0 %v225
    %1717 = vmatpush.msra.mxu0 %v221
    %1718 = vmatpush.msra.mxu0 %v217
    %1719 = vmatpush.msra.mxu0 %v213
    %1720 = vmatpush.msra.mxu0 %v209
    %1721 = vmatpush.msra.mxu0 %v205
    %1722 = vmatpush.msra.mxu0 %v201
    %1723 = vmatpush.msra.mxu0 %v197
    %1724 = vmatpush.msra.mxu0 %v193
    %1725 = vmatmul.f32.gmra.mxu0 %v1386
    %v1726 = vpop.f32.mrf.mxu0
    %v1727 = vadd.f32 %v534, %v1726
    %1728 = vdwg.mxu0
    %1729 = vmatpush.msra.mxu0 %v317
    %1730 = vmatpush.msra.mxu0 %v313
    %1731 = vmatpush.msra.mxu0 %v309
    %1732 = vmatpush.msra.mxu0 %v305
    %1733 = vmatpush.msra.mxu0 %v301
    %1734 = vmatpush.msra.mxu0 %v297
    %1735 = vmatpush.msra.mxu0 %v293
    %1736 = vmatpush.msra.mxu0 %v289
    %1737 = vmatpush.msra.mxu0 %v285
    %1738 = vmatpush.msra.mxu0 %v281
    %1739 = vmatpush.msra.mxu0 %v277
    %1740 = vmatpush.msra.mxu0 %v273
    %1741 = vmatpush.msra.mxu0 %v269
    %1742 = vmatpush.msra.mxu0 %v265
    %1743 = vmatpush.msra.mxu0 %v261
    %1744 = vmatpush.msra.mxu0 %v257
    %1745 = vmatmul.f32.gmra.mxu0 %v1561
    %v1746 = vpop.f32.mrf.mxu0
    %v1747 = vadd.f32 %v1727, %v1746
    %1748 = vdwg.mxu0
    %1749 = vmatpush.msra.mxu0 %v254
    %1750 = vmatpush.msra.mxu0 %v250
    %1751 = vmatpush.msra.mxu0 %v246
    %1752 = vmatpush.msra.mxu0 %v242
    %1753 = vmatpush.msra.mxu0 %v238
    %1754 = vmatpush.msra.mxu0 %v234
    %1755 = vmatpush.msra.mxu0 %v230
    %1756 = vmatpush.msra.mxu0 %v226
    %1757 = vmatpush.msra.mxu0 %v222
    %1758 = vmatpush.msra.mxu0 %v218
    %1759 = vmatpush.msra.mxu0 %v214
    %1760 = vmatpush.msra.mxu0 %v210
    %1761 = vmatpush.msra.mxu0 %v206
    %1762 = vmatpush.msra.mxu0 %v202
    %1763 = vmatpush.msra.mxu0 %v198
    %1764 = vmatpush.msra.mxu0 %v194
    %1765 = vmatmul.f32.gmra.mxu0 %v1386
    %v1766 = vpop.f32.mrf.mxu0
    %v1767 = vadd.f32 %v535, %v1766
    %1768 = vdwg.mxu0
    %1769 = vmatpush.msra.mxu0 %v318
    %1770 = vmatpush.msra.mxu0 %v314
    %1771 = vmatpush.msra.mxu0 %v310
    %1772 = vmatpush.msra.mxu0 %v306
    %1773 = vmatpush.msra.mxu0 %v302
    %1774 = vmatpush.msra.mxu0 %v298
    %1775 = vmatpush.msra.mxu0 %v294
    %1776 = vmatpush.msra.mxu0 %v290
    %1777 = vmatpush.msra.mxu0 %v286
    %1778 = vmatpush.msra.mxu0 %v282
    %1779 = vmatpush.msra.mxu0 %v278
    %1780 = vmatpush.msra.mxu0 %v274
    %1781 = vmatpush.msra.mxu0 %v270
    %1782 = vmatpush.msra.mxu0 %v266
    %1783 = vmatpush.msra.mxu0 %v262
    %1784 = vmatpush.msra.mxu0 %v258
    %1785 = vmatmul.f32.gmra.mxu0 %v1561
    %v1786 = vpop.f32.mrf.mxu0
    %v1787 = vadd.f32 %v1767, %v1786
    %1788 = vdwg.mxu0
    %1789 = vmatpush.msra.mxu0 %v255
    %1790 = vmatpush.msra.mxu0 %v251
    %1791 = vmatpush.msra.mxu0 %v247
    %1792 = vmatpush.msra.mxu0 %v243
    %1793 = vmatpush.msra.mxu0 %v239
    %1794 = vmatpush.msra.mxu0 %v235
    %1795 = vmatpush.msra.mxu0 %v231
    %1796 = vmatpush.msra.mxu0 %v227
    %1797 = vmatpush.msra.mxu0 %v223
    %1798 = vmatpush.msra.mxu0 %v219
    %1799 = vmatpush.msra.mxu0 %v215
    %1800 = vmatpush.msra.mxu0 %v211
    %1801 = vmatpush.msra.mxu0 %v207
    %1802 = vmatpush.msra.mxu0 %v203
    %1803 = vmatpush.msra.mxu0 %v199
    %1804 = vmatpush.msra.mxu0 %v195
    %1805 = vmatmul.f32.gmra.mxu0 %v1386
    %v1806 = vpop.f32.mrf.mxu0
    %v1807 = vadd.f32 %v536, %v1806
    %1808 = vdwg.mxu0
    %1809 = vmatpush.msra.mxu0 %v319
    %1810 = vmatpush.msra.mxu0 %v315
    %1811 = vmatpush.msra.mxu0 %v311
    %1812 = vmatpush.msra.mxu0 %v307
    %1813 = vmatpush.msra.mxu0 %v303
    %1814 = vmatpush.msra.mxu0 %v299
    %1815 = vmatpush.msra.mxu0 %v295
    %1816 = vmatpush.msra.mxu0 %v291
    %1817 = vmatpush.msra.mxu0 %v287
    %1818 = vmatpush.msra.mxu0 %v283
    %1819 = vmatpush.msra.mxu0 %v279
    %1820 = vmatpush.msra.mxu0 %v275
    %1821 = vmatpush.msra.mxu0 %v271
    %1822 = vmatpush.msra.mxu0 %v267
    %1823 = vmatpush.msra.mxu0 %v263
    %1824 = vmatpush.msra.mxu0 %v259
    %1825 = vmatmul.f32.gmra.mxu0 %v1561
    %v1826 = vpop.f32.mrf.mxu0
    %v1827 = vadd.f32 %v1807, %v1826
    %1828 = vdwg.mxu0
    %v1829 = vtanh.pop %v1707
    %v1830 = vmul.f32 %v1829, 0.5
    %v1831 = vadd.f32 %v1830, 0.5
    %v1832 = vtanh.pop %v1747
    %v1833 = vmul.f32 %v1832, 0.5
    %v1834 = vadd.f32 %v1833, 0.5
    %v1835 = vtanh.pop %v1787
    %v1836 = vtanh.pop %v1827
    %v1837 = vmul.f32 %v1836, 0.5
    %v1838 = vadd.f32 %v1837, 0.5
    %v1839 = vmul.f32 %v1834, %v1559
    %v1840 = vmul.f32 %v1831, %v1835
    %v1841 = vadd.f32 %v1839, %v1840
    %v1842 = vtanh.pop %v1841
    %v1843 = vmul.f32 %v1838, %v1842
    %1844 = vst [vmem:[#allocation3 + $0x4] sm:$0x1] %v1843
    %s1845 = scalar_lea.vmem [#allocation2], 6
    %v1846 = vld [vmem:[%s1845] ss:$8 sm:$0xf]
    %v1848 = vperm.slane %v1846, 0
    %v1849 = vperm.slane %v1846, 1
    %v1850 = vperm.slane %v1846, 2
    %v1851 = vperm.slane %v1846, 3
    %1856 = vmatpush.msra.mxu0 %v188
    %1857 = vmatpush.msra.mxu0 %v184
    %1858 = vmatpush.msra.mxu0 %v180
    %1859 = vmatpush.msra.mxu0 %v176
    %1860 = vmatpush.msra.mxu0 %v172
    %1861 = vmatpush.msra.mxu0 %v168
    %1862 = vmatpush.msra.mxu0 %v164
    %1863 = vmatpush.msra.mxu0 %v160
    %1864 = vmatpush.msra.mxu0 %v156
    %1865 = vmatpush.msra.mxu0 %v152
    %1866 = vmatpush.msra.mxu0 %v148
    %1867 = vmatpush.msra.mxu0 %v144
    %1868 = vmatpush.msra.mxu0 %v140
    %1869 = vmatpush.msra.mxu0 %v136
    %1870 = vmatpush.msra.mxu0 %v132
    %1871 = vmatpush.msra.mxu0 %v128
    %1872 = vmatmul.f32.gmra.mxu0 %v1668
    %v1873 = vpop.f32.mrf.mxu0
    %v1874 = vadd.f32 %v1848, %v1873
    %1875 = vdwg.mxu0
    %1876 = vmatpush.msra.mxu0 %v189
    %1877 = vmatpush.msra.mxu0 %v185
    %1878 = vmatpush.msra.mxu0 %v181
    %1879 = vmatpush.msra.mxu0 %v177
    %1880 = vmatpush.msra.mxu0 %v173
    %1881 = vmatpush.msra.mxu0 %v169
    %1882 = vmatpush.msra.mxu0 %v165
    %1883 = vmatpush.msra.mxu0 %v161
    %1884 = vmatpush.msra.mxu0 %v157
    %1885 = vmatpush.msra.mxu0 %v153
    %1886 = vmatpush.msra.mxu0 %v149
    %1887 = vmatpush.msra.mxu0 %v145
    %1888 = vmatpush.msra.mxu0 %v141
    %1889 = vmatpush.msra.mxu0 %v137
    %1890 = vmatpush.msra.mxu0 %v133
    %1891 = vmatpush.msra.mxu0 %v129
    %1892 = vmatmul.f32.gmra.mxu0 %v1668
    %v1893 = vpop.f32.mrf.mxu0
    %v1894 = vadd.f32 %v1849, %v1893
    %1895 = vdwg.mxu0
    %1896 = vmatpush.msra.mxu0 %v190
    %1897 = vmatpush.msra.mxu0 %v186
    %1898 = vmatpush.msra.mxu0 %v182
    %1899 = vmatpush.msra.mxu0 %v178
    %1900 = vmatpush.msra.mxu0 %v174
    %1901 = vmatpush.msra.mxu0 %v170
    %1902 = vmatpush.msra.mxu0 %v166
    %1903 = vmatpush.msra.mxu0 %v162
    %1904 = vmatpush.msra.mxu0 %v158
    %1905 = vmatpush.msra.mxu0 %v154
    %1906 = vmatpush.msra.mxu0 %v150
    %1907 = vmatpush.msra.mxu0 %v146
    %1908 = vmatpush.msra.mxu0 %v142
    %1909 = vmatpush.msra.mxu0 %v138
    %1910 = vmatpush.msra.mxu0 %v134
    %1911 = vmatpush.msra.mxu0 %v130
    %1912 = vmatmul.f32.gmra.mxu0 %v1668
    %v1913 = vpop.f32.mrf.mxu0
    %v1914 = vadd.f32 %v1850, %v1913
    %1915 = vdwg.mxu0
    %1916 = vmatpush.msra.mxu0 %v191
    %1917 = vmatpush.msra.mxu0 %v187
    %1918 = vmatpush.msra.mxu0 %v183
    %1919 = vmatpush.msra.mxu0 %v179
    %1920 = vmatpush.msra.mxu0 %v175
    %1921 = vmatpush.msra.mxu0 %v171
    %1922 = vmatpush.msra.mxu0 %v167
    %1923 = vmatpush.msra.mxu0 %v163
    %1924 = vmatpush.msra.mxu0 %v159
    %1925 = vmatpush.msra.mxu0 %v155
    %1926 = vmatpush.msra.mxu0 %v151
    %1927 = vmatpush.msra.mxu0 %v147
    %1928 = vmatpush.msra.mxu0 %v143
    %1929 = vmatpush.msra.mxu0 %v139
    %1930 = vmatpush.msra.mxu0 %v135
    %1931 = vmatpush.msra.mxu0 %v131
    %1932 = vmatmul.f32.gmra.mxu0 %v1668
    %v1933 = vpop.f32.mrf.mxu0
    %v1934 = vadd.f32 %v1851, %v1933
    %1935 = vdwg.mxu0
    %v1936 = vtanh.pop %v1874
    %v1937 = vmul.f32 %v1936, 0.5
    %v1938 = vadd.f32 %v1937, 0.5
    %v1939 = vtanh.pop %v1894
    %v1940 = vmul.f32 %v1939, 0.5
    %v1941 = vadd.f32 %v1940, 0.5
    %v1942 = vtanh.pop %v1914
    %v1943 = vtanh.pop %v1934
    %v1944 = vmul.f32 %v1943, 0.5
    %v1945 = vadd.f32 %v1944, 0.5
    %v1946 = vmul.f32 %v1941, %v1666
    %v1947 = vmul.f32 %v1938, %v1942
    %v1948 = vadd.f32 %v1946, %v1947
    %v1949 = vtanh.pop %v1948
    %v1950 = vmul.f32 %v1945, %v1949
    %1951 = vmatpush.msra.mxu0 %v252
    %1952 = vmatpush.msra.mxu0 %v248
    %1953 = vmatpush.msra.mxu0 %v244
    %1954 = vmatpush.msra.mxu0 %v240
    %1955 = vmatpush.msra.mxu0 %v236
    %1956 = vmatpush.msra.mxu0 %v232
    %1957 = vmatpush.msra.mxu0 %v228
    %1958 = vmatpush.msra.mxu0 %v224
    %1959 = vmatpush.msra.mxu0 %v220
    %1960 = vmatpush.msra.mxu0 %v216
    %1961 = vmatpush.msra.mxu0 %v212
    %1962 = vmatpush.msra.mxu0 %v208
    %1963 = vmatpush.msra.mxu0 %v204
    %1964 = vmatpush.msra.mxu0 %v200
    %1965 = vmatpush.msra.mxu0 %v196
    %1966 = vmatpush.msra.mxu0 %v192
    %1967 = vmatmul.f32.gmra.mxu0 %v1668
    %v1968 = vpop.f32.mrf.mxu0
    %v1969 = vadd.f32 %v533, %v1968
    %1970 = vdwg.mxu0
    %1971 = vmatpush.msra.mxu0 %v316
    %1972 = vmatpush.msra.mxu0 %v312
    %1973 = vmatpush.msra.mxu0 %v308
    %1974 = vmatpush.msra.mxu0 %v304
    %1975 = vmatpush.msra.mxu0 %v300
    %1976 = vmatpush.msra.mxu0 %v296
    %1977 = vmatpush.msra.mxu0 %v292
    %1978 = vmatpush.msra.mxu0 %v288
    %1979 = vmatpush.msra.mxu0 %v284
    %1980 = vmatpush.msra.mxu0 %v280
    %1981 = vmatpush.msra.mxu0 %v276
    %1982 = vmatpush.msra.mxu0 %v272
    %1983 = vmatpush.msra.mxu0 %v268
    %1984 = vmatpush.msra.mxu0 %v264
    %1985 = vmatpush.msra.mxu0 %v260
    %1986 = vmatpush.msra.mxu0 %v256
    %1987 = vmatmul.f32.gmra.mxu0 %v1843
    %v1988 = vpop.f32.mrf.mxu0
    %v1989 = vadd.f32 %v1969, %v1988
    %1990 = vdwg.mxu0
    %1991 = vmatpush.msra.mxu0 %v253
    %1992 = vmatpush.msra.mxu0 %v249
    %1993 = vmatpush.msra.mxu0 %v245
    %1994 = vmatpush.msra.mxu0 %v241
    %1995 = vmatpush.msra.mxu0 %v237
    %1996 = vmatpush.msra.mxu0 %v233
    %1997 = vmatpush.msra.mxu0 %v229
    %1998 = vmatpush.msra.mxu0 %v225
    %1999 = vmatpush.msra.mxu0 %v221
    %2000 = vmatpush.msra.mxu0 %v217
    %2001 = vmatpush.msra.mxu0 %v213
    %2002 = vmatpush.msra.mxu0 %v209
    %2003 = vmatpush.msra.mxu0 %v205
    %2004 = vmatpush.msra.mxu0 %v201
    %2005 = vmatpush.msra.mxu0 %v197
    %2006 = vmatpush.msra.mxu0 %v193
    %2007 = vmatmul.f32.gmra.mxu0 %v1668
    %v2008 = vpop.f32.mrf.mxu0
    %v2009 = vadd.f32 %v534, %v2008
    %2010 = vdwg.mxu0
    %2011 = vmatpush.msra.mxu0 %v317
    %2012 = vmatpush.msra.mxu0 %v313
    %2013 = vmatpush.msra.mxu0 %v309
    %2014 = vmatpush.msra.mxu0 %v305
    %2015 = vmatpush.msra.mxu0 %v301
    %2016 = vmatpush.msra.mxu0 %v297
    %2017 = vmatpush.msra.mxu0 %v293
    %2018 = vmatpush.msra.mxu0 %v289
    %2019 = vmatpush.msra.mxu0 %v285
    %2020 = vmatpush.msra.mxu0 %v281
    %2021 = vmatpush.msra.mxu0 %v277
    %2022 = vmatpush.msra.mxu0 %v273
    %2023 = vmatpush.msra.mxu0 %v269
    %2024 = vmatpush.msra.mxu0 %v265
    %2025 = vmatpush.msra.mxu0 %v261
    %2026 = vmatpush.msra.mxu0 %v257
    %2027 = vmatmul.f32.gmra.mxu0 %v1843
    %v2028 = vpop.f32.mrf.mxu0
    %v2029 = vadd.f32 %v2009, %v2028
    %2030 = vdwg.mxu0
    %2031 = vmatpush.msra.mxu0 %v254
    %2032 = vmatpush.msra.mxu0 %v250
    %2033 = vmatpush.msra.mxu0 %v246
    %2034 = vmatpush.msra.mxu0 %v242
    %2035 = vmatpush.msra.mxu0 %v238
    %2036 = vmatpush.msra.mxu0 %v234
    %2037 = vmatpush.msra.mxu0 %v230
    %2038 = vmatpush.msra.mxu0 %v226
    %2039 = vmatpush.msra.mxu0 %v222
    %2040 = vmatpush.msra.mxu0 %v218
    %2041 = vmatpush.msra.mxu0 %v214
    %2042 = vmatpush.msra.mxu0 %v210
    %2043 = vmatpush.msra.mxu0 %v206
    %2044 = vmatpush.msra.mxu0 %v202
    %2045 = vmatpush.msra.mxu0 %v198
    %2046 = vmatpush.msra.mxu0 %v194
    %2047 = vmatmul.f32.gmra.mxu0 %v1668
    %v2048 = vpop.f32.mrf.mxu0
    %v2049 = vadd.f32 %v535, %v2048
    %2050 = vdwg.mxu0
    %2051 = vmatpush.msra.mxu0 %v318
    %2052 = vmatpush.msra.mxu0 %v314
    %2053 = vmatpush.msra.mxu0 %v310
    %2054 = vmatpush.msra.mxu0 %v306
    %2055 = vmatpush.msra.mxu0 %v302
    %2056 = vmatpush.msra.mxu0 %v298
    %2057 = vmatpush.msra.mxu0 %v294
    %2058 = vmatpush.msra.mxu0 %v290
    %2059 = vmatpush.msra.mxu0 %v286
    %2060 = vmatpush.msra.mxu0 %v282
    %2061 = vmatpush.msra.mxu0 %v278
    %2062 = vmatpush.msra.mxu0 %v274
    %2063 = vmatpush.msra.mxu0 %v270
    %2064 = vmatpush.msra.mxu0 %v266
    %2065 = vmatpush.msra.mxu0 %v262
    %2066 = vmatpush.msra.mxu0 %v258
    %2067 = vmatmul.f32.gmra.mxu0 %v1843
    %v2068 = vpop.f32.mrf.mxu0
    %v2069 = vadd.f32 %v2049, %v2068
    %2070 = vdwg.mxu0
    %2071 = vmatpush.msra.mxu0 %v255
    %2072 = vmatpush.msra.mxu0 %v251
    %2073 = vmatpush.msra.mxu0 %v247
    %2074 = vmatpush.msra.mxu0 %v243
    %2075 = vmatpush.msra.mxu0 %v239
    %2076 = vmatpush.msra.mxu0 %v235
    %2077 = vmatpush.msra.mxu0 %v231
    %2078 = vmatpush.msra.mxu0 %v227
    %2079 = vmatpush.msra.mxu0 %v223
    %2080 = vmatpush.msra.mxu0 %v219
    %2081 = vmatpush.msra.mxu0 %v215
    %2082 = vmatpush.msra.mxu0 %v211
    %2083 = vmatpush.msra.mxu0 %v207
    %2084 = vmatpush.msra.mxu0 %v203
    %2085 = vmatpush.msra.mxu0 %v199
    %2086 = vmatpush.msra.mxu0 %v195
    %2087 = vmatmul.f32.gmra.mxu0 %v1668
    %v2088 = vpop.f32.mrf.mxu0
    %v2089 = vadd.f32 %v536, %v2088
    %2090 = vdwg.mxu0
    %2091 = vmatpush.msra.mxu0 %v319
    %2092 = vmatpush.msra.mxu0 %v315
    %2093 = vmatpush.msra.mxu0 %v311
    %2094 = vmatpush.msra.mxu0 %v307
    %2095 = vmatpush.msra.mxu0 %v303
    %2096 = vmatpush.msra.mxu0 %v299
    %2097 = vmatpush.msra.mxu0 %v295
    %2098 = vmatpush.msra.mxu0 %v291
    %2099 = vmatpush.msra.mxu0 %v287
    %2100 = vmatpush.msra.mxu0 %v283
    %2101 = vmatpush.msra.mxu0 %v279
    %2102 = vmatpush.msra.mxu0 %v275
    %2103 = vmatpush.msra.mxu0 %v271
    %2104 = vmatpush.msra.mxu0 %v267
    %2105 = vmatpush.msra.mxu0 %v263
    %2106 = vmatpush.msra.mxu0 %v259
    %2107 = vmatmul.f32.gmra.mxu0 %v1843
    %v2108 = vpop.f32.mrf.mxu0
    %v2109 = vadd.f32 %v2089, %v2108
    %2110 = vdwg.mxu0
    %v2111 = vtanh.pop %v1989
    %v2112 = vmul.f32 %v2111, 0.5
    %v2113 = vadd.f32 %v2112, 0.5
    %v2114 = vtanh.pop %v2029
    %v2115 = vmul.f32 %v2114, 0.5
    %v2116 = vadd.f32 %v2115, 0.5
    %v2117 = vtanh.pop %v2069
    %v2118 = vtanh.pop %v2109
    %v2119 = vmul.f32 %v2118, 0.5
    %v2120 = vadd.f32 %v2119, 0.5
    %v2121 = vmul.f32 %v2116, %v1841
    %v2122 = vmul.f32 %v2113, %v2117
    %v2123 = vadd.f32 %v2121, %v2122
    %v2124 = vtanh.pop %v2123
    %v2125 = vmul.f32 %v2120, %v2124
    %2126 = vst [vmem:[#allocation3 + $0x5] sm:$0x1] %v2125
    %s2127 = scalar_lea.vmem [#allocation2], 7
    %v2128 = vld [vmem:[%s2127] ss:$8 sm:$0xf]
    %v2130 = vperm.slane %v2128, 0
    %v2131 = vperm.slane %v2128, 1
    %v2132 = vperm.slane %v2128, 2
    %v2133 = vperm.slane %v2128, 3
    %2138 = vmatpush.msra.mxu0 %v188
    %2139 = vmatpush.msra.mxu0 %v184
    %2140 = vmatpush.msra.mxu0 %v180
    %2141 = vmatpush.msra.mxu0 %v176
    %2142 = vmatpush.msra.mxu0 %v172
    %2143 = vmatpush.msra.mxu0 %v168
    %2144 = vmatpush.msra.mxu0 %v164
    %2145 = vmatpush.msra.mxu0 %v160
    %2146 = vmatpush.msra.mxu0 %v156
    %2147 = vmatpush.msra.mxu0 %v152
    %2148 = vmatpush.msra.mxu0 %v148
    %2149 = vmatpush.msra.mxu0 %v144
    %2150 = vmatpush.msra.mxu0 %v140
    %2151 = vmatpush.msra.mxu0 %v136
    %2152 = vmatpush.msra.mxu0 %v132
    %2153 = vmatpush.msra.mxu0 %v128
    %2154 = vmatmul.f32.gmra.mxu0 %v1950
    %v2155 = vpop.f32.mrf.mxu0
    %v2156 = vadd.f32 %v2130, %v2155
    %2157 = vdwg.mxu0
    %2158 = vmatpush.msra.mxu0 %v189
    %2159 = vmatpush.msra.mxu0 %v185
    %2160 = vmatpush.msra.mxu0 %v181
    %2161 = vmatpush.msra.mxu0 %v177
    %2162 = vmatpush.msra.mxu0 %v173
    %2163 = vmatpush.msra.mxu0 %v169
    %2164 = vmatpush.msra.mxu0 %v165
    %2165 = vmatpush.msra.mxu0 %v161
    %2166 = vmatpush.msra.mxu0 %v157
    %2167 = vmatpush.msra.mxu0 %v153
    %2168 = vmatpush.msra.mxu0 %v149
    %2169 = vmatpush.msra.mxu0 %v145
    %2170 = vmatpush.msra.mxu0 %v141
    %2171 = vmatpush.msra.mxu0 %v137
    %2172 = vmatpush.msra.mxu0 %v133
    %2173 = vmatpush.msra.mxu0 %v129
    %2174 = vmatmul.f32.gmra.mxu0 %v1950
    %v2175 = vpop.f32.mrf.mxu0
    %v2176 = vadd.f32 %v2131, %v2175
    %2177 = vdwg.mxu0
    %2178 = vmatpush.msra.mxu0 %v190
    %2179 = vmatpush.msra.mxu0 %v186
    %2180 = vmatpush.msra.mxu0 %v182
    %2181 = vmatpush.msra.mxu0 %v178
    %2182 = vmatpush.msra.mxu0 %v174
    %2183 = vmatpush.msra.mxu0 %v170
    %2184 = vmatpush.msra.mxu0 %v166
    %2185 = vmatpush.msra.mxu0 %v162
    %2186 = vmatpush.msra.mxu0 %v158
    %2187 = vmatpush.msra.mxu0 %v154
    %2188 = vmatpush.msra.mxu0 %v150
    %2189 = vmatpush.msra.mxu0 %v146
    %2190 = vmatpush.msra.mxu0 %v142
    %2191 = vmatpush.msra.mxu0 %v138
    %2192 = vmatpush.msra.mxu0 %v134
    %2193 = vmatpush.msra.mxu0 %v130
    %2194 = vmatmul.f32.gmra.mxu0 %v1950
    %v2195 = vpop.f32.mrf.mxu0
    %v2196 = vadd.f32 %v2132, %v2195
    %2197 = vdwg.mxu0
    %2198 = vmatpush.msra.mxu0 %v191
    %2199 = vmatpush.msra.mxu0 %v187
    %2200 = vmatpush.msra.mxu0 %v183
    %2201 = vmatpush.msra.mxu0 %v179
    %2202 = vmatpush.msra.mxu0 %v175
    %2203 = vmatpush.msra.mxu0 %v171
    %2204 = vmatpush.msra.mxu0 %v167
    %2205 = vmatpush.msra.mxu0 %v163
    %2206 = vmatpush.msra.mxu0 %v159
    %2207 = vmatpush.msra.mxu0 %v155
    %2208 = vmatpush.msra.mxu0 %v151
    %2209 = vmatpush.msra.mxu0 %v147
    %2210 = vmatpush.msra.mxu0 %v143
    %2211 = vmatpush.msra.mxu0 %v139
    %2212 = vmatpush.msra.mxu0 %v135
    %2213 = vmatpush.msra.mxu0 %v131
    %2214 = vmatmul.f32.gmra.mxu0 %v1950
    %v2215 = vpop.f32.mrf.mxu0
    %v2216 = vadd.f32 %v2133, %v2215
    %2217 = vdwg.mxu0
    %v2218 = vtanh.pop %v2156
    %v2219 = vmul.f32 %v2218, 0.5
    %v2220 = vadd.f32 %v2219, 0.5
    %v2221 = vtanh.pop %v2176
    %v2222 = vmul.f32 %v2221, 0.5
    %v2223 = vadd.f32 %v2222, 0.5
    %v2224 = vtanh.pop %v2196
    %v2225 = vtanh.pop %v2216
    %v2226 = vmul.f32 %v2225, 0.5
    %v2227 = vadd.f32 %v2226, 0.5
    %v2228 = vmul.f32 %v2223, %v1948
    %v2229 = vmul.f32 %v2220, %v2224
    %v2230 = vadd.f32 %v2228, %v2229
    %v2231 = vtanh.pop %v2230
    %v2232 = vmul.f32 %v2227, %v2231
    %2233 = vmatpush.msra.mxu0 %v252
    %2234 = vmatpush.msra.mxu0 %v248
    %2235 = vmatpush.msra.mxu0 %v244
    %2236 = vmatpush.msra.mxu0 %v240
    %2237 = vmatpush.msra.mxu0 %v236
    %2238 = vmatpush.msra.mxu0 %v232
    %2239 = vmatpush.msra.mxu0 %v228
    %2240 = vmatpush.msra.mxu0 %v224
    %2241 = vmatpush.msra.mxu0 %v220
    %2242 = vmatpush.msra.mxu0 %v216
    %2243 = vmatpush.msra.mxu0 %v212
    %2244 = vmatpush.msra.mxu0 %v208
    %2245 = vmatpush.msra.mxu0 %v204
    %2246 = vmatpush.msra.mxu0 %v200
    %2247 = vmatpush.msra.mxu0 %v196
    %2248 = vmatpush.msra.mxu0 %v192
    %2249 = vmatmul.f32.gmra.mxu0 %v1950
    %v2250 = vpop.f32.mrf.mxu0
    %v2251 = vadd.f32 %v533, %v2250
    %2252 = vdwg.mxu0
    %2253 = vmatpush.msra.mxu0 %v316
    %2254 = vmatpush.msra.mxu0 %v312
    %2255 = vmatpush.msra.mxu0 %v308
    %2256 = vmatpush.msra.mxu0 %v304
    %2257 = vmatpush.msra.mxu0 %v300
    %2258 = vmatpush.msra.mxu0 %v296
    %2259 = vmatpush.msra.mxu0 %v292
    %2260 = vmatpush.msra.mxu0 %v288
    %2261 = vmatpush.msra.mxu0 %v284
    %2262 = vmatpush.msra.mxu0 %v280
    %2263 = vmatpush.msra.mxu0 %v276
    %2264 = vmatpush.msra.mxu0 %v272
    %2265 = vmatpush.msra.mxu0 %v268
    %2266 = vmatpush.msra.mxu0 %v264
    %2267 = vmatpush.msra.mxu0 %v260
    %2268 = vmatpush.msra.mxu0 %v256
    %2269 = vmatmul.f32.gmra.mxu0 %v2125
    %v2270 = vpop.f32.mrf.mxu0
    %v2271 = vadd.f32 %v2251, %v2270
    %2272 = vdwg.mxu0
    %2273 = vmatpush.msra.mxu0 %v253
    %2274 = vmatpush.msra.mxu0 %v249
    %2275 = vmatpush.msra.mxu0 %v245
    %2276 = vmatpush.msra.mxu0 %v241
    %2277 = vmatpush.msra.mxu0 %v237
    %2278 = vmatpush.msra.mxu0 %v233
    %2279 = vmatpush.msra.mxu0 %v229
    %2280 = vmatpush.msra.mxu0 %v225
    %2281 = vmatpush.msra.mxu0 %v221
    %2282 = vmatpush.msra.mxu0 %v217
    %2283 = vmatpush.msra.mxu0 %v213
    %2284 = vmatpush.msra.mxu0 %v209
    %2285 = vmatpush.msra.mxu0 %v205
    %2286 = vmatpush.msra.mxu0 %v201
    %2287 = vmatpush.msra.mxu0 %v197
    %2288 = vmatpush.msra.mxu0 %v193
    %2289 = vmatmul.f32.gmra.mxu0 %v1950
    %v2290 = vpop.f32.mrf.mxu0
    %v2291 = vadd.f32 %v534, %v2290
    %2292 = vdwg.mxu0
    %2293 = vmatpush.msra.mxu0 %v317
    %2294 = vmatpush.msra.mxu0 %v313
    %2295 = vmatpush.msra.mxu0 %v309
    %2296 = vmatpush.msra.mxu0 %v305
    %2297 = vmatpush.msra.mxu0 %v301
    %2298 = vmatpush.msra.mxu0 %v297
    %2299 = vmatpush.msra.mxu0 %v293
    %2300 = vmatpush.msra.mxu0 %v289
    %2301 = vmatpush.msra.mxu0 %v285
    %2302 = vmatpush.msra.mxu0 %v281
    %2303 = vmatpush.msra.mxu0 %v277
    %2304 = vmatpush.msra.mxu0 %v273
    %2305 = vmatpush.msra.mxu0 %v269
    %2306 = vmatpush.msra.mxu0 %v265
    %2307 = vmatpush.msra.mxu0 %v261
    %2308 = vmatpush.msra.mxu0 %v257
    %2309 = vmatmul.f32.gmra.mxu0 %v2125
    %v2310 = vpop.f32.mrf.mxu0
    %v2311 = vadd.f32 %v2291, %v2310
    %2312 = vdwg.mxu0
    %2313 = vmatpush.msra.mxu0 %v254
    %2314 = vmatpush.msra.mxu0 %v250
    %2315 = vmatpush.msra.mxu0 %v246
    %2316 = vmatpush.msra.mxu0 %v242
    %2317 = vmatpush.msra.mxu0 %v238
    %2318 = vmatpush.msra.mxu0 %v234
    %2319 = vmatpush.msra.mxu0 %v230
    %2320 = vmatpush.msra.mxu0 %v226
    %2321 = vmatpush.msra.mxu0 %v222
    %2322 = vmatpush.msra.mxu0 %v218
    %2323 = vmatpush.msra.mxu0 %v214
    %2324 = vmatpush.msra.mxu0 %v210
    %2325 = vmatpush.msra.mxu0 %v206
    %2326 = vmatpush.msra.mxu0 %v202
    %2327 = vmatpush.msra.mxu0 %v198
    %2328 = vmatpush.msra.mxu0 %v194
    %2329 = vmatmul.f32.gmra.mxu0 %v1950
    %v2330 = vpop.f32.mrf.mxu0
    %v2331 = vadd.f32 %v535, %v2330
    %2332 = vdwg.mxu0
    %2333 = vmatpush.msra.mxu0 %v318
    %2334 = vmatpush.msra.mxu0 %v314
    %2335 = vmatpush.msra.mxu0 %v310
    %2336 = vmatpush.msra.mxu0 %v306
    %2337 = vmatpush.msra.mxu0 %v302
    %2338 = vmatpush.msra.mxu0 %v298
    %2339 = vmatpush.msra.mxu0 %v294
    %2340 = vmatpush.msra.mxu0 %v290
    %2341 = vmatpush.msra.mxu0 %v286
    %2342 = vmatpush.msra.mxu0 %v282
    %2343 = vmatpush.msra.mxu0 %v278
    %2344 = vmatpush.msra.mxu0 %v274
    %2345 = vmatpush.msra.mxu0 %v270
    %2346 = vmatpush.msra.mxu0 %v266
    %2347 = vmatpush.msra.mxu0 %v262
    %2348 = vmatpush.msra.mxu0 %v258
    %2349 = vmatmul.f32.gmra.mxu0 %v2125
    %v2350 = vpop.f32.mrf.mxu0
    %v2351 = vadd.f32 %v2331, %v2350
    %2352 = vdwg.mxu0
    %2353 = vmatpush.msra.mxu0 %v255
    %2354 = vmatpush.msra.mxu0 %v251
    %2355 = vmatpush.msra.mxu0 %v247
    %2356 = vmatpush.msra.mxu0 %v243
    %2357 = vmatpush.msra.mxu0 %v239
    %2358 = vmatpush.msra.mxu0 %v235
    %2359 = vmatpush.msra.mxu0 %v231
    %2360 = vmatpush.msra.mxu0 %v227
    %2361 = vmatpush.msra.mxu0 %v223
    %2362 = vmatpush.msra.mxu0 %v219
    %2363 = vmatpush.msra.mxu0 %v215
    %2364 = vmatpush.msra.mxu0 %v211
    %2365 = vmatpush.msra.mxu0 %v207
    %2366 = vmatpush.msra.mxu0 %v203
    %2367 = vmatpush.msra.mxu0 %v199
    %2368 = vmatpush.msra.mxu0 %v195
    %2369 = vmatmul.f32.gmra.mxu0 %v1950
    %v2370 = vpop.f32.mrf.mxu0
    %v2371 = vadd.f32 %v536, %v2370
    %2372 = vdwg.mxu0
    %2373 = vmatpush.msra.mxu0 %v319
    %2374 = vmatpush.msra.mxu0 %v315
    %2375 = vmatpush.msra.mxu0 %v311
    %2376 = vmatpush.msra.mxu0 %v307
    %2377 = vmatpush.msra.mxu0 %v303
    %2378 = vmatpush.msra.mxu0 %v299
    %2379 = vmatpush.msra.mxu0 %v295
    %2380 = vmatpush.msra.mxu0 %v291
    %2381 = vmatpush.msra.mxu0 %v287
    %2382 = vmatpush.msra.mxu0 %v283
    %2383 = vmatpush.msra.mxu0 %v279
    %2384 = vmatpush.msra.mxu0 %v275
    %2385 = vmatpush.msra.mxu0 %v271
    %2386 = vmatpush.msra.mxu0 %v267
    %2387 = vmatpush.msra.mxu0 %v263
    %2388 = vmatpush.msra.mxu0 %v259
    %2389 = vmatmul.f32.gmra.mxu0 %v2125
    %v2390 = vpop.f32.mrf.mxu0
    %v2391 = vadd.f32 %v2371, %v2390
    %2392 = vdwg.mxu0
    %v2393 = vtanh.pop %v2271
    %v2394 = vmul.f32 %v2393, 0.5
    %v2395 = vadd.f32 %v2394, 0.5
    %v2396 = vtanh.pop %v2311
    %v2397 = vmul.f32 %v2396, 0.5
    %v2398 = vadd.f32 %v2397, 0.5
    %v2399 = vtanh.pop %v2351
    %v2400 = vtanh.pop %v2391
    %v2401 = vmul.f32 %v2400, 0.5
    %v2402 = vadd.f32 %v2401, 0.5
    %v2403 = vmul.f32 %v2398, %v2123
    %v2404 = vmul.f32 %v2395, %v2399
    %v2405 = vadd.f32 %v2403, %v2404
    %v2406 = vtanh.pop %v2405
    %v2407 = vmul.f32 %v2402, %v2406
    %2408 = vst [vmem:[#allocation3 + $0x6] sm:$0x1] %v2407
    %2409 = vmatpush.msra.mxu0 %v252
    %2410 = vmatpush.msra.mxu0 %v248
    %2411 = vmatpush.msra.mxu0 %v244
    %2412 = vmatpush.msra.mxu0 %v240
    %2413 = vmatpush.msra.mxu0 %v236
    %2414 = vmatpush.msra.mxu0 %v232
    %2415 = vmatpush.msra.mxu0 %v228
    %2416 = vmatpush.msra.mxu0 %v224
    %2417 = vmatpush.msra.mxu0 %v220
    %2418 = vmatpush.msra.mxu0 %v216
    %2419 = vmatpush.msra.mxu0 %v212
    %2420 = vmatpush.msra.mxu0 %v208
    %2421 = vmatpush.msra.mxu0 %v204
    %2422 = vmatpush.msra.mxu0 %v200
    %2423 = vmatpush.msra.mxu0 %v196
    %2424 = vmatpush.msra.mxu0 %v192
    %2425 = vmatmul.f32.gmra.mxu0 %v2232
    %v2426 = vpop.f32.mrf.mxu0
    %v2427 = vadd.f32 %v533, %v2426
    %2428 = vdwg.mxu0
    %2429 = vmatpush.msra.mxu0 %v316
    %2430 = vmatpush.msra.mxu0 %v312
    %2431 = vmatpush.msra.mxu0 %v308
    %2432 = vmatpush.msra.mxu0 %v304
    %2433 = vmatpush.msra.mxu0 %v300
    %2434 = vmatpush.msra.mxu0 %v296
    %2435 = vmatpush.msra.mxu0 %v292
    %2436 = vmatpush.msra.mxu0 %v288
    %2437 = vmatpush.msra.mxu0 %v284
    %2438 = vmatpush.msra.mxu0 %v280
    %2439 = vmatpush.msra.mxu0 %v276
    %2440 = vmatpush.msra.mxu0 %v272
    %2441 = vmatpush.msra.mxu0 %v268
    %2442 = vmatpush.msra.mxu0 %v264
    %2443 = vmatpush.msra.mxu0 %v260
    %2444 = vmatpush.msra.mxu0 %v256
    %2445 = vmatmul.f32.gmra.mxu0 %v2407
    %v2446 = vpop.f32.mrf.mxu0
    %v2447 = vadd.f32 %v2427, %v2446
    %2448 = vdwg.mxu0
    %2449 = vmatpush.msra.mxu0 %v253
    %2450 = vmatpush.msra.mxu0 %v249
    %2451 = vmatpush.msra.mxu0 %v245
    %2452 = vmatpush.msra.mxu0 %v241
    %2453 = vmatpush.msra.mxu0 %v237
    %2454 = vmatpush.msra.mxu0 %v233
    %2455 = vmatpush.msra.mxu0 %v229
    %2456 = vmatpush.msra.mxu0 %v225
    %2457 = vmatpush.msra.mxu0 %v221
    %2458 = vmatpush.msra.mxu0 %v217
    %2459 = vmatpush.msra.mxu0 %v213
    %2460 = vmatpush.msra.mxu0 %v209
    %2461 = vmatpush.msra.mxu0 %v205
    %2462 = vmatpush.msra.mxu0 %v201
    %2463 = vmatpush.msra.mxu0 %v197
    %2464 = vmatpush.msra.mxu0 %v193
    %2465 = vmatmul.f32.gmra.mxu0 %v2232
    %v2466 = vpop.f32.mrf.mxu0
    %v2467 = vadd.f32 %v534, %v2466
    %2468 = vdwg.mxu0
    %2469 = vmatpush.msra.mxu0 %v317
    %2470 = vmatpush.msra.mxu0 %v313
    %2471 = vmatpush.msra.mxu0 %v309
    %2472 = vmatpush.msra.mxu0 %v305
    %2473 = vmatpush.msra.mxu0 %v301
    %2474 = vmatpush.msra.mxu0 %v297
    %2475 = vmatpush.msra.mxu0 %v293
    %2476 = vmatpush.msra.mxu0 %v289
    %2477 = vmatpush.msra.mxu0 %v285
    %2478 = vmatpush.msra.mxu0 %v281
    %2479 = vmatpush.msra.mxu0 %v277
    %2480 = vmatpush.msra.mxu0 %v273
    %2481 = vmatpush.msra.mxu0 %v269
    %2482 = vmatpush.msra.mxu0 %v265
    %2483 = vmatpush.msra.mxu0 %v261
    %2484 = vmatpush.msra.mxu0 %v257
    %2485 = vmatmul.f32.gmra.mxu0 %v2407
    %v2486 = vpop.f32.mrf.mxu0
    %v2487 = vadd.f32 %v2467, %v2486
    %2488 = vdwg.mxu0
    %2489 = vmatpush.msra.mxu0 %v254
    %2490 = vmatpush.msra.mxu0 %v250
    %2491 = vmatpush.msra.mxu0 %v246
    %2492 = vmatpush.msra.mxu0 %v242
    %2493 = vmatpush.msra.mxu0 %v238
    %2494 = vmatpush.msra.mxu0 %v234
    %2495 = vmatpush.msra.mxu0 %v230
    %2496 = vmatpush.msra.mxu0 %v226
    %2497 = vmatpush.msra.mxu0 %v222
    %2498 = vmatpush.msra.mxu0 %v218
    %2499 = vmatpush.msra.mxu0 %v214
    %2500 = vmatpush.msra.mxu0 %v210
    %2501 = vmatpush.msra.mxu0 %v206
    %2502 = vmatpush.msra.mxu0 %v202
    %2503 = vmatpush.msra.mxu0 %v198
    %2504 = vmatpush.msra.mxu0 %v194
    %2505 = vmatmul.f32.gmra.mxu0 %v2232
    %v2506 = vpop.f32.mrf.mxu0
    %v2507 = vadd.f32 %v535, %v2506
    %2508 = vdwg.mxu0
    %2509 = vmatpush.msra.mxu0 %v318
    %2510 = vmatpush.msra.mxu0 %v314
    %2511 = vmatpush.msra.mxu0 %v310
    %2512 = vmatpush.msra.mxu0 %v306
    %2513 = vmatpush.msra.mxu0 %v302
    %2514 = vmatpush.msra.mxu0 %v298
    %2515 = vmatpush.msra.mxu0 %v294
    %2516 = vmatpush.msra.mxu0 %v290
    %2517 = vmatpush.msra.mxu0 %v286
    %2518 = vmatpush.msra.mxu0 %v282
    %2519 = vmatpush.msra.mxu0 %v278
    %2520 = vmatpush.msra.mxu0 %v274
    %2521 = vmatpush.msra.mxu0 %v270
    %2522 = vmatpush.msra.mxu0 %v266
    %2523 = vmatpush.msra.mxu0 %v262
    %2524 = vmatpush.msra.mxu0 %v258
    %2525 = vmatmul.f32.gmra.mxu0 %v2407
    %v2526 = vpop.f32.mrf.mxu0
    %v2527 = vadd.f32 %v2507, %v2526
    %2528 = vdwg.mxu0
    %2529 = vmatpush.msra.mxu0 %v255
    %2530 = vmatpush.msra.mxu0 %v251
    %2531 = vmatpush.msra.mxu0 %v247
    %2532 = vmatpush.msra.mxu0 %v243
    %2533 = vmatpush.msra.mxu0 %v239
    %2534 = vmatpush.msra.mxu0 %v235
    %2535 = vmatpush.msra.mxu0 %v231
    %2536 = vmatpush.msra.mxu0 %v227
    %2537 = vmatpush.msra.mxu0 %v223
    %2538 = vmatpush.msra.mxu0 %v219
    %2539 = vmatpush.msra.mxu0 %v215
    %2540 = vmatpush.msra.mxu0 %v211
    %2541 = vmatpush.msra.mxu0 %v207
    %2542 = vmatpush.msra.mxu0 %v203
    %2543 = vmatpush.msra.mxu0 %v199
    %2544 = vmatpush.msra.mxu0 %v195
    %2545 = vmatmul.f32.gmra.mxu0 %v2232
    %v2546 = vpop.f32.mrf.mxu0
    %v2547 = vadd.f32 %v536, %v2546
    %2548 = vdwg.mxu0
    %2549 = vmatpush.msra.mxu0 %v319
    %2550 = vmatpush.msra.mxu0 %v315
    %2551 = vmatpush.msra.mxu0 %v311
    %2552 = vmatpush.msra.mxu0 %v307
    %2553 = vmatpush.msra.mxu0 %v303
    %2554 = vmatpush.msra.mxu0 %v299
    %2555 = vmatpush.msra.mxu0 %v295
    %2556 = vmatpush.msra.mxu0 %v291
    %2557 = vmatpush.msra.mxu0 %v287
    %2558 = vmatpush.msra.mxu0 %v283
    %2559 = vmatpush.msra.mxu0 %v279
    %2560 = vmatpush.msra.mxu0 %v275
    %2561 = vmatpush.msra.mxu0 %v271
    %2562 = vmatpush.msra.mxu0 %v267
    %2563 = vmatpush.msra.mxu0 %v263
    %2564 = vmatpush.msra.mxu0 %v259
    %2565 = vmatmul.f32.gmra.mxu0 %v2407
    %v2566 = vpop.f32.mrf.mxu0
    %v2567 = vadd.f32 %v2547, %v2566
    %2568 = vdwg.mxu0
    %v2569 = vtanh.pop %v2447
    %v2570 = vmul.f32 %v2569, 0.5
    %v2571 = vadd.f32 %v2570, 0.5
    %v2572 = vtanh.pop %v2487
    %v2573 = vmul.f32 %v2572, 0.5
    %v2574 = vadd.f32 %v2573, 0.5
    %v2575 = vtanh.pop %v2527
    %v2576 = vtanh.pop %v2567
    %v2577 = vmul.f32 %v2576, 0.5
    %v2578 = vadd.f32 %v2577, 0.5
    %v2579 = vmul.f32 %v2574, %v2405
    %v2580 = vmul.f32 %v2571, %v2575
    %v2581 = vadd.f32 %v2579, %v2580
    %v2582 = vtanh.pop %v2581
    %v2583 = vmul.f32 %v2578, %v2582
    %2584 = vst [vmem:[#allocation3 + $0x7] sm:$0x1] %v2583
    %v2585 = vld [vmem:[#allocation3] sm:$0xff]
    %v2586 = vld [vmem:[#allocation9] sm:$0xff]
    %v2587 = vld [vmem:[#allocation9 + $0x8] sm:$0xff]
    %v2588 = vld [vmem:[#allocation9 + $0x10] sm:$0xff]
    %v2589 = vld [vmem:[#allocation9 + $0x18] sm:$0xff]
    %v2590 = vld [vmem:[#allocation9 + $0x20] sm:$0xff]
    %v2591 = vld [vmem:[#allocation9 + $0x28] sm:$0xff]
    %v2592 = vld [vmem:[#allocation9 + $0x30] sm:$0xff]
    %v2593 = vld [vmem:[#allocation9 + $0x38] sm:$0xff]
    %v2594 = vld [vmem:[#allocation9 + $0x40] sm:$0xff]
    %v2595 = vld [vmem:[#allocation9 + $0x48] sm:$0xff]
    %v2596 = vld [vmem:[#allocation9 + $0x50] sm:$0xff]
    %v2597 = vld [vmem:[#allocation9 + $0x58] sm:$0xff]
    %v2598 = vld [vmem:[#allocation9 + $0x60] sm:$0xff]
    %v2599 = vld [vmem:[#allocation9 + $0x68] sm:$0xff]
    %v2600 = vld [vmem:[#allocation9 + $0x70] sm:$0xff]
    %v2601 = vld [vmem:[#allocation9 + $0x78] sm:$0xff]
    %v2602 = vld [vmem:[%s7] sm:$0x1]
    %v2604 = vperm.slane %v2602, 0
    %2606 = vmatpush.msra.mxu0 %v2601
    %2607 = vmatpush.msra.mxu0 %v2600
    %2608 = vmatpush.msra.mxu0 %v2599
    %2609 = vmatpush.msra.mxu0 %v2598
    %2610 = vmatpush.msra.mxu0 %v2597
    %2611 = vmatpush.msra.mxu0 %v2596
    %2612 = vmatpush.msra.mxu0 %v2595
    %2613 = vmatpush.msra.mxu0 %v2594
    %2614 = vmatpush.msra.mxu0 %v2593
    %2615 = vmatpush.msra.mxu0 %v2592
    %2616 = vmatpush.msra.mxu0 %v2591
    %2617 = vmatpush.msra.mxu0 %v2590
    %2618 = vmatpush.msra.mxu0 %v2589
    %2619 = vmatpush.msra.mxu0 %v2588
    %2620 = vmatpush.msra.mxu0 %v2587
    %2621 = vmatpush.msra.mxu0 %v2586
    %2622 = vmatmul.f32.gmra.mxu0 %v2585
    %v2623 = vpop.f32.mrf.mxu0
    %v2624 = vadd.f32 %v2604, %v2623
    %2625 = vdwg.mxu0
    %2626 = vst [vmem:[%s8] sm:$0xff] %v2624
    // Predicated region
    $region50: #{_lstm_forward_impl.1} parent=1 // pred_check
      _
    $region51: #{_lstm_forward_impl.1} parent=1 // pred_check_branch
      %2628 = sbr.rel (0) target = $region53
    $region52: #{_lstm_forward_impl.1} parent=1 // pred_region
      _
    $region53: #{_lstm_forward_impl.1} parent=1 // pred_fallthru
      _
    // Predicated region
    $region54: #{_lstm_forward_impl.1} parent=1 // pred_check
      _
    $region55: #{_lstm_forward_impl.1} parent=1 // pred_check_branch
      %2630 = sbr.rel (0) target = $region57
    $region56: #{_lstm_forward_impl.1} parent=1 // pred_region
      _
    $region57: #{_lstm_forward_impl.1} parent=1 // pred_fallthru
      _
    %2631 = vsyncpa [#allocation5], 1
    %2632 = vsyncpa [#allocation7], 1
    %2633 = vsyncpa [#allocation10], 1

</llo_original>
